<compile_context>
chip_gen: v5e
topology: v5e:2x2
jax: 0.10.0
libtpu: 0.0.40
codegen_flags: <defaults>
</compile_context>

<pallas_src>
import functools

import jax
import jax.numpy as jnp
import numpy as np
from jax import lax
from jax.experimental import pallas as pl
from jax.experimental.pallas import tpu as pltpu


# ---------------------------------------------------------------------------
# Static incidence matrix: maps per-pair displacement gradients (45 pairs) to
# the 10 atoms (+1 on the head atom, -1 on the tail atom of every pair).
# Pair ordering matches the torch Feature module: offsets d = 1..9, j = 0..9-d.
# ---------------------------------------------------------------------------
def _build_incidence():
    inc = np.zeros((10, 45), np.float32)
    p = 0
    for d in range(1, 10):
        for j in range(10 - d):
            inc[j + d, p] = 1.0
            inc[j, p] = -1.0
            p += 1
    return inc


_INC = _build_incidence()          # (10, 45)  scatter: pairs -> atoms
_PAIR_T = np.ascontiguousarray(_INC.T)      # (45, 10)  gather: atoms -> pairs
_S08 = np.ascontiguousarray(_INC[:, 0:8])   # bonds 0..7
_S19 = np.ascontiguousarray(_INC[:, 1:9])   # bonds 1..8
_S18 = np.ascontiguousarray(_INC[:, 1:8])   # bonds 1..7
_RED45 = np.ones((1, 45), np.float32)       # row-vector reduction over pairs
_MREP71 = np.zeros((45, 1), np.float32)     # 71 * repel-pair mask
_MREP71[17:45] = 71.0


def _acos_poly(c):
    """arccos on [-1, 1], |abs err| <= 2e-8 (Abramowitz & Stegun 4.4.46)."""
    a = jnp.abs(c)
    p = -0.0012624911
    for coef in (0.0066700901, -0.0170881256, 0.0308918810, -0.0501743046,
                 0.0889789874, -0.2145988016, 1.5707963050):
        p = p * a + coef
    r = jnp.sqrt(jnp.maximum(1.0 - a, 0.0)) * p
    return jnp.where(c >= 0.0, r, np.pi - r)


# ---------------------------------------------------------------------------
# Fused forward + analytic-backward kernel (batch on the lane axis).
# ---------------------------------------------------------------------------
def _energy_force_kernel(coords_ref, pair_ref, inc_ref, s08_ref, s19_ref,
                         s18_ref, red45_ref,
                         wd_ref, wc_ref, ws_ref, wdt_ref, wct_ref, wst_ref,
                         b_in_ref, w_hid_ref, w_hid_t_ref, b_hid_ref,
                         w_out_row_ref, w_out_col_ref, b_out_ref,
                         bond45_ref, bond8_ref,
                         u1_ref, force_ref, *, num_hidden):
    f32 = jnp.float32
    coords = coords_ref[...]                      # (3, 10, n)
    px, py, pz = coords[0], coords[1], coords[2]  # (10, n)
    n = px.shape[1]

    # -------- forward: pair displacements via constant MXU matmul -----------
    pair = pair_ref[...]                                       # (45, 10)
    dx = jnp.dot(pair, px, preferred_element_type=f32)         # (45, n)
    dy = jnp.dot(pair, py, preferred_element_type=f32)
    dz = jnp.dot(pair, pz, preferred_element_type=f32)
    dsq = dx * dx + dy * dy + dz * dz
    inv_dist = lax.rsqrt(dsq)                                  # (45, n)
    dist = dsq * inv_dist

    # bond vectors B_k = rows 0..8 of the pair list
    b0x, b0y, b0z = dx[0:8], dy[0:8], dz[0:8]                  # B_k,     k=0..7
    b1x, b1y, b1z = dx[1:9], dy[1:9], dz[1:9]                  # B_{k+1}
    bmx, bmy, bmz = dx[1:8], dy[1:8], dz[1:8]                  # B_{k+1}, k=1..7
    ib0, ib1 = inv_dist[0:8], inv_dist[1:9]
    bn0, bn1 = dist[0:8], dist[1:9]

    # C_k = B_k x B_{k+1}    (8, n)
    cx = b0y * b1z - b0z * b1y
    cy = b0z * b1x - b0x * b1z
    cz = b0x * b1y - b0y * b1x
    csq = cx * cx + cy * cy + cz * cz
    inv_c = lax.rsqrt(csq)                                     # 1 / |C_k|

    # bond angles (8, n)
    inv_bb = ib0 * ib1
    cos_ang = jnp.clip((b0x * b1x + b0y * b1y + b0z * b1z) * inv_bb, -1.0, 1.0)
    ang = _acos_poly(cos_ang)

    # dihedral cos / sin (7, n)
    c0x, c0y, c0z = cx[0:7], cy[0:7], cz[0:7]
    c1x, c1y, c1z = cx[1:8], cy[1:8], cz[1:8]
    ic0, ic1 = inv_c[0:7], inv_c[1:8]
    nx = c1y * bmz - c1z * bmy                                 # N_k = C_{k+1} x B_{k+1}
    ny = c1z * bmx - c1x * bmz
    nz = c1x * bmy - c1y * bmx
    nsq = nx * nx + ny * ny + nz * nz
    inv_n = lax.rsqrt(nsq)
    inv_cc = ic0 * ic1
    inv_cn = ic0 * inv_n
    cosd = (c0x * c1x + c0y * c1y + c0z * c1z) * inv_cc
    sind = (c0x * nx + c0y * ny + c0z * nz) * inv_cn

    # -------- forward: MLP (z-score folded, W_in split per feature group) ---
    h = (jnp.dot(wd_ref[...], dist, preferred_element_type=f32)
         + jnp.dot(wc_ref[...], cosd, preferred_element_type=f32)
         + jnp.dot(ws_ref[...], sind, preferred_element_type=f32)
         + b_in_ref[...])
    hs = [h]
    for i in range(num_hidden):
        h = jnp.tanh(jnp.dot(w_hid_ref[i], h, preferred_element_type=f32)
                     + b_hid_ref[i])
        hs.append(h)
    mlp = jnp.dot(w_out_row_ref[...], h,
                  preferred_element_type=f32) + b_out_ref[...]          # (1, n)

    # -------- forward: bond + repulsive potentials (full 45-row layout) -----
    bond45 = bond45_ref[...]
    kd45, rd45, mrep71 = bond45[:, 0:1], bond45[:, 1:2], bond45[:, 2:3]
    bond8 = bond8_ref[...]
    ka8, ra8 = bond8[:, 0:1], bond8[:, 1:2]

    dev_d = dist - rd45
    kdev_d = kd45 * dev_d                                      # (45, n)
    rep_density = mrep71 * (inv_dist * inv_dist)               # (45, n)
    u_density = 0.5 * kdev_d * dev_d + rep_density
    dev_a = ang - ra8
    g_ang = ka8 * dev_a                                        # (8, n)

    u1_ref[...] = (mlp
                   + jnp.dot(red45_ref[...], u_density,
                             preferred_element_type=f32)
                   + 0.5 * jnp.sum(g_ang * dev_a, axis=0, keepdims=True))

    # -------- backward: force = -dU1/dx (analytic, fully fused) -------------
    # MLP backprop
    g_a = (1.0 - h * h) * w_out_col_ref[...]                   # (H, n)
    g_h = jnp.dot(w_hid_t_ref[num_hidden - 1], g_a, preferred_element_type=f32)
    for i in range(num_hidden - 2, -1, -1):
        hi = hs[i + 1]
        g_a = g_h * (1.0 - hi * hi)
        g_h = jnp.dot(w_hid_t_ref[i], g_a, preferred_element_type=f32)
    g_dist_mlp = jnp.dot(wdt_ref[...], g_h, preferred_element_type=f32)  # (45, n)
    g_cosd = jnp.dot(wct_ref[...], g_h, preferred_element_type=f32)      # (7, n)
    g_sind = jnp.dot(wst_ref[...], g_h, preferred_element_type=f32)      # (7, n)

    # distance gradients: MLP + bond + repel, all on the 45-row layout
    g_dist = g_dist_mlp + kdev_d - 2.0 * rep_density * inv_dist
    coeff = g_dist * inv_dist
    gvx, gvy, gvz = coeff * dx, coeff * dy, coeff * dz          # (45, n)

    # bond-angle chain; stable d(acos)/dc = -|B_k||B_{k+1}| / |C_k|
    g_cosang = -(g_ang * bn0 * bn1) * inv_c                     # (8, n)
    ib0sq, ib1sq = ib0 * ib0, ib1 * ib1
    gB0x_a = g_cosang * (b1x * inv_bb - cos_ang * b0x * ib0sq)
    gB0y_a = g_cosang * (b1y * inv_bb - cos_ang * b0y * ib0sq)
    gB0z_a = g_cosang * (b1z * inv_bb - cos_ang * b0z * ib0sq)
    gB1x_a = g_cosang * (b0x * inv_bb - cos_ang * b1x * ib1sq)
    gB1y_a = g_cosang * (b0y * inv_bb - cos_ang * b1y * ib1sq)
    gB1z_a = g_cosang * (b0z * inv_bb - cos_ang * b1z * ib1sq)

    # dihedral COS chain (cosine similarity of C_k and C_{k+1})
    ic0sq, ic1sq = ic0 * ic0, ic1 * ic1
    gC0x_c = g_cosd * (c1x * inv_cc - cosd * c0x * ic0sq)
    gC0y_c = g_cosd * (c1y * inv_cc - cosd * c0y * ic0sq)
    gC0z_c = g_cosd * (c1z * inv_cc - cosd * c0z * ic0sq)
    gC1x_c = g_cosd * (c0x * inv_cc - cosd * c1x * ic1sq)
    gC1y_c = g_cosd * (c0y * inv_cc - cosd * c1y * ic1sq)
    gC1z_c = g_cosd * (c0z * inv_cc - cosd * c1z * ic1sq)

    # dihedral SIN chain (cosine similarity of C_k and N_k)
    inv_nsq = inv_n * inv_n
    gC0x_s = g_sind * (nx * inv_cn - sind * c0x * ic0sq)
    gC0y_s = g_sind * (ny * inv_cn - sind * c0y * ic0sq)
    gC0z_s = g_sind * (nz * inv_cn - sind * c0z * ic0sq)
    gNx = g_sind * (c0x * inv_cn - sind * nx * inv_nsq)
    gNy = g_sind * (c0y * inv_cn - sind * ny * inv_nsq)
    gNz = g_sind * (c0z * inv_cn - sind * nz * inv_nsq)

    # N = C[1:8] x B[1:8]  =>  dC[1:8] += B x gN ,  dB[1:8] += gN x C
    gC1x_n = bmy * gNz - bmz * gNy
    gC1y_n = bmz * gNx - bmx * gNz
    gC1z_n = bmx * gNy - bmy * gNx
    gBmx = gNy * c1z - gNz * c1y                                # bonds 1..7
    gBmy = gNz * c1x - gNx * c1z
    gBmz = gNx * c1y - gNy * c1x

    # total grad wrt C (8, n): rows 0..6 from C0-chain, rows 1..7 from C1-chain
    zrow = jnp.zeros((1, n), f32)
    gCx = (jnp.concatenate([gC0x_c + gC0x_s, zrow], axis=0)
           + jnp.concatenate([zrow, gC1x_c + gC1x_n], axis=0))
    gCy = (jnp.concatenate([gC0y_c + gC0y_s, zrow], axis=0)
           + jnp.concatenate([zrow, gC1y_c + gC1y_n], axis=0))
    gCz = (jnp.concatenate([gC0z_c + gC0z_s, zrow], axis=0)
           + jnp.concatenate([zrow, gC1z_c + gC1z_n], axis=0))

    # C = B[0:8] x B[1:9]  =>  dB[0:8] += B[1:9] x gC ,  dB[1:9] += gC x B[0:8]
    gB0x_c = b1y * gCz - b1z * gCy
    gB0y_c = b1z * gCx - b1x * gCz
    gB0z_c = b1x * gCy - b1y * gCx
    gB1x_c = gCy * b0z - gCz * b0y
    gB1y_c = gCz * b0x - gCx * b0z
    gB1z_c = gCx * b0y - gCy * b0x

    # scatter pair / bond-vector gradients onto the 10 atoms (MXU matmuls with
    # shifted constant incidence sub-matrices; no pad/concat assembly needed)
    inc = inc_ref[...]                                          # (10, 45)
    s08, s19, s18 = s08_ref[...], s19_ref[...], s18_ref[...]
    gpx = (jnp.dot(inc, gvx, preferred_element_type=f32)
           + jnp.dot(s08, gB0x_a + gB0x_c, preferred_element_type=f32)
           + jnp.dot(s19, gB1x_a + gB1x_c, preferred_element_type=f32)
           + jnp.dot(s18, gBmx, preferred_element_type=f32))
    gpy = (jnp.dot(inc, gvy, preferred_element_type=f32)
           + jnp.dot(s08, gB0y_a + gB0y_c, preferred_element_type=f32)
           + jnp.dot(s19, gB1y_a + gB1y_c, preferred_element_type=f32)
           + jnp.dot(s18, gBmy, preferred_element_type=f32))
    gpz = (jnp.dot(inc, gvz, preferred_element_type=f32)
           + jnp.dot(s08, gB0z_a + gB0z_c, preferred_element_type=f32)
           + jnp.dot(s19, gB1z_a + gB1z_c, preferred_element_type=f32)
           + jnp.dot(s18, gBmz, preferred_element_type=f32))

    force_ref[0, :, :] = -gpx
    force_ref[1, :, :] = -gpy
    force_ref[2, :, :] = -gpz


# ---------------------------------------------------------------------------
# Wrapper
# ---------------------------------------------------------------------------
def _fold_zscore(params):
    inv_std = 1.0 / params["zstd"]                         # (59, 1)
    w_in_f = params["w_in"] * inv_std.reshape(1, -1)       # (H, 59)
    b_in_f = params["b_in"] - jnp.dot(w_in_f, params["zmean"])
    return w_in_f, b_in_f


@functools.partial(jax.jit, static_argnames=("block_batch",))
def model_forward(x, params, block_batch=1024):
    assert block_batch % 128 == 0
    n = x.shape[0]
    hidden = params["w_in"].shape[0]
    num_hidden = params["w_hid"].shape[0]

    # batch-on-lane layout: coords[component, atom, sample]
    coords = jnp.transpose(x.reshape(n, 10, 3), (2, 1, 0))   # (3, 10, n)

    # lane-dense batch tiles (multiple of 128); keep grid >= 2 so v7x can
    # shard the batch across both TensorCores.
    if n <= block_batch:
        tn = ((max(n, 2) + 1) // 2 + 127) // 128 * 128
        n_pad = 2 * tn
    else:
        tn = block_batch
        n_pad = ((n + tn - 1) // tn) * tn
    if n_pad != n:
        pad = jnp.broadcast_to(coords[:, :, :1], (3, 10, n_pad - n))
        coords = jnp.concatenate([coords, pad], axis=2)
    grid = n_pad // tn

    # fold z-score into layer 0; split per feature group; pre-transpose for
    # the in-kernel backward pass (all trace-time, free).
    w_in_f, b_in_f = _fold_zscore(params)
    wd, wc, ws = w_in_f[:, 0:45], w_in_f[:, 45:52], w_in_f[:, 52:59]
    wdt, wct, wst = wd.T, wc.T, ws.T
    w_hid = params["w_hid"]
    w_hid_t = jnp.transpose(w_hid, (0, 2, 1))
    w_out_row = params["w_out"].reshape(1, -1)               # (1, H)
    w_out_col = params["w_out"].reshape(-1, 1)               # (H, 1)

    bondk, bondr = params["bondk"], params["bondr"]
    zeros36 = jnp.zeros((36, 1), jnp.float32)
    kd45 = jnp.concatenate([bondk[0:9], zeros36], axis=0)
    rd45 = jnp.concatenate([bondr[0:9], zeros36], axis=0)
    bond45 = jnp.concatenate([kd45, rd45, jnp.asarray(_MREP71)], axis=1)  # (45,3)
    bond8 = jnp.concatenate([bondk[9:17], bondr[9:17]], axis=1)           # (8,2)

    flops_per = (6 * 45 * 10
                 + 4 * hidden * 59 + 4 * num_hidden * hidden * hidden
                 + 4 * hidden + 24 * 10 * 68 + 4000)
    cost = pl.CostEstimate(
        flops=int(n_pad * flops_per),
        transcendentals=int(n_pad * (60 + 2 * num_hidden * hidden + 30)),
        bytes_accessed=int(4 * (2 * coords.size + n_pad
                                + 4 * hidden * (59 + num_hidden * hidden))))

    c2 = lambda i: (0, 0)
    c3 = lambda i: (0, 0, 0)

    u1_t, force_t = pl.pallas_call(
        functools.partial(_energy_force_kernel, num_hidden=num_hidden),
        out_shape=(jax.ShapeDtypeStruct((1, n_pad), jnp.float32),
                   jax.ShapeDtypeStruct((3, 10, n_pad), jnp.float32)),
        grid=(grid,),
        in_specs=[
            pl.BlockSpec((3, 10, tn), lambda i: (0, 0, i)),        # coords
            pl.BlockSpec((45, 10), c2),                            # pair gather
            pl.BlockSpec((10, 45), c2),                            # pair scatter
            pl.BlockSpec((10, 8), c2),                             # bonds 0..7
            pl.BlockSpec((10, 8), c2),                             # bonds 1..8
            pl.BlockSpec((10, 7), c2),                             # bonds 1..7
            pl.BlockSpec((1, 45), c2),                             # ones row
            pl.BlockSpec((hidden, 45), c2),                        # W_in[dist]
            pl.BlockSpec((hidden, 7), c2),                         # W_in[cos]
            pl.BlockSpec((hidden, 7), c2),                         # W_in[sin]
            pl.BlockSpec((45, hidden), c2),                        # W_in[dist]^T
            pl.BlockSpec((7, hidden), c2),                         # W_in[cos]^T
            pl.BlockSpec((7, hidden), c2),                         # W_in[sin]^T
            pl.BlockSpec((hidden, 1), c2),                         # b_in (folded)
            pl.BlockSpec((num_hidden, hidden, hidden), c3),        # w_hid
            pl.BlockSpec((num_hidden, hidden, hidden), c3),        # w_hid^T
            pl.BlockSpec((num_hidden, hidden, 1), c3),             # b_hid
            pl.BlockSpec((1, hidden), c2),                         # w_out row
            pl.BlockSpec((hidden, 1), c2),                         # w_out col
            pl.BlockSpec((1, 1), c2),                              # b_out
            pl.BlockSpec((45, 3), c2),                             # kd/rd/71*mask
            pl.BlockSpec((8, 2), c2),                              # ka/ra
        ],
        out_specs=(
            pl.BlockSpec((1, tn), lambda i: (0, i)),               # U1
            pl.BlockSpec((3, 10, tn), lambda i: (0, 0, i)),        # force
        ),
        compiler_params=pltpu.CompilerParams(
            dimension_semantics=("parallel",),
            vmem_limit_bytes=48 * 1024 * 1024),
        cost_estimate=cost,
    )(coords, jnp.asarray(_PAIR_T), jnp.asarray(_INC), jnp.asarray(_S08),
      jnp.asarray(_S19), jnp.asarray(_S18), jnp.asarray(_RED45),
      wd, wc, ws, wdt, wct, wst, b_in_f, w_hid, w_hid_t, params["b_hid"],
      w_out_row, w_out_col, params["b_out"], bond45, bond8)

    u1 = u1_t[:, :n].T                                             # (n, 1)
    force = jnp.transpose(force_t[:, :, :n], (2, 1, 0)).reshape(n, 30)
    # TODO(synk): torch's create_graph=True (higher-order grads through the
    # force) is not exposed; the kernel returns the force values themselves.
    return force, u1


# ---------------------------------------------------------------------------
# Pure-JAX reference (used ONLY as a test oracle in __main__)
# ---------------------------------------------------------------------------
def _feature_ref(x):
    n = x.shape[0]
    P = x.reshape(n, 10, 3)
    Vs = [P[:, d:10, :] - P[:, 0:10 - d, :] for d in range(1, 10)]
    V = jnp.concatenate(Vs, axis=1)
    V12 = Vs[0]
    C = jnp.cross(V12[:, 0:8, :], V12[:, 1:9, :], axis=2)
    N = jnp.cross(C[:, 1:8, :], V12[:, 1:8, :], axis=2)

    def norm(a):
        return jnp.sqrt(jnp.sum(a * a, axis=2))

    COS = jnp.sum(C[:, 0:7] * C[:, 1:8], axis=2) / norm(C[:, 0:7]) / norm(C[:, 1:8])
    SIN = jnp.sum(C[:, 0:7] * N, axis=2) / norm(C[:, 0:7]) / norm(N)
    Ang = jnp.arccos(jnp.sum(V12[:, 0:8] * V12[:, 1:9], axis=2)
                     / norm(V12[:, 0:8]) / norm(V12[:, 1:9]))
    Dist = norm(V)
    return jnp.concatenate([Dist, Ang, COS, SIN], axis=1)


def _u1_ref(x, params):
    f = _feature_ref(x)
    fsel = jnp.concatenate([f[:, 0:45], f[:, 53:67]], axis=1)
    fnorm = (fsel - params["zmean"][:, 0]) / params["zstd"][:, 0]
    h = fnorm @ params["w_in"].T + params["b_in"][:, 0]
    for i in range(params["w_hid"].shape[0]):
        h = jnp.tanh(h @ params["w_hid"][i].T + params["b_hid"][i][:, 0])
    out = h @ params["w_out"].T + params["b_out"][:, 0]
    ub = jnp.concatenate([f[:, 0:9], f[:, 45:53]], axis=1)
    bond = 0.5 * jnp.sum(params["bondk"][:, 0] * (ub - params["bondr"][:, 0]) ** 2,
                         axis=1, keepdims=True)
    repel = jnp.sum(71.0 / f[:, 17:45] ** 2, axis=1, keepdims=True)
    return out + bond + repel


# ---------------------------------------------------------------------------
# Deterministic parameter init (shapes follow Model.__init__(Zscore, BondConst, n, nl))
# Weights are stored in torch Linear orientation (out_features, in_features).
# ---------------------------------------------------------------------------
def init_params(key, hidden, nl):
    assert nl >= 2
    ks = jax.random.split(key, 7)

    def linear(k, fan_in, fan_out):
        kw, kb = jax.random.split(k)
        bound = 1.0 / np.sqrt(fan_in)
        w = jax.random.uniform(kw, (fan_out, fan_in), jnp.float32, -bound, bound)
        b = jax.random.uniform(kb, (fan_out, 1), jnp.float32, -bound, bound)
        return w, b

    w_in, b_in = linear(ks[0], 59, hidden)
    whs, bhs = [], []
    for i in range(nl - 1):
        w, b = linear(jax.random.fold_in(ks[1], i), hidden, hidden)
        whs.append(w)
        bhs.append(b)
    w_hid = jnp.stack(whs)            # (nl-1, H, H)
    b_hid = jnp.stack(bhs)            # (nl-1, H, 1)
    w_out, b_out = linear(ks[2], hidden, 1)

    zmean = jax.random.uniform(ks[3], (59, 1), jnp.float32, -0.5, 0.5)
    zstd = jax.random.uniform(ks[4], (59, 1), jnp.float32, 0.5, 1.5)
    bondk = jax.random.uniform(ks[5], (17, 1), jnp.float32, 1.0, 3.0)
    bondr = jax.random.uniform(ks[6], (17, 1), jnp.float32, 0.5, 1.5)

    return dict(w_in=w_in, b_in=b_in, w_hid=w_hid, b_hid=b_hid,
                w_out=w_out, b_out=b_out,
                zmean=zmean, zstd=zstd, bondk=bondk, bondr=bondr)


def _max_rel_err(a, b):
    scale = jnp.maximum(jnp.max(jnp.abs(b)), 1e-6)
    return float(jnp.max(jnp.abs(a - b)) / scale)


if __name__ == "__main__":
    key = jax.random.PRNGKey(0)
    k_x, k_p = jax.random.split(key)

    batch, hidden, nl = 512, 32, 2
    x = jax.random.normal(k_x, (batch, 30), jnp.float32)   # 10 atoms x 3 coords
    params = init_params(k_p, hidden, nl)

    force, u1 = model_forward(x, params)
    jax.block_until_ready((force, u1))
    assert u1.shape == (batch, 1) and force.shape == (batch, 30)

    # sanity check: energy and force against a pure-JAX autodiff oracle
    u1_chk = _u1_ref(x, params)
    force_chk = jax.grad(lambda xx: -jnp.sum(_u1_ref(xx, params)))(x)
    jax.block_until_ready((u1_chk, force_chk))
    assert _max_rel_err(u1, u1_chk) < 2e-3, "U1 mismatch vs reference"
    assert _max_rel_err(force, force_chk) < 2e-3, "force mismatch vs reference"

    print("KERNEL_OK")
</pallas_src>

<mosaic_0001>
module attributes {stable_mosaic.version = 11 : i64} {
  func.func @_energy_force_kernel(%arg0: i32, %arg1: memref<3x10x256xf32, #tpu.memory_space<vmem>>, %arg2: memref<45x10xf32, #tpu.memory_space<vmem>>, %arg3: memref<10x45xf32, #tpu.memory_space<vmem>>, %arg4: memref<10x8xf32, #tpu.memory_space<vmem>>, %arg5: memref<10x8xf32, #tpu.memory_space<vmem>>, %arg6: memref<10x7xf32, #tpu.memory_space<vmem>>, %arg7: memref<1x45xf32, #tpu.memory_space<vmem>>, %arg8: memref<32x45xf32, #tpu.memory_space<vmem>>, %arg9: memref<32x7xf32, #tpu.memory_space<vmem>>, %arg10: memref<32x7xf32, #tpu.memory_space<vmem>>, %arg11: memref<45x32xf32, #tpu.memory_space<vmem>>, %arg12: memref<7x32xf32, #tpu.memory_space<vmem>>, %arg13: memref<7x32xf32, #tpu.memory_space<vmem>>, %arg14: memref<32x1xf32, #tpu.memory_space<vmem>>, %arg15: memref<1x32x32xf32, #tpu.memory_space<vmem>>, %arg16: memref<1x32x32xf32, #tpu.memory_space<vmem>>, %arg17: memref<1x32x1xf32, #tpu.memory_space<vmem>>, %arg18: memref<1x32xf32, #tpu.memory_space<vmem>>, %arg19: memref<32x1xf32, #tpu.memory_space<vmem>>, %arg20: memref<1x1xf32, #tpu.memory_space<vmem>>, %arg21: memref<45x3xf32, #tpu.memory_space<vmem>>, %arg22: memref<8x2xf32, #tpu.memory_space<vmem>>, %arg23: memref<1x256xf32, #tpu.memory_space<vmem>>, %arg24: memref<3x10x256xf32, #tpu.memory_space<vmem>>) attributes {dimension_semantics = [#tpu.dimension_semantics<parallel>], iteration_bounds = array<i64: 2>, scalar_prefetch = 0 : i64, scratch_operands = 0 : i64, tpu.core_type = #tpu.core_type<tc>, window_params = [{transform_indices = @transform_0, window_bounds = array<i64: 3, 10, 256>}, {pipeline_mode = #tpu.pipeline_mode<synchronous>, transform_indices = @transform_1, window_bounds = array<i64: 45, 10>}, {pipeline_mode = #tpu.pipeline_mode<synchronous>, transform_indices = @transform_2, window_bounds = array<i64: 10, 45>}, {pipeline_mode = #tpu.pipeline_mode<synchronous>, transform_indices = @transform_3, window_bounds = array<i64: 10, 8>}, {pipeline_mode = #tpu.pipeline_mode<synchronous>, transform_indices = @transform_4, window_bounds = array<i64: 10, 8>}, {pipeline_mode = #tpu.pipeline_mode<synchronous>, transform_indices = @transform_5, window_bounds = array<i64: 10, 7>}, {pipeline_mode = #tpu.pipeline_mode<synchronous>, transform_indices = @transform_6, window_bounds = array<i64: 1, 45>}, {pipeline_mode = #tpu.pipeline_mode<synchronous>, transform_indices = @transform_7, window_bounds = array<i64: 32, 45>}, {pipeline_mode = #tpu.pipeline_mode<synchronous>, transform_indices = @transform_8, window_bounds = array<i64: 32, 7>}, {pipeline_mode = #tpu.pipeline_mode<synchronous>, transform_indices = @transform_9, window_bounds = array<i64: 32, 7>}, {pipeline_mode = #tpu.pipeline_mode<synchronous>, transform_indices = @transform_10, window_bounds = array<i64: 45, 32>}, {pipeline_mode = #tpu.pipeline_mode<synchronous>, transform_indices = @transform_11, window_bounds = array<i64: 7, 32>}, {pipeline_mode = #tpu.pipeline_mode<synchronous>, transform_indices = @transform_12, window_bounds = array<i64: 7, 32>}, {pipeline_mode = #tpu.pipeline_mode<synchronous>, transform_indices = @transform_13, window_bounds = array<i64: 32, 1>}, {pipeline_mode = #tpu.pipeline_mode<synchronous>, transform_indices = @transform_14, window_bounds = array<i64: 1, 32, 32>}, {pipeline_mode = #tpu.pipeline_mode<synchronous>, transform_indices = @transform_15, window_bounds = array<i64: 1, 32, 32>}, {pipeline_mode = #tpu.pipeline_mode<synchronous>, transform_indices = @transform_16, window_bounds = array<i64: 1, 32, 1>}, {pipeline_mode = #tpu.pipeline_mode<synchronous>, transform_indices = @transform_17, window_bounds = array<i64: 1, 32>}, {pipeline_mode = #tpu.pipeline_mode<synchronous>, transform_indices = @transform_18, window_bounds = array<i64: 32, 1>}, {pipeline_mode = #tpu.pipeline_mode<synchronous>, transform_indices = @transform_19, window_bounds = array<i64: 1, 1>}, {pipeline_mode = #tpu.pipeline_mode<synchronous>, transform_indices = @transform_20, window_bounds = array<i64: 45, 3>}, {pipeline_mode = #tpu.pipeline_mode<synchronous>, transform_indices = @transform_21, window_bounds = array<i64: 8, 2>}, {transform_indices = @transform_22, window_bounds = array<i64: 1, 256>}, {transform_indices = @transform_23, window_bounds = array<i64: 3, 10, 256>}]} {
    %c0 = arith.constant 0 : index
    %c0_0 = arith.constant 0 : index
    %c0_1 = arith.constant 0 : index
    %0 = vector.load %arg1[%c0, %c0_0, %c0_1] : memref<3x10x256xf32, #tpu.memory_space<vmem>>, vector<3x10x256xf32>
    %1 = vector.extract_strided_slice %0 {offsets = [0, 0, 0], sizes = [1, 10, 256], strides = [1, 1, 1]} : vector<3x10x256xf32> to vector<1x10x256xf32>
    %2 = vector.shape_cast %1 : vector<1x10x256xf32> to vector<10x256xf32>
    %3 = vector.extract_strided_slice %0 {offsets = [1, 0, 0], sizes = [1, 10, 256], strides = [1, 1, 1]} : vector<3x10x256xf32> to vector<1x10x256xf32>
    %4 = vector.shape_cast %3 : vector<1x10x256xf32> to vector<10x256xf32>
    %5 = vector.extract_strided_slice %0 {offsets = [2, 0, 0], sizes = [1, 10, 256], strides = [1, 1, 1]} : vector<3x10x256xf32> to vector<1x10x256xf32>
    %6 = vector.shape_cast %5 : vector<1x10x256xf32> to vector<10x256xf32>
    %c0_2 = arith.constant 0 : index
    %c0_3 = arith.constant 0 : index
    %7 = vector.load %arg2[%c0_2, %c0_3] : memref<45x10xf32, #tpu.memory_space<vmem>>, vector<45x10xf32>
    %cst = arith.constant dense<0.000000e+00> : vector<45x256xf32>
    %8 = tpu.matmul %7, %2, %cst {dimension_numbers = #tpu.dot_dimension_numbers<[1], [0], [0], [1], [0, 0, 1, 1], [], []>} : vector<45x10xf32>, vector<10x256xf32>, vector<45x256xf32> -> vector<45x256xf32>
    %cst_4 = arith.constant dense<0.000000e+00> : vector<45x256xf32>
    %9 = tpu.matmul %7, %4, %cst_4 {dimension_numbers = #tpu.dot_dimension_numbers<[1], [0], [0], [1], [0, 0, 1, 1], [], []>} : vector<45x10xf32>, vector<10x256xf32>, vector<45x256xf32> -> vector<45x256xf32>
    %cst_5 = arith.constant dense<0.000000e+00> : vector<45x256xf32>
    %10 = tpu.matmul %7, %6, %cst_5 {dimension_numbers = #tpu.dot_dimension_numbers<[1], [0], [0], [1], [0, 0, 1, 1], [], []>} : vector<45x10xf32>, vector<10x256xf32>, vector<45x256xf32> -> vector<45x256xf32>
    %11 = arith.mulf %8, %8 : vector<45x256xf32>
    %12 = arith.mulf %9, %9 : vector<45x256xf32>
    %13 = arith.addf %11, %12 : vector<45x256xf32>
    %14 = arith.mulf %10, %10 : vector<45x256xf32>
    %15 = arith.addf %13, %14 : vector<45x256xf32>
    %16 = math.rsqrt %15 : vector<45x256xf32>
    %17 = arith.mulf %15, %16 : vector<45x256xf32>
    %18 = vector.extract_strided_slice %8 {offsets = [0, 0], sizes = [8, 256], strides = [1, 1]} : vector<45x256xf32> to vector<8x256xf32>
    %19 = vector.extract_strided_slice %9 {offsets = [0, 0], sizes = [8, 256], strides = [1, 1]} : vector<45x256xf32> to vector<8x256xf32>
    %20 = vector.extract_strided_slice %10 {offsets = [0, 0], sizes = [8, 256], strides = [1, 1]} : vector<45x256xf32> to vector<8x256xf32>
    %21 = vector.extract_strided_slice %8 {offsets = [1, 0], sizes = [8, 256], strides = [1, 1]} : vector<45x256xf32> to vector<8x256xf32>
    %22 = vector.extract_strided_slice %9 {offsets = [1, 0], sizes = [8, 256], strides = [1, 1]} : vector<45x256xf32> to vector<8x256xf32>
    %23 = vector.extract_strided_slice %10 {offsets = [1, 0], sizes = [8, 256], strides = [1, 1]} : vector<45x256xf32> to vector<8x256xf32>
    %24 = vector.extract_strided_slice %8 {offsets = [1, 0], sizes = [7, 256], strides = [1, 1]} : vector<45x256xf32> to vector<7x256xf32>
    %25 = vector.extract_strided_slice %9 {offsets = [1, 0], sizes = [7, 256], strides = [1, 1]} : vector<45x256xf32> to vector<7x256xf32>
    %26 = vector.extract_strided_slice %10 {offsets = [1, 0], sizes = [7, 256], strides = [1, 1]} : vector<45x256xf32> to vector<7x256xf32>
    %27 = vector.extract_strided_slice %16 {offsets = [0, 0], sizes = [8, 256], strides = [1, 1]} : vector<45x256xf32> to vector<8x256xf32>
    %28 = vector.extract_strided_slice %16 {offsets = [1, 0], sizes = [8, 256], strides = [1, 1]} : vector<45x256xf32> to vector<8x256xf32>
    %29 = vector.extract_strided_slice %17 {offsets = [0, 0], sizes = [8, 256], strides = [1, 1]} : vector<45x256xf32> to vector<8x256xf32>
    %30 = vector.extract_strided_slice %17 {offsets = [1, 0], sizes = [8, 256], strides = [1, 1]} : vector<45x256xf32> to vector<8x256xf32>
    %31 = arith.mulf %19, %23 : vector<8x256xf32>
    %32 = arith.mulf %20, %22 : vector<8x256xf32>
    %33 = arith.subf %31, %32 : vector<8x256xf32>
    %34 = arith.mulf %20, %21 : vector<8x256xf32>
    %35 = arith.mulf %18, %23 : vector<8x256xf32>
    %36 = arith.subf %34, %35 : vector<8x256xf32>
    %37 = arith.mulf %18, %22 : vector<8x256xf32>
    %38 = arith.mulf %19, %21 : vector<8x256xf32>
    %39 = arith.subf %37, %38 : vector<8x256xf32>
    %40 = arith.mulf %33, %33 : vector<8x256xf32>
    %41 = arith.mulf %36, %36 : vector<8x256xf32>
    %42 = arith.addf %40, %41 : vector<8x256xf32>
    %43 = arith.mulf %39, %39 : vector<8x256xf32>
    %44 = arith.addf %42, %43 : vector<8x256xf32>
    %45 = math.rsqrt %44 : vector<8x256xf32>
    %46 = arith.mulf %27, %28 : vector<8x256xf32>
    %47 = arith.mulf %18, %21 : vector<8x256xf32>
    %48 = arith.mulf %19, %22 : vector<8x256xf32>
    %49 = arith.addf %47, %48 : vector<8x256xf32>
    %50 = arith.mulf %20, %23 : vector<8x256xf32>
    %51 = arith.addf %49, %50 : vector<8x256xf32>
    %52 = arith.mulf %51, %46 : vector<8x256xf32>
    %cst_6 = arith.constant -1.000000e+00 : f32
    %cst_7 = arith.constant 1.000000e+00 : f32
    %53 = vector.broadcast %cst_6 : f32 to vector<8x256xf32>
    %54 = arith.maximumf %53, %52 : vector<8x256xf32>
    %55 = vector.broadcast %cst_7 : f32 to vector<8x256xf32>
    %56 = arith.minimumf %55, %54 : vector<8x256xf32>
    %57 = math.absf %56 : vector<8x256xf32>
    %cst_8 = arith.constant -0.0012624911 : f32
    %58 = vector.broadcast %cst_8 : f32 to vector<8x256xf32>
    %59 = arith.mulf %58, %57 : vector<8x256xf32>
    %cst_9 = arith.constant 6.670090e-03 : f32
    %60 = vector.broadcast %cst_9 : f32 to vector<8x256xf32>
    %61 = arith.addf %59, %60 : vector<8x256xf32>
    %62 = arith.mulf %61, %57 : vector<8x256xf32>
    %cst_10 = arith.constant -0.0170881264 : f32
    %63 = vector.broadcast %cst_10 : f32 to vector<8x256xf32>
    %64 = arith.addf %62, %63 : vector<8x256xf32>
    %65 = arith.mulf %64, %57 : vector<8x256xf32>
    %cst_11 = arith.constant 0.0308918804 : f32
    %66 = vector.broadcast %cst_11 : f32 to vector<8x256xf32>
    %67 = arith.addf %65, %66 : vector<8x256xf32>
    %68 = arith.mulf %67, %57 : vector<8x256xf32>
    %cst_12 = arith.constant -0.0501743034 : f32
    %69 = vector.broadcast %cst_12 : f32 to vector<8x256xf32>
    %70 = arith.addf %68, %69 : vector<8x256xf32>
    %71 = arith.mulf %70, %57 : vector<8x256xf32>
    %cst_13 = arith.constant 0.0889789909 : f32
    %72 = vector.broadcast %cst_13 : f32 to vector<8x256xf32>
    %73 = arith.addf %71, %72 : vector<8x256xf32>
    %74 = arith.mulf %73, %57 : vector<8x256xf32>
    %cst_14 = arith.constant -0.214598805 : f32
    %75 = vector.broadcast %cst_14 : f32 to vector<8x256xf32>
    %76 = arith.addf %74, %75 : vector<8x256xf32>
    %77 = arith.mulf %76, %57 : vector<8x256xf32>
    %cst_15 = arith.constant 1.57079625 : f32
    %78 = vector.broadcast %cst_15 : f32 to vector<8x256xf32>
    %79 = arith.addf %77, %78 : vector<8x256xf32>
    %cst_16 = arith.constant 1.000000e+00 : f32
    %80 = vector.broadcast %cst_16 : f32 to vector<8x256xf32>
    %81 = arith.subf %80, %57 : vector<8x256xf32>
    %cst_17 = arith.constant 0.000000e+00 : f32
    %82 = vector.broadcast %cst_17 : f32 to vector<8x256xf32>
    %83 = arith.maximumf %81, %82 : vector<8x256xf32>
    %84 = math.sqrt %83 : vector<8x256xf32>
    %85 = arith.mulf %84, %79 : vector<8x256xf32>
    %cst_18 = arith.constant 0.000000e+00 : f32
    %86 = vector.broadcast %cst_18 : f32 to vector<8x256xf32>
    %87 = arith.cmpf oge, %56, %86 : vector<8x256xf32>
    %cst_19 = arith.constant 3.14159274 : f32
    %88 = vector.broadcast %cst_19 : f32 to vector<8x256xf32>
    %89 = arith.subf %88, %85 : vector<8x256xf32>
    %90 = arith.select %87, %85, %89 : vector<8x256xi1>, vector<8x256xf32>
    %91 = vector.extract_strided_slice %33 {offsets = [0, 0], sizes = [7, 256], strides = [1, 1]} : vector<8x256xf32> to vector<7x256xf32>
    %92 = vector.extract_strided_slice %36 {offsets = [0, 0], sizes = [7, 256], strides = [1, 1]} : vector<8x256xf32> to vector<7x256xf32>
    %93 = vector.extract_strided_slice %39 {offsets = [0, 0], sizes = [7, 256], strides = [1, 1]} : vector<8x256xf32> to vector<7x256xf32>
    %94 = vector.extract_strided_slice %33 {offsets = [1, 0], sizes = [7, 256], strides = [1, 1]} : vector<8x256xf32> to vector<7x256xf32>
    %95 = vector.extract_strided_slice %36 {offsets = [1, 0], sizes = [7, 256], strides = [1, 1]} : vector<8x256xf32> to vector<7x256xf32>
    %96 = vector.extract_strided_slice %39 {offsets = [1, 0], sizes = [7, 256], strides = [1, 1]} : vector<8x256xf32> to vector<7x256xf32>
    %97 = vector.extract_strided_slice %45 {offsets = [0, 0], sizes = [7, 256], strides = [1, 1]} : vector<8x256xf32> to vector<7x256xf32>
    %98 = vector.extract_strided_slice %45 {offsets = [1, 0], sizes = [7, 256], strides = [1, 1]} : vector<8x256xf32> to vector<7x256xf32>
    %99 = arith.mulf %95, %26 : vector<7x256xf32>
    %100 = arith.mulf %96, %25 : vector<7x256xf32>
    %101 = arith.subf %99, %100 : vector<7x256xf32>
    %102 = arith.mulf %96, %24 : vector<7x256xf32>
    %103 = arith.mulf %94, %26 : vector<7x256xf32>
    %104 = arith.subf %102, %103 : vector<7x256xf32>
    %105 = arith.mulf %94, %25 : vector<7x256xf32>
    %106 = arith.mulf %95, %24 : vector<7x256xf32>
    %107 = arith.subf %105, %106 : vector<7x256xf32>
    %108 = arith.mulf %101, %101 : vector<7x256xf32>
    %109 = arith.mulf %104, %104 : vector<7x256xf32>
    %110 = arith.addf %108, %109 : vector<7x256xf32>
    %111 = arith.mulf %107, %107 : vector<7x256xf32>
    %112 = arith.addf %110, %111 : vector<7x256xf32>
    %113 = math.rsqrt %112 : vector<7x256xf32>
    %114 = arith.mulf %97, %98 : vector<7x256xf32>
    %115 = arith.mulf %97, %113 : vector<7x256xf32>
    %116 = arith.mulf %91, %94 : vector<7x256xf32>
    %117 = arith.mulf %92, %95 : vector<7x256xf32>
    %118 = arith.addf %116, %117 : vector<7x256xf32>
    %119 = arith.mulf %93, %96 : vector<7x256xf32>
    %120 = arith.addf %118, %119 : vector<7x256xf32>
    %121 = arith.mulf %120, %114 : vector<7x256xf32>
    %122 = arith.mulf %91, %101 : vector<7x256xf32>
    %123 = arith.mulf %92, %104 : vector<7x256xf32>
    %124 = arith.addf %122, %123 : vector<7x256xf32>
    %125 = arith.mulf %93, %107 : vector<7x256xf32>
    %126 = arith.addf %124, %125 : vector<7x256xf32>
    %127 = arith.mulf %126, %115 : vector<7x256xf32>
    %c0_20 = arith.constant 0 : index
    %c0_21 = arith.constant 0 : index
    %128 = vector.load %arg8[%c0_20, %c0_21] : memref<32x45xf32, #tpu.memory_space<vmem>>, vector<32x45xf32>
    %cst_22 = arith.constant dense<0.000000e+00> : vector<32x256xf32>
    %129 = tpu.matmul %128, %17, %cst_22 {dimension_numbers = #tpu.dot_dimension_numbers<[1], [0], [0], [1], [0, 0, 1, 1], [], []>} : vector<32x45xf32>, vector<45x256xf32>, vector<32x256xf32> -> vector<32x256xf32>
    %c0_23 = arith.constant 0 : index
    %c0_24 = arith.constant 0 : index
    %130 = vector.load %arg9[%c0_23, %c0_24] : memref<32x7xf32, #tpu.memory_space<vmem>>, vector<32x7xf32>
    %cst_25 = arith.constant dense<0.000000e+00> : vector<32x256xf32>
    %131 = tpu.matmul %130, %121, %cst_25 {dimension_numbers = #tpu.dot_dimension_numbers<[1], [0], [0], [1], [0, 0, 1, 1], [], []>} : vector<32x7xf32>, vector<7x256xf32>, vector<32x256xf32> -> vector<32x256xf32>
    %132 = arith.addf %129, %131 : vector<32x256xf32>
    %c0_26 = arith.constant 0 : index
    %c0_27 = arith.constant 0 : index
    %133 = vector.load %arg10[%c0_26, %c0_27] : memref<32x7xf32, #tpu.memory_space<vmem>>, vector<32x7xf32>
    %cst_28 = arith.constant dense<0.000000e+00> : vector<32x256xf32>
    %134 = tpu.matmul %133, %127, %cst_28 {dimension_numbers = #tpu.dot_dimension_numbers<[1], [0], [0], [1], [0, 0, 1, 1], [], []>} : vector<32x7xf32>, vector<7x256xf32>, vector<32x256xf32> -> vector<32x256xf32>
    %135 = arith.addf %132, %134 : vector<32x256xf32>
    %c0_29 = arith.constant 0 : index
    %c0_30 = arith.constant 0 : index
    %136 = vector.load %arg14[%c0_29, %c0_30] : memref<32x1xf32, #tpu.memory_space<vmem>>, vector<32x1xf32>
    %137 = vector.broadcast %136 : vector<32x1xf32> to vector<32x256xf32>
    %138 = arith.addf %135, %137 : vector<32x256xf32>
    %c0_31 = arith.constant 0 : index
    %c0_32 = arith.constant 0 : index
    %c0_33 = arith.constant 0 : index
    %139 = vector.load %arg15[%c0_31, %c0_32, %c0_33] : memref<1x32x32xf32, #tpu.memory_space<vmem>>, vector<1x32x32xf32>
    %140 = vector.shape_cast %139 : vector<1x32x32xf32> to vector<32x32xf32>
    %cst_34 = arith.constant dense<0.000000e+00> : vector<32x256xf32>
    %141 = tpu.matmul %140, %138, %cst_34 {dimension_numbers = #tpu.dot_dimension_numbers<[1], [0], [0], [1], [0, 0, 1, 1], [], []>} : vector<32x32xf32>, vector<32x256xf32>, vector<32x256xf32> -> vector<32x256xf32>
    %c0_35 = arith.constant 0 : index
    %c0_36 = arith.constant 0 : index
    %c0_37 = arith.constant 0 : index
    %142 = vector.load %arg17[%c0_35, %c0_36, %c0_37] : memref<1x32x1xf32, #tpu.memory_space<vmem>>, vector<1x32x1xf32>
    %143 = vector.shape_cast %142 : vector<1x32x1xf32> to vector<32x1xf32>
    %144 = vector.broadcast %143 : vector<32x1xf32> to vector<32x256xf32>
    %145 = arith.addf %141, %144 : vector<32x256xf32>
    %146 = math.tanh %145 : vector<32x256xf32>
    %c0_38 = arith.constant 0 : index
    %c0_39 = arith.constant 0 : index
    %147 = vector.load %arg18[%c0_38, %c0_39] : memref<1x32xf32, #tpu.memory_space<vmem>>, vector<1x32xf32>
    %cst_40 = arith.constant dense<0.000000e+00> : vector<1x256xf32>
    %148 = tpu.matmul %147, %146, %cst_40 {dimension_numbers = #tpu.dot_dimension_numbers<[1], [0], [0], [1], [0, 0, 1, 1], [], []>} : vector<1x32xf32>, vector<32x256xf32>, vector<1x256xf32> -> vector<1x256xf32>
    %c0_41 = arith.constant 0 : index
    %c0_42 = arith.constant 0 : index
    %149 = vector.load %arg20[%c0_41, %c0_42] : memref<1x1xf32, #tpu.memory_space<vmem>>, vector<1x1xf32>
    %150 = vector.broadcast %149 : vector<1x1xf32> to vector<1x256xf32>
    %151 = arith.addf %148, %150 : vector<1x256xf32>
    %c0_43 = arith.constant 0 : index
    %c0_44 = arith.constant 0 : index
    %152 = vector.load %arg21[%c0_43, %c0_44] : memref<45x3xf32, #tpu.memory_space<vmem>>, vector<45x3xf32>
    %153 = vector.extract_strided_slice %152 {offsets = [0, 0], sizes = [45, 1], strides = [1, 1]} : vector<45x3xf32> to vector<45x1xf32>
    %154 = vector.extract_strided_slice %152 {offsets = [0, 1], sizes = [45, 1], strides = [1, 1]} : vector<45x3xf32> to vector<45x1xf32>
    %155 = vector.extract_strided_slice %152 {offsets = [0, 2], sizes = [45, 1], strides = [1, 1]} : vector<45x3xf32> to vector<45x1xf32>
    %c0_45 = arith.constant 0 : index
    %c0_46 = arith.constant 0 : index
    %156 = vector.load %arg22[%c0_45, %c0_46] : memref<8x2xf32, #tpu.memory_space<vmem>>, vector<8x2xf32>
    %157 = vector.extract_strided_slice %156 {offsets = [0, 0], sizes = [8, 1], strides = [1, 1]} : vector<8x2xf32> to vector<8x1xf32>
    %158 = vector.extract_strided_slice %156 {offsets = [0, 1], sizes = [8, 1], strides = [1, 1]} : vector<8x2xf32> to vector<8x1xf32>
    %159 = vector.broadcast %154 : vector<45x1xf32> to vector<45x256xf32>
    %160 = arith.subf %17, %159 : vector<45x256xf32>
    %161 = vector.broadcast %153 : vector<45x1xf32> to vector<45x256xf32>
    %162 = arith.mulf %161, %160 : vector<45x256xf32>
    %163 = arith.mulf %16, %16 : vector<45x256xf32>
    %164 = vector.broadcast %155 : vector<45x1xf32> to vector<45x256xf32>
    %165 = arith.mulf %164, %163 : vector<45x256xf32>
    %cst_47 = arith.constant 5.000000e-01 : f32
    %166 = vector.broadcast %cst_47 : f32 to vector<45x256xf32>
    %167 = arith.mulf %166, %162 : vector<45x256xf32>
    %168 = arith.mulf %167, %160 : vector<45x256xf32>
    %169 = arith.addf %168, %165 : vector<45x256xf32>
    %170 = vector.broadcast %158 : vector<8x1xf32> to vector<8x256xf32>
    %171 = arith.subf %90, %170 : vector<8x256xf32>
    %172 = vector.broadcast %157 : vector<8x1xf32> to vector<8x256xf32>
    %173 = arith.mulf %172, %171 : vector<8x256xf32>
    %c0_48 = arith.constant 0 : index
    %c0_49 = arith.constant 0 : index
    %174 = vector.load %arg7[%c0_48, %c0_49] : memref<1x45xf32, #tpu.memory_space<vmem>>, vector<1x45xf32>
    %cst_50 = arith.constant dense<0.000000e+00> : vector<1x256xf32>
    %175 = tpu.matmul %174, %169, %cst_50 {dimension_numbers = #tpu.dot_dimension_numbers<[1], [0], [0], [1], [0, 0, 1, 1], [], []>} : vector<1x45xf32>, vector<45x256xf32>, vector<1x256xf32> -> vector<1x256xf32>
    %176 = arith.addf %151, %175 : vector<1x256xf32>
    %177 = arith.mulf %173, %171 : vector<8x256xf32>
    %cst_51 = arith.constant dense<0.000000e+00> : vector<256xf32>
    %178 = vector.multi_reduction <add>, %177, %cst_51 [0] : vector<8x256xf32> to vector<256xf32>
    %179 = vector.shape_cast %178 : vector<256xf32> to vector<1x256xf32>
    %cst_52 = arith.constant 5.000000e-01 : f32
    %180 = vector.broadcast %cst_52 : f32 to vector<1x256xf32>
    %181 = arith.mulf %180, %179 : vector<1x256xf32>
    %182 = arith.addf %176, %181 : vector<1x256xf32>
    %c0_53 = arith.constant 0 : index
    %c0_54 = arith.constant 0 : index
    %183 = vector.load %arg23[%c0_53, %c0_54] : memref<1x256xf32, #tpu.memory_space<vmem>>, vector<1x256xf32>
    tpu.vector_store %arg23[%c0_53, %c0_54], %182 {strides = array<i32>} : memref<1x256xf32, #tpu.memory_space<vmem>>, vector<1x256xf32>,
    %184 = arith.mulf %146, %146 : vector<32x256xf32>
    %cst_55 = arith.constant 1.000000e+00 : f32
    %185 = vector.broadcast %cst_55 : f32 to vector<32x256xf32>
    %186 = arith.subf %185, %184 : vector<32x256xf32>
    %c0_56 = arith.constant 0 : index
    %c0_57 = arith.constant 0 : index
    %187 = vector.load %arg19[%c0_56, %c0_57] : memref<32x1xf32, #tpu.memory_space<vmem>>, vector<32x1xf32>
    %188 = vector.broadcast %187 : vector<32x1xf32> to vector<32x256xf32>
    %189 = arith.mulf %186, %188 : vector<32x256xf32>
    %c0_58 = arith.constant 0 : index
    %c0_59 = arith.constant 0 : index
    %c0_60 = arith.constant 0 : index
    %190 = vector.load %arg16[%c0_58, %c0_59, %c0_60] : memref<1x32x32xf32, #tpu.memory_space<vmem>>, vector<1x32x32xf32>
    %191 = vector.shape_cast %190 : vector<1x32x32xf32> to vector<32x32xf32>
    %cst_61 = arith.constant dense<0.000000e+00> : vector<32x256xf32>
    %192 = tpu.matmul %191, %189, %cst_61 {dimension_numbers = #tpu.dot_dimension_numbers<[1], [0], [0], [1], [0, 0, 1, 1], [], []>} : vector<32x32xf32>, vector<32x256xf32>, vector<32x256xf32> -> vector<32x256xf32>
    %c0_62 = arith.constant 0 : index
    %c0_63 = arith.constant 0 : index
    %193 = vector.load %arg11[%c0_62, %c0_63] : memref<45x32xf32, #tpu.memory_space<vmem>>, vector<45x32xf32>
    %cst_64 = arith.constant dense<0.000000e+00> : vector<45x256xf32>
    %194 = tpu.matmul %193, %192, %cst_64 {dimension_numbers = #tpu.dot_dimension_numbers<[1], [0], [0], [1], [0, 0, 1, 1], [], []>} : vector<45x32xf32>, vector<32x256xf32>, vector<45x256xf32> -> vector<45x256xf32>
    %c0_65 = arith.constant 0 : index
    %c0_66 = arith.constant 0 : index
    %195 = vector.load %arg12[%c0_65, %c0_66] : memref<7x32xf32, #tpu.memory_space<vmem>>, vector<7x32xf32>
    %cst_67 = arith.constant dense<0.000000e+00> : vector<7x256xf32>
    %196 = tpu.matmul %195, %192, %cst_67 {dimension_numbers = #tpu.dot_dimension_numbers<[1], [0], [0], [1], [0, 0, 1, 1], [], []>} : vector<7x32xf32>, vector<32x256xf32>, vector<7x256xf32> -> vector<7x256xf32>
    %c0_68 = arith.constant 0 : index
    %c0_69 = arith.constant 0 : index
    %197 = vector.load %arg13[%c0_68, %c0_69] : memref<7x32xf32, #tpu.memory_space<vmem>>, vector<7x32xf32>
    %cst_70 = arith.constant dense<0.000000e+00> : vector<7x256xf32>
    %198 = tpu.matmul %197, %192, %cst_70 {dimension_numbers = #tpu.dot_dimension_numbers<[1], [0], [0], [1], [0, 0, 1, 1], [], []>} : vector<7x32xf32>, vector<32x256xf32>, vector<7x256xf32> -> vector<7x256xf32>
    %199 = arith.addf %194, %162 : vector<45x256xf32>
    %cst_71 = arith.constant 2.000000e+00 : f32
    %200 = vector.broadcast %cst_71 : f32 to vector<45x256xf32>
    %201 = arith.mulf %200, %165 : vector<45x256xf32>
    %202 = arith.mulf %201, %16 : vector<45x256xf32>
    %203 = arith.subf %199, %202 : vector<45x256xf32>
    %204 = arith.mulf %203, %16 : vector<45x256xf32>
    %205 = arith.mulf %204, %8 : vector<45x256xf32>
    %206 = arith.mulf %204, %9 : vector<45x256xf32>
    %207 = arith.mulf %204, %10 : vector<45x256xf32>
    %208 = arith.mulf %173, %29 : vector<8x256xf32>
    %209 = arith.mulf %208, %30 : vector<8x256xf32>
    %cst_72 = arith.constant 0.000000e+00 : f32
    %210 = vector.broadcast %cst_72 : f32 to vector<8x256xf32>
    %211 = arith.subf %210, %209 : vector<8x256xf32>
    %212 = arith.mulf %211, %45 : vector<8x256xf32>
    %213 = arith.mulf %27, %27 : vector<8x256xf32>
    %214 = arith.mulf %28, %28 : vector<8x256xf32>
    %215 = arith.mulf %21, %46 : vector<8x256xf32>
    %216 = arith.mulf %56, %18 : vector<8x256xf32>
    %217 = arith.mulf %216, %213 : vector<8x256xf32>
    %218 = arith.subf %215, %217 : vector<8x256xf32>
    %219 = arith.mulf %212, %218 : vector<8x256xf32>
    %220 = arith.mulf %22, %46 : vector<8x256xf32>
    %221 = arith.mulf %56, %19 : vector<8x256xf32>
    %222 = arith.mulf %221, %213 : vector<8x256xf32>
    %223 = arith.subf %220, %222 : vector<8x256xf32>
    %224 = arith.mulf %212, %223 : vector<8x256xf32>
    %225 = arith.mulf %23, %46 : vector<8x256xf32>
    %226 = arith.mulf %56, %20 : vector<8x256xf32>
    %227 = arith.mulf %226, %213 : vector<8x256xf32>
    %228 = arith.subf %225, %227 : vector<8x256xf32>
    %229 = arith.mulf %212, %228 : vector<8x256xf32>
    %230 = arith.mulf %18, %46 : vector<8x256xf32>
    %231 = arith.mulf %56, %21 : vector<8x256xf32>
    %232 = arith.mulf %231, %214 : vector<8x256xf32>
    %233 = arith.subf %230, %232 : vector<8x256xf32>
    %234 = arith.mulf %212, %233 : vector<8x256xf32>
    %235 = arith.mulf %19, %46 : vector<8x256xf32>
    %236 = arith.mulf %56, %22 : vector<8x256xf32>
    %237 = arith.mulf %236, %214 : vector<8x256xf32>
    %238 = arith.subf %235, %237 : vector<8x256xf32>
    %239 = arith.mulf %212, %238 : vector<8x256xf32>
    %240 = arith.mulf %20, %46 : vector<8x256xf32>
    %241 = arith.mulf %56, %23 : vector<8x256xf32>
    %242 = arith.mulf %241, %214 : vector<8x256xf32>
    %243 = arith.subf %240, %242 : vector<8x256xf32>
    %244 = arith.mulf %212, %243 : vector<8x256xf32>
    %245 = arith.mulf %97, %97 : vector<7x256xf32>
    %246 = arith.mulf %98, %98 : vector<7x256xf32>
    %247 = arith.mulf %94, %114 : vector<7x256xf32>
    %248 = arith.mulf %121, %91 : vector<7x256xf32>
    %249 = arith.mulf %248, %245 : vector<7x256xf32>
    %250 = arith.subf %247, %249 : vector<7x256xf32>
    %251 = arith.mulf %196, %250 : vector<7x256xf32>
    %252 = arith.mulf %95, %114 : vector<7x256xf32>
    %253 = arith.mulf %121, %92 : vector<7x256xf32>
    %254 = arith.mulf %253, %245 : vector<7x256xf32>
    %255 = arith.subf %252, %254 : vector<7x256xf32>
    %256 = arith.mulf %196, %255 : vector<7x256xf32>
    %257 = arith.mulf %96, %114 : vector<7x256xf32>
    %258 = arith.mulf %121, %93 : vector<7x256xf32>
    %259 = arith.mulf %258, %245 : vector<7x256xf32>
    %260 = arith.subf %257, %259 : vector<7x256xf32>
    %261 = arith.mulf %196, %260 : vector<7x256xf32>
    %262 = arith.mulf %91, %114 : vector<7x256xf32>
    %263 = arith.mulf %121, %94 : vector<7x256xf32>
    %264 = arith.mulf %263, %246 : vector<7x256xf32>
    %265 = arith.subf %262, %264 : vector<7x256xf32>
    %266 = arith.mulf %196, %265 : vector<7x256xf32>
    %267 = arith.mulf %92, %114 : vector<7x256xf32>
    %268 = arith.mulf %121, %95 : vector<7x256xf32>
    %269 = arith.mulf %268, %246 : vector<7x256xf32>
    %270 = arith.subf %267, %269 : vector<7x256xf32>
    %271 = arith.mulf %196, %270 : vector<7x256xf32>
    %272 = arith.mulf %93, %114 : vector<7x256xf32>
    %273 = arith.mulf %121, %96 : vector<7x256xf32>
    %274 = arith.mulf %273, %246 : vector<7x256xf32>
    %275 = arith.subf %272, %274 : vector<7x256xf32>
    %276 = arith.mulf %196, %275 : vector<7x256xf32>
    %277 = arith.mulf %113, %113 : vector<7x256xf32>
    %278 = arith.mulf %101, %115 : vector<7x256xf32>
    %279 = arith.mulf %127, %91 : vector<7x256xf32>
    %280 = arith.mulf %279, %245 : vector<7x256xf32>
    %281 = arith.subf %278, %280 : vector<7x256xf32>
    %282 = arith.mulf %198, %281 : vector<7x256xf32>
    %283 = arith.mulf %104, %115 : vector<7x256xf32>
    %284 = arith.mulf %127, %92 : vector<7x256xf32>
    %285 = arith.mulf %284, %245 : vector<7x256xf32>
    %286 = arith.subf %283, %285 : vector<7x256xf32>
    %287 = arith.mulf %198, %286 : vector<7x256xf32>
    %288 = arith.mulf %107, %115 : vector<7x256xf32>
    %289 = arith.mulf %127, %93 : vector<7x256xf32>
    %290 = arith.mulf %289, %245 : vector<7x256xf32>
    %291 = arith.subf %288, %290 : vector<7x256xf32>
    %292 = arith.mulf %198, %291 : vector<7x256xf32>
    %293 = arith.mulf %91, %115 : vector<7x256xf32>
    %294 = arith.mulf %127, %101 : vector<7x256xf32>
    %295 = arith.mulf %294, %277 : vector<7x256xf32>
    %296 = arith.subf %293, %295 : vector<7x256xf32>
    %297 = arith.mulf %198, %296 : vector<7x256xf32>
    %298 = arith.mulf %92, %115 : vector<7x256xf32>
    %299 = arith.mulf %127, %104 : vector<7x256xf32>
    %300 = arith.mulf %299, %277 : vector<7x256xf32>
    %301 = arith.subf %298, %300 : vector<7x256xf32>
    %302 = arith.mulf %198, %301 : vector<7x256xf32>
    %303 = arith.mulf %93, %115 : vector<7x256xf32>
    %304 = arith.mulf %127, %107 : vector<7x256xf32>
    %305 = arith.mulf %304, %277 : vector<7x256xf32>
    %306 = arith.subf %303, %305 : vector<7x256xf32>
    %307 = arith.mulf %198, %306 : vector<7x256xf32>
    %308 = arith.mulf %25, %307 : vector<7x256xf32>
    %309 = arith.mulf %26, %302 : vector<7x256xf32>
    %310 = arith.subf %308, %309 : vector<7x256xf32>
    %311 = arith.mulf %26, %297 : vector<7x256xf32>
    %312 = arith.mulf %24, %307 : vector<7x256xf32>
    %313 = arith.subf %311, %312 : vector<7x256xf32>
    %314 = arith.mulf %24, %302 : vector<7x256xf32>
    %315 = arith.mulf %25, %297 : vector<7x256xf32>
    %316 = arith.subf %314, %315 : vector<7x256xf32>
    %317 = arith.mulf %302, %96 : vector<7x256xf32>
    %318 = arith.mulf %307, %95 : vector<7x256xf32>
    %319 = arith.subf %317, %318 : vector<7x256xf32>
    %320 = arith.mulf %307, %94 : vector<7x256xf32>
    %321 = arith.mulf %297, %96 : vector<7x256xf32>
    %322 = arith.subf %320, %321 : vector<7x256xf32>
    %323 = arith.mulf %297, %95 : vector<7x256xf32>
    %324 = arith.mulf %302, %94 : vector<7x256xf32>
    %325 = arith.subf %323, %324 : vector<7x256xf32>
    %cst_73 = arith.constant 0.000000e+00 : f32
    %326 = vector.broadcast %cst_73 : f32 to vector<1x256xf32>
    %327 = arith.addf %251, %282 : vector<7x256xf32>
    %328 = tpu.concatenate %327, %326 in 0 : vector<7x256xf32>, vector<1x256xf32> -> vector<8x256xf32>
    %329 = arith.addf %266, %310 : vector<7x256xf32>
    %330 = tpu.concatenate %326, %329 in 0 : vector<1x256xf32>, vector<7x256xf32> -> vector<8x256xf32>
    %331 = arith.addf %328, %330 : vector<8x256xf32>
    %332 = arith.addf %256, %287 : vector<7x256xf32>
    %333 = tpu.concatenate %332, %326 in 0 : vector<7x256xf32>, vector<1x256xf32> -> vector<8x256xf32>
    %334 = arith.addf %271, %313 : vector<7x256xf32>
    %335 = tpu.concatenate %326, %334 in 0 : vector<1x256xf32>, vector<7x256xf32> -> vector<8x256xf32>
    %336 = arith.addf %333, %335 : vector<8x256xf32>
    %337 = arith.addf %261, %292 : vector<7x256xf32>
    %338 = tpu.concatenate %337, %326 in 0 : vector<7x256xf32>, vector<1x256xf32> -> vector<8x256xf32>
    %339 = arith.addf %276, %316 : vector<7x256xf32>
    %340 = tpu.concatenate %326, %339 in 0 : vector<1x256xf32>, vector<7x256xf32> -> vector<8x256xf32>
    %341 = arith.addf %338, %340 : vector<8x256xf32>
    %342 = arith.mulf %22, %341 : vector<8x256xf32>
    %343 = arith.mulf %23, %336 : vector<8x256xf32>
    %344 = arith.subf %342, %343 : vector<8x256xf32>
    %345 = arith.mulf %23, %331 : vector<8x256xf32>
    %346 = arith.mulf %21, %341 : vector<8x256xf32>
    %347 = arith.subf %345, %346 : vector<8x256xf32>
    %348 = arith.mulf %21, %336 : vector<8x256xf32>
    %349 = arith.mulf %22, %331 : vector<8x256xf32>
    %350 = arith.subf %348, %349 : vector<8x256xf32>
    %351 = arith.mulf %336, %20 : vector<8x256xf32>
    %352 = arith.mulf %341, %19 : vector<8x256xf32>
    %353 = arith.subf %351, %352 : vector<8x256xf32>
    %354 = arith.mulf %341, %18 : vector<8x256xf32>
    %355 = arith.mulf %331, %20 : vector<8x256xf32>
    %356 = arith.subf %354, %355 : vector<8x256xf32>
    %357 = arith.mulf %331, %19 : vector<8x256xf32>
    %358 = arith.mulf %336, %18 : vector<8x256xf32>
    %359 = arith.subf %357, %358 : vector<8x256xf32>
    %c0_74 = arith.constant 0 : index
    %c0_75 = arith.constant 0 : index
    %360 = vector.load %arg3[%c0_74, %c0_75] : memref<10x45xf32, #tpu.memory_space<vmem>>, vector<10x45xf32>
    %c0_76 = arith.constant 0 : index
    %c0_77 = arith.constant 0 : index
    %361 = vector.load %arg4[%c0_76, %c0_77] : memref<10x8xf32, #tpu.memory_space<vmem>>, vector<10x8xf32>
    %c0_78 = arith.constant 0 : index
    %c0_79 = arith.constant 0 : index
    %362 = vector.load %arg5[%c0_78, %c0_79] : memref<10x8xf32, #tpu.memory_space<vmem>>, vector<10x8xf32>
    %c0_80 = arith.constant 0 : index
    %c0_81 = arith.constant 0 : index
    %363 = vector.load %arg6[%c0_80, %c0_81] : memref<10x7xf32, #tpu.memory_space<vmem>>, vector<10x7xf32>
    %cst_82 = arith.constant dense<0.000000e+00> : vector<10x256xf32>
    %364 = tpu.matmul %360, %205, %cst_82 {dimension_numbers = #tpu.dot_dimension_numbers<[1], [0], [0], [1], [0, 0, 1, 1], [], []>} : vector<10x45xf32>, vector<45x256xf32>, vector<10x256xf32> -> vector<10x256xf32>
    %365 = arith.addf %219, %344 : vector<8x256xf32>
    %cst_83 = arith.constant dense<0.000000e+00> : vector<10x256xf32>
    %366 = tpu.matmul %361, %365, %cst_83 {dimension_numbers = #tpu.dot_dimension_numbers<[1], [0], [0], [1], [0, 0, 1, 1], [], []>} : vector<10x8xf32>, vector<8x256xf32>, vector<10x256xf32> -> vector<10x256xf32>
    %367 = arith.addf %364, %366 : vector<10x256xf32>
    %368 = arith.addf %234, %353 : vector<8x256xf32>
    %cst_84 = arith.constant dense<0.000000e+00> : vector<10x256xf32>
    %369 = tpu.matmul %362, %368, %cst_84 {dimension_numbers = #tpu.dot_dimension_numbers<[1], [0], [0], [1], [0, 0, 1, 1], [], []>} : vector<10x8xf32>, vector<8x256xf32>, vector<10x256xf32> -> vector<10x256xf32>
    %370 = arith.addf %367, %369 : vector<10x256xf32>
    %cst_85 = arith.constant dense<0.000000e+00> : vector<10x256xf32>
    %371 = tpu.matmul %363, %319, %cst_85 {dimension_numbers = #tpu.dot_dimension_numbers<[1], [0], [0], [1], [0, 0, 1, 1], [], []>} : vector<10x7xf32>, vector<7x256xf32>, vector<10x256xf32> -> vector<10x256xf32>
    %372 = arith.addf %370, %371 : vector<10x256xf32>
    %cst_86 = arith.constant dense<0.000000e+00> : vector<10x256xf32>
    %373 = tpu.matmul %360, %206, %cst_86 {dimension_numbers = #tpu.dot_dimension_numbers<[1], [0], [0], [1], [0, 0, 1, 1], [], []>} : vector<10x45xf32>, vector<45x256xf32>, vector<10x256xf32> -> vector<10x256xf32>
    %374 = arith.addf %224, %347 : vector<8x256xf32>
    %cst_87 = arith.constant dense<0.000000e+00> : vector<10x256xf32>
    %375 = tpu.matmul %361, %374, %cst_87 {dimension_numbers = #tpu.dot_dimension_numbers<[1], [0], [0], [1], [0, 0, 1, 1], [], []>} : vector<10x8xf32>, vector<8x256xf32>, vector<10x256xf32> -> vector<10x256xf32>
    %376 = arith.addf %373, %375 : vector<10x256xf32>
    %377 = arith.addf %239, %356 : vector<8x256xf32>
    %cst_88 = arith.constant dense<0.000000e+00> : vector<10x256xf32>
    %378 = tpu.matmul %362, %377, %cst_88 {dimension_numbers = #tpu.dot_dimension_numbers<[1], [0], [0], [1], [0, 0, 1, 1], [], []>} : vector<10x8xf32>, vector<8x256xf32>, vector<10x256xf32> -> vector<10x256xf32>
    %379 = arith.addf %376, %378 : vector<10x256xf32>
    %cst_89 = arith.constant dense<0.000000e+00> : vector<10x256xf32>
    %380 = tpu.matmul %363, %322, %cst_89 {dimension_numbers = #tpu.dot_dimension_numbers<[1], [0], [0], [1], [0, 0, 1, 1], [], []>} : vector<10x7xf32>, vector<7x256xf32>, vector<10x256xf32> -> vector<10x256xf32>
    %381 = arith.addf %379, %380 : vector<10x256xf32>
    %cst_90 = arith.constant dense<0.000000e+00> : vector<10x256xf32>
    %382 = tpu.matmul %360, %207, %cst_90 {dimension_numbers = #tpu.dot_dimension_numbers<[1], [0], [0], [1], [0, 0, 1, 1], [], []>} : vector<10x45xf32>, vector<45x256xf32>, vector<10x256xf32> -> vector<10x256xf32>
    %383 = arith.addf %229, %350 : vector<8x256xf32>
    %cst_91 = arith.constant dense<0.000000e+00> : vector<10x256xf32>
    %384 = tpu.matmul %361, %383, %cst_91 {dimension_numbers = #tpu.dot_dimension_numbers<[1], [0], [0], [1], [0, 0, 1, 1], [], []>} : vector<10x8xf32>, vector<8x256xf32>, vector<10x256xf32> -> vector<10x256xf32>
    %385 = arith.addf %382, %384 : vector<10x256xf32>
    %386 = arith.addf %244, %359 : vector<8x256xf32>
    %cst_92 = arith.constant dense<0.000000e+00> : vector<10x256xf32>
    %387 = tpu.matmul %362, %386, %cst_92 {dimension_numbers = #tpu.dot_dimension_numbers<[1], [0], [0], [1], [0, 0, 1, 1], [], []>} : vector<10x8xf32>, vector<8x256xf32>, vector<10x256xf32> -> vector<10x256xf32>
    %388 = arith.addf %385, %387 : vector<10x256xf32>
    %cst_93 = arith.constant dense<0.000000e+00> : vector<10x256xf32>
    %389 = tpu.matmul %363, %325, %cst_93 {dimension_numbers = #tpu.dot_dimension_numbers<[1], [0], [0], [1], [0, 0, 1, 1], [], []>} : vector<10x7xf32>, vector<7x256xf32>, vector<10x256xf32> -> vector<10x256xf32>
    %390 = arith.addf %388, %389 : vector<10x256xf32>
    %cst_94 = arith.constant 0.000000e+00 : f32
    %391 = vector.broadcast %cst_94 : f32 to vector<10x256xf32>
    %392 = arith.subf %391, %372 : vector<10x256xf32>
    %c0_95 = arith.constant 0 : index
    %c0_96 = arith.constant 0 : index
    %c0_97 = arith.constant 0 : index
    %393 = vector.load %arg24[%c0_95, %c0_96, %c0_97] : memref<3x10x256xf32, #tpu.memory_space<vmem>>, vector<1x10x256xf32>
    %394 = vector.shape_cast %393 : vector<1x10x256xf32> to vector<10x256xf32>
    %395 = vector.shape_cast %392 : vector<10x256xf32> to vector<1x10x256xf32>
    tpu.vector_store %arg24[%c0_95, %c0_96, %c0_97], %395 {strides = array<i32>} : memref<3x10x256xf32, #tpu.memory_space<vmem>>, vector<1x10x256xf32>,
    %cst_98 = arith.constant 0.000000e+00 : f32
    %396 = vector.broadcast %cst_98 : f32 to vector<10x256xf32>
    %397 = arith.subf %396, %381 : vector<10x256xf32>
    %c1 = arith.constant 1 : index
    %c0_99 = arith.constant 0 : index
    %c0_100 = arith.constant 0 : index
    %398 = vector.load %arg24[%c1, %c0_99, %c0_100] : memref<3x10x256xf32, #tpu.memory_space<vmem>>, vector<1x10x256xf32>
    %399 = vector.shape_cast %398 : vector<1x10x256xf32> to vector<10x256xf32>
    %400 = vector.shape_cast %397 : vector<10x256xf32> to vector<1x10x256xf32>
    tpu.vector_store %arg24[%c1, %c0_99, %c0_100], %400 {strides = array<i32>} : memref<3x10x256xf32, #tpu.memory_space<vmem>>, vector<1x10x256xf32>,
    %cst_101 = arith.constant 0.000000e+00 : f32
    %401 = vector.broadcast %cst_101 : f32 to vector<10x256xf32>
    %402 = arith.subf %401, %390 : vector<10x256xf32>
    %c2 = arith.constant 2 : index
    %c0_102 = arith.constant 0 : index
    %c0_103 = arith.constant 0 : index
    %403 = vector.load %arg24[%c2, %c0_102, %c0_103] : memref<3x10x256xf32, #tpu.memory_space<vmem>>, vector<1x10x256xf32>
    %404 = vector.shape_cast %403 : vector<1x10x256xf32> to vector<10x256xf32>
    %405 = vector.shape_cast %402 : vector<10x256xf32> to vector<1x10x256xf32>
    tpu.vector_store %arg24[%c2, %c0_102, %c0_103], %405 {strides = array<i32>} : memref<3x10x256xf32, #tpu.memory_space<vmem>>, vector<1x10x256xf32>,
    return
  }
  func.func @transform_0(%arg0: i32) -> (i32, i32, i32) {
    %c0_i32 = arith.constant 0 : i32
    %c0_i32_0 = arith.constant 0 : i32
    %c0_i32_1 = arith.constant 0 : i32
    return %c0_i32, %c0_i32_0, %arg0 : i32, i32, i32
  }
  func.func @transform_1(%arg0: i32) -> (i32, i32) {
    %c0_i32 = arith.constant 0 : i32
    %c0_i32_0 = arith.constant 0 : i32
    %c0_i32_1 = arith.constant 0 : i32
    return %c0_i32, %c0_i32_0 : i32, i32
  }
  func.func @transform_2(%arg0: i32) -> (i32, i32) {
    %c0_i32 = arith.constant 0 : i32
    %c0_i32_0 = arith.constant 0 : i32
    %c0_i32_1 = arith.constant 0 : i32
    return %c0_i32, %c0_i32_0 : i32, i32
  }
  func.func @transform_3(%arg0: i32) -> (i32, i32) {
    %c0_i32 = arith.constant 0 : i32
    %c0_i32_0 = arith.constant 0 : i32
    %c0_i32_1 = arith.constant 0 : i32
    return %c0_i32, %c0_i32_0 : i32, i32
  }
  func.func @transform_4(%arg0: i32) -> (i32, i32) {
    %c0_i32 = arith.constant 0 : i32
    %c0_i32_0 = arith.constant 0 : i32
    %c0_i32_1 = arith.constant 0 : i32
    return %c0_i32, %c0_i32_0 : i32, i32
  }
  func.func @transform_5(%arg0: i32) -> (i32, i32) {
    %c0_i32 = arith.constant 0 : i32
    %c0_i32_0 = arith.constant 0 : i32
    %c0_i32_1 = arith.constant 0 : i32
    return %c0_i32, %c0_i32_0 : i32, i32
  }
  func.func @transform_6(%arg0: i32) -> (i32, i32) {
    %c0_i32 = arith.constant 0 : i32
    %c0_i32_0 = arith.constant 0 : i32
    %c0_i32_1 = arith.constant 0 : i32
    return %c0_i32, %c0_i32_0 : i32, i32
  }
  func.func @transform_7(%arg0: i32) -> (i32, i32) {
    %c0_i32 = arith.constant 0 : i32
    %c0_i32_0 = arith.constant 0 : i32
    %c0_i32_1 = arith.constant 0 : i32
    return %c0_i32, %c0_i32_0 : i32, i32
  }
  func.func @transform_8(%arg0: i32) -> (i32, i32) {
    %c0_i32 = arith.constant 0 : i32
    %c0_i32_0 = arith.constant 0 : i32
    %c0_i32_1 = arith.constant 0 : i32
    return %c0_i32, %c0_i32_0 : i32, i32
  }
  func.func @transform_9(%arg0: i32) -> (i32, i32) {
    %c0_i32 = arith.constant 0 : i32
    %c0_i32_0 = arith.constant 0 : i32
    %c0_i32_1 = arith.constant 0 : i32
    return %c0_i32, %c0_i32_0 : i32, i32
  }
  func.func @transform_10(%arg0: i32) -> (i32, i32) {
    %c0_i32 = arith.constant 0 : i32
    %c0_i32_0 = arith.constant 0 : i32
    %c0_i32_1 = arith.constant 0 : i32
    return %c0_i32, %c0_i32_0 : i32, i32
  }
  func.func @transform_11(%arg0: i32) -> (i32, i32) {
    %c0_i32 = arith.constant 0 : i32
    %c0_i32_0 = arith.constant 0 : i32
    %c0_i32_1 = arith.constant 0 : i32
    return %c0_i32, %c0_i32_0 : i32, i32
  }
  func.func @transform_12(%arg0: i32) -> (i32, i32) {
    %c0_i32 = arith.constant 0 : i32
    %c0_i32_0 = arith.constant 0 : i32
    %c0_i32_1 = arith.constant 0 : i32
    return %c0_i32, %c0_i32_0 : i32, i32
  }
  func.func @transform_13(%arg0: i32) -> (i32, i32) {
    %c0_i32 = arith.constant 0 : i32
    %c0_i32_0 = arith.constant 0 : i32
    %c0_i32_1 = arith.constant 0 : i32
    return %c0_i32, %c0_i32_0 : i32, i32
  }
  func.func @transform_14(%arg0: i32) -> (i32, i32, i32) {
    %c0_i32 = arith.constant 0 : i32
    %c0_i32_0 = arith.constant 0 : i32
    %c0_i32_1 = arith.constant 0 : i32
    %c0_i32_2 = arith.constant 0 : i32
    return %c0_i32, %c0_i32_0, %c0_i32_1 : i32, i32, i32
  }
  func.func @transform_15(%arg0: i32) -> (i32, i32, i32) {
    %c0_i32 = arith.constant 0 : i32
    %c0_i32_0 = arith.constant 0 : i32
    %c0_i32_1 = arith.constant 0 : i32
    %c0_i32_2 = arith.constant 0 : i32
    return %c0_i32, %c0_i32_0, %c0_i32_1 : i32, i32, i32
  }
  func.func @transform_16(%arg0: i32) -> (i32, i32, i32) {
    %c0_i32 = arith.constant 0 : i32
    %c0_i32_0 = arith.constant 0 : i32
    %c0_i32_1 = arith.constant 0 : i32
    %c0_i32_2 = arith.constant 0 : i32
    return %c0_i32, %c0_i32_0, %c0_i32_1 : i32, i32, i32
  }
  func.func @transform_17(%arg0: i32) -> (i32, i32) {
    %c0_i32 = arith.constant 0 : i32
    %c0_i32_0 = arith.constant 0 : i32
    %c0_i32_1 = arith.constant 0 : i32
    return %c0_i32, %c0_i32_0 : i32, i32
  }
  func.func @transform_18(%arg0: i32) -> (i32, i32) {
    %c0_i32 = arith.constant 0 : i32
    %c0_i32_0 = arith.constant 0 : i32
    %c0_i32_1 = arith.constant 0 : i32
    return %c0_i32, %c0_i32_0 : i32, i32
  }
  func.func @transform_19(%arg0: i32) -> (i32, i32) {
    %c0_i32 = arith.constant 0 : i32
    %c0_i32_0 = arith.constant 0 : i32
    %c0_i32_1 = arith.constant 0 : i32
    return %c0_i32, %c0_i32_0 : i32, i32
  }
  func.func @transform_20(%arg0: i32) -> (i32, i32) {
    %c0_i32 = arith.constant 0 : i32
    %c0_i32_0 = arith.constant 0 : i32
    %c0_i32_1 = arith.constant 0 : i32
    return %c0_i32, %c0_i32_0 : i32, i32
  }
  func.func @transform_21(%arg0: i32) -> (i32, i32) {
    %c0_i32 = arith.constant 0 : i32
    %c0_i32_0 = arith.constant 0 : i32
    %c0_i32_1 = arith.constant 0 : i32
    return %c0_i32, %c0_i32_0 : i32, i32
  }
  func.func @transform_22(%arg0: i32) -> (i32, i32) {
    %c0_i32 = arith.constant 0 : i32
    %c0_i32_0 = arith.constant 0 : i32
    return %c0_i32, %arg0 : i32, i32
  }
  func.func @transform_23(%arg0: i32) -> (i32, i32, i32) {
    %c0_i32 = arith.constant 0 : i32
    %c0_i32_0 = arith.constant 0 : i32
    %c0_i32_1 = arith.constant 0 : i32
    return %c0_i32, %c0_i32_0, %arg0 : i32, i32, i32
  }
}

</mosaic_0001>

<llo_original>
// kernel: model_forward.1
$region0: #{model_forward.1}
  #allocation0 [shape = 'u32[]', space=smem, size = 0x4, offset = 0x4, fixed_abs, tag = 'smem constant byte address 0x4 - core index']
  #allocation1 [shape = 'u32[72,128]{1,0:T(1,128)}', space=vmem, size = 0x9000, scoped, tag = 'internal scratch']
  #allocation2 [shape = 'f32[1,1]{1,0:T(1,128)S(1)}', space=vmem, size = 0x200, scoped, tag = 'scoped memory for model_forward.1']
  %s0 = inlined_call_operand.vmem [shape: f32[3,10,512], index: 0, kind: input, shape index: {}]
  %s1 = inlined_call_operand.vmem [shape: f32[45,10], index: 1, kind: input, shape index: {}]
  %s2 = inlined_call_operand.vmem [shape: f32[10,45], index: 2, kind: input, shape index: {}]
  %s3 = inlined_call_operand.vmem [shape: f32[10,8], index: 3, kind: input, shape index: {}]
  %s4 = inlined_call_operand.vmem [shape: f32[10,8], index: 4, kind: input, shape index: {}]
  %s5 = inlined_call_operand.vmem [shape: f32[10,7], index: 5, kind: input, shape index: {}]
  %s6 = inlined_call_operand.vmem [shape: f32[1,45], index: 6, kind: input, shape index: {}]
  %s7 = inlined_call_operand.vmem [shape: f32[32,45], index: 7, kind: input, shape index: {}]
  %s8 = inlined_call_operand.vmem [shape: f32[32,7], index: 8, kind: input, shape index: {}]
  %s9 = inlined_call_operand.vmem [shape: f32[32,7], index: 9, kind: input, shape index: {}]
  %s10 = inlined_call_operand.vmem [shape: f32[45,32], index: 10, kind: input, shape index: {}]
  %s11 = inlined_call_operand.vmem [shape: f32[7,32], index: 11, kind: input, shape index: {}]
  %s12 = inlined_call_operand.vmem [shape: f32[7,32], index: 12, kind: input, shape index: {}]
  %s13 = inlined_call_operand.vmem [shape: f32[32,1], index: 13, kind: input, shape index: {}]
  %s14 = inlined_call_operand.vmem [shape: f32[1,32,32], index: 14, kind: input, shape index: {}]
  %s15 = inlined_call_operand.vmem [shape: f32[1,32,32], index: 15, kind: input, shape index: {}]
  %s16 = inlined_call_operand.vmem [shape: f32[1,32,1], index: 16, kind: input, shape index: {}]
  %s17 = inlined_call_operand.vmem [shape: f32[1,32], index: 17, kind: input, shape index: {}]
  %s18 = inlined_call_operand.vmem [shape: f32[32,1], index: 18, kind: input, shape index: {}]
  %s19 = inlined_call_operand.<no memory space> [shape: f32[1,1], index: 19, kind: input, shape index: {}]
  %s20 = inlined_call_operand.vmem [shape: f32[45,3], index: 20, kind: input, shape index: {}]
  %s21 = inlined_call_operand.vmem [shape: f32[8,2], index: 21, kind: input, shape index: {}]
  %s22 = inlined_call_operand.hbm [shape: f32[1,512], index: 22, kind: output, shape index: {0}]
  %s23 = inlined_call_operand.vmem [shape: f32[3,10,512], index: 23, kind: output, shape index: {1}]
  %24 = xla_tuple %s22, %s23
  %s25 = sld [smem:[#allocation0]]
  $region171: #{model_forward.1} parent=0
    _
  %s27 = ssub.s32 1, %s25
  %s28 = scalar_select 0, %s27, %s25
  %v29 = vstv %s19
  %30 = vst [vmem:[#allocation2] sm:$0x1] %v29
  $region1: #{model_forward.1} parent=0
    #allocation3 [shape = 'u8[98304]{0}', space=vmem, size = 0x18000, scoped, tag = 'input window, operand 0']
    #allocation4 [shape = 'u8[2048]{0}', space=vmem, size = 0x800, scoped, tag = 'output window, operand 0']
    #allocation5 [shape = 's32[2]{0}', space=sflag, size = 0x8, scoped, tag = 'scoped memory for model_forward.1']
    #allocation6 [shape = 'u8[98304]{0}', space=vmem, size = 0x18000, scoped, tag = 'output window, operand 1']
    %31 = vsyncpa [#allocation5], 0
    %s32 = scalar_lea.sflag [#allocation5], 1
    %33 = vsyncpa %s32, 0
    loop: start=0, step=1, limit=4
    $region2: #{model_forward.1} parent=1 // loop_pre_header
      _
    $region3: #{model_forward.1} parent=1 // loop_header
      %s35 = sphi 0, %s39
      %p36 = scmp.ge.s32.totalorder %s35, 4
      %s45 = sphi 0, %s47
      %s48 = sphi 0, %s45
      %s49 = sphi 0, %s48
      %s65 = sphi 0, %s49
      %s69 = sphi 0, %s69
      %s71 = sphi 0, %s69
      %s72 = sphi 0, %s71
      %s86 = sphi 0, %s72
      %s90 = sphi 0, %s90
      %s92 = sphi 0, %s90
      %s93 = sphi 0, %s92
      %s107 = sphi 0, %s93
      %s111 = sphi 0, %s111
      %s113 = sphi 0, %s111
      %s114 = sphi 0, %s113
      %s128 = sphi 0, %s114
      %s132 = sphi 0, %s132
      %s134 = sphi 0, %s132
      %s135 = sphi 0, %s134
      %s149 = sphi 0, %s135
      %s153 = sphi 0, %s153
      %s155 = sphi 0, %s153
      %s156 = sphi 0, %s155
      %s170 = sphi 0, %s156
      %s174 = sphi 0, %s174
      %s176 = sphi 0, %s174
      %s177 = sphi 0, %s176
      %s191 = sphi 0, %s177
      %s195 = sphi 0, %s195
      %s197 = sphi 0, %s195
      %s198 = sphi 0, %s197
      %s212 = sphi 0, %s198
      %s216 = sphi 0, %s216
      %s218 = sphi 0, %s216
      %s219 = sphi 0, %s218
      %s233 = sphi 0, %s219
      %s237 = sphi 0, %s237
      %s239 = sphi 0, %s237
      %s240 = sphi 0, %s239
      %s254 = sphi 0, %s240
      %s258 = sphi 0, %s258
      %s260 = sphi 0, %s258
      %s261 = sphi 0, %s260
      %s275 = sphi 0, %s261
      %s279 = sphi 0, %s279
      %s281 = sphi 0, %s279
      %s282 = sphi 0, %s281
      %s296 = sphi 0, %s282
      %s300 = sphi 0, %s300
      %s302 = sphi 0, %s300
      %s303 = sphi 0, %s302
      %s317 = sphi 0, %s303
      %s321 = sphi 0, %s321
      %s323 = sphi 0, %s321
      %s324 = sphi 0, %s323
      %s338 = sphi 0, %s324
      %s342 = sphi 0, %s342
      %s344 = sphi 0, %s342
      %s345 = sphi 0, %s344
      %s359 = sphi 0, %s345
      %s363 = sphi 0, %s363
      %s365 = sphi 0, %s363
      %s366 = sphi 0, %s365
      %s380 = sphi 0, %s366
      %s384 = sphi 0, %s384
      %s386 = sphi 0, %s384
      %s387 = sphi 0, %s386
      %s401 = sphi 0, %s387
      %s405 = sphi 0, %s405
      %s407 = sphi 0, %s405
      %s408 = sphi 0, %s407
      %s422 = sphi 0, %s408
      %s426 = sphi 0, %s426
      %s428 = sphi 0, %s426
      %s429 = sphi 0, %s428
      %s443 = sphi 0, %s429
      %s447 = sphi 0, %s447
      %s449 = sphi 0, %s447
      %s450 = sphi 0, %s449
      %s464 = sphi 0, %s450
      %s468 = sphi 0, %s468
      %s470 = sphi 0, %s468
      %s471 = sphi 0, %s470
      %s485 = sphi 0, %s471
      %s489 = sphi 0, %s489
      %s491 = sphi 0, %s489
      %s492 = sphi 0, %s491
      %s506 = sphi 0, %s492
      %s512 = sphi 0, %s514
      %s515 = sphi 0, %s512
      %s516 = sphi 0, %s515
      %s532 = sphi 0, %s516
      %s538 = sphi 0, %s540
      %s541 = sphi 0, %s538
      %s542 = sphi 0, %s541
      %s558 = sphi 0, %s542
    $region4: #{model_forward.1} parent=1 // loop_header_branch
      %38 = sbr.rel (%p36) target = $region8
    $region5: #{model_forward.1} parent=1 // loop_body
      %s40 = ssub.s32 %s35, 1
      %s41 = ssub.s32 %s35, 2
      %s42 = sadd.s32 %s35, 1
      %s43 = ssub.s32 %s35, %s42
      %p44 = scmp.eq.s32.totalorder %s43, 0
      %s46 = sadd.s32 %s45, 1
      %s47 = scalar_select %p44, %s45, %s46
      %p50 = pneg %p44
      %p51 = scmp.eq.s32.totalorder %s35, 1
      %p52 = por %p50, %p51
      %p53 = scmp.ne.s32.totalorder %s45, %s48
      %p54 = scmp.eq.s32.totalorder %s35, 0
      %p55 = por %p53, %p54
      %p56 = scmp.ne.s32.totalorder %s45, %s48
      %p57 = scmp.eq.s32.totalorder %s40, 1
      %p58 = por %p56, %p57
      %p59 = scmp.ne.s32.totalorder %s48, %s49
      %p60 = scmp.eq.s32.totalorder %s40, 0
      %p61 = por %p59, %p60
      %p62 = scmp.ne.s32.totalorder %s48, %s49
      %p63 = scmp.eq.s32.totalorder %s41, 1
      %p64 = por %p62, %p63
      %p66 = scmp.ne.s32.totalorder %s49, %s65
      %p67 = scmp.eq.s32.totalorder %s41, 0
      %p68 = por %p66, %p67
      %s70 = sadd.s32 %s69, 1
      %p73 = scmp.eq.s32.totalorder %s35, 1
      %p74 = scmp.ne.s32.totalorder %s69, %s71
      %p75 = scmp.eq.s32.totalorder %s35, 0
      %p76 = por %p74, %p75
      %p77 = scmp.ne.s32.totalorder %s69, %s71
      %p78 = scmp.eq.s32.totalorder %s40, 1
      %p79 = por %p77, %p78
      %p80 = scmp.ne.s32.totalorder %s71, %s72
      %p81 = scmp.eq.s32.totalorder %s40, 0
      %p82 = por %p80, %p81
      %p83 = scmp.ne.s32.totalorder %s71, %s72
      %p84 = scmp.eq.s32.totalorder %s41, 1
      %p85 = por %p83, %p84
      %p87 = scmp.ne.s32.totalorder %s72, %s86
      %p88 = scmp.eq.s32.totalorder %s41, 0
      %p89 = por %p87, %p88
      %s91 = sadd.s32 %s90, 1
      %p94 = scmp.eq.s32.totalorder %s35, 1
      %p95 = scmp.ne.s32.totalorder %s90, %s92
      %p96 = scmp.eq.s32.totalorder %s35, 0
      %p97 = por %p95, %p96
      %p98 = scmp.ne.s32.totalorder %s90, %s92
      %p99 = scmp.eq.s32.totalorder %s40, 1
      %p100 = por %p98, %p99
      %p101 = scmp.ne.s32.totalorder %s92, %s93
      %p102 = scmp.eq.s32.totalorder %s40, 0
      %p103 = por %p101, %p102
      %p104 = scmp.ne.s32.totalorder %s92, %s93
      %p105 = scmp.eq.s32.totalorder %s41, 1
      %p106 = por %p104, %p105
      %p108 = scmp.ne.s32.totalorder %s93, %s107
      %p109 = scmp.eq.s32.totalorder %s41, 0
      %p110 = por %p108, %p109
      %s112 = sadd.s32 %s111, 1
      %p115 = scmp.eq.s32.totalorder %s35, 1
      %p116 = scmp.ne.s32.totalorder %s111, %s113
      %p117 = scmp.eq.s32.totalorder %s35, 0
      %p118 = por %p116, %p117
      %p119 = scmp.ne.s32.totalorder %s111, %s113
      %p120 = scmp.eq.s32.totalorder %s40, 1
      %p121 = por %p119, %p120
      %p122 = scmp.ne.s32.totalorder %s113, %s114
      %p123 = scmp.eq.s32.totalorder %s40, 0
      %p124 = por %p122, %p123
      %p125 = scmp.ne.s32.totalorder %s113, %s114
      %p126 = scmp.eq.s32.totalorder %s41, 1
      %p127 = por %p125, %p126
      %p129 = scmp.ne.s32.totalorder %s114, %s128
      %p130 = scmp.eq.s32.totalorder %s41, 0
      %p131 = por %p129, %p130
      %s133 = sadd.s32 %s132, 1
      %p136 = scmp.eq.s32.totalorder %s35, 1
      %p137 = scmp.ne.s32.totalorder %s132, %s134
      %p138 = scmp.eq.s32.totalorder %s35, 0
      %p139 = por %p137, %p138
      %p140 = scmp.ne.s32.totalorder %s132, %s134
      %p141 = scmp.eq.s32.totalorder %s40, 1
      %p142 = por %p140, %p141
      %p143 = scmp.ne.s32.totalorder %s134, %s135
      %p144 = scmp.eq.s32.totalorder %s40, 0
      %p145 = por %p143, %p144
      %p146 = scmp.ne.s32.totalorder %s134, %s135
      %p147 = scmp.eq.s32.totalorder %s41, 1
      %p148 = por %p146, %p147
      %p150 = scmp.ne.s32.totalorder %s135, %s149
      %p151 = scmp.eq.s32.totalorder %s41, 0
      %p152 = por %p150, %p151
      %s154 = sadd.s32 %s153, 1
      %p157 = scmp.eq.s32.totalorder %s35, 1
      %p158 = scmp.ne.s32.totalorder %s153, %s155
      %p159 = scmp.eq.s32.totalorder %s35, 0
      %p160 = por %p158, %p159
      %p161 = scmp.ne.s32.totalorder %s153, %s155
      %p162 = scmp.eq.s32.totalorder %s40, 1
      %p163 = por %p161, %p162
      %p164 = scmp.ne.s32.totalorder %s155, %s156
      %p165 = scmp.eq.s32.totalorder %s40, 0
      %p166 = por %p164, %p165
      %p167 = scmp.ne.s32.totalorder %s155, %s156
      %p168 = scmp.eq.s32.totalorder %s41, 1
      %p169 = por %p167, %p168
      %p171 = scmp.ne.s32.totalorder %s156, %s170
      %p172 = scmp.eq.s32.totalorder %s41, 0
      %p173 = por %p171, %p172
      %s175 = sadd.s32 %s174, 1
      %p178 = scmp.eq.s32.totalorder %s35, 1
      %p179 = scmp.ne.s32.totalorder %s174, %s176
      %p180 = scmp.eq.s32.totalorder %s35, 0
      %p181 = por %p179, %p180
      %p182 = scmp.ne.s32.totalorder %s174, %s176
      %p183 = scmp.eq.s32.totalorder %s40, 1
      %p184 = por %p182, %p183
      %p185 = scmp.ne.s32.totalorder %s176, %s177
      %p186 = scmp.eq.s32.totalorder %s40, 0
      %p187 = por %p185, %p186
      %p188 = scmp.ne.s32.totalorder %s176, %s177
      %p189 = scmp.eq.s32.totalorder %s41, 1
      %p190 = por %p188, %p189
      %p192 = scmp.ne.s32.totalorder %s177, %s191
      %p193 = scmp.eq.s32.totalorder %s41, 0
      %p194 = por %p192, %p193
      %s196 = sadd.s32 %s195, 1
      %p199 = scmp.eq.s32.totalorder %s35, 1
      %p200 = scmp.ne.s32.totalorder %s195, %s197
      %p201 = scmp.eq.s32.totalorder %s35, 0
      %p202 = por %p200, %p201
      %p203 = scmp.ne.s32.totalorder %s195, %s197
      %p204 = scmp.eq.s32.totalorder %s40, 1
      %p205 = por %p203, %p204
      %p206 = scmp.ne.s32.totalorder %s197, %s198
      %p207 = scmp.eq.s32.totalorder %s40, 0
      %p208 = por %p206, %p207
      %p209 = scmp.ne.s32.totalorder %s197, %s198
      %p210 = scmp.eq.s32.totalorder %s41, 1
      %p211 = por %p209, %p210
      %p213 = scmp.ne.s32.totalorder %s198, %s212
      %p214 = scmp.eq.s32.totalorder %s41, 0
      %p215 = por %p213, %p214
      %s217 = sadd.s32 %s216, 1
      %p220 = scmp.eq.s32.totalorder %s35, 1
      %p221 = scmp.ne.s32.totalorder %s216, %s218
      %p222 = scmp.eq.s32.totalorder %s35, 0
      %p223 = por %p221, %p222
      %p224 = scmp.ne.s32.totalorder %s216, %s218
      %p225 = scmp.eq.s32.totalorder %s40, 1
      %p226 = por %p224, %p225
      %p227 = scmp.ne.s32.totalorder %s218, %s219
      %p228 = scmp.eq.s32.totalorder %s40, 0
      %p229 = por %p227, %p228
      %p230 = scmp.ne.s32.totalorder %s218, %s219
      %p231 = scmp.eq.s32.totalorder %s41, 1
      %p232 = por %p230, %p231
      %p234 = scmp.ne.s32.totalorder %s219, %s233
      %p235 = scmp.eq.s32.totalorder %s41, 0
      %p236 = por %p234, %p235
      %s238 = sadd.s32 %s237, 1
      %p241 = scmp.eq.s32.totalorder %s35, 1
      %p242 = scmp.ne.s32.totalorder %s237, %s239
      %p243 = scmp.eq.s32.totalorder %s35, 0
      %p244 = por %p242, %p243
      %p245 = scmp.ne.s32.totalorder %s237, %s239
      %p246 = scmp.eq.s32.totalorder %s40, 1
      %p247 = por %p245, %p246
      %p248 = scmp.ne.s32.totalorder %s239, %s240
      %p249 = scmp.eq.s32.totalorder %s40, 0
      %p250 = por %p248, %p249
      %p251 = scmp.ne.s32.totalorder %s239, %s240
      %p252 = scmp.eq.s32.totalorder %s41, 1
      %p253 = por %p251, %p252
      %p255 = scmp.ne.s32.totalorder %s240, %s254
      %p256 = scmp.eq.s32.totalorder %s41, 0
      %p257 = por %p255, %p256
      %s259 = sadd.s32 %s258, 1
      %p262 = scmp.eq.s32.totalorder %s35, 1
      %p263 = scmp.ne.s32.totalorder %s258, %s260
      %p264 = scmp.eq.s32.totalorder %s35, 0
      %p265 = por %p263, %p264
      %p266 = scmp.ne.s32.totalorder %s258, %s260
      %p267 = scmp.eq.s32.totalorder %s40, 1
      %p268 = por %p266, %p267
      %p269 = scmp.ne.s32.totalorder %s260, %s261
      %p270 = scmp.eq.s32.totalorder %s40, 0
      %p271 = por %p269, %p270
      %p272 = scmp.ne.s32.totalorder %s260, %s261
      %p273 = scmp.eq.s32.totalorder %s41, 1
      %p274 = por %p272, %p273
      %p276 = scmp.ne.s32.totalorder %s261, %s275
      %p277 = scmp.eq.s32.totalorder %s41, 0
      %p278 = por %p276, %p277
      %s280 = sadd.s32 %s279, 1
      %p283 = scmp.eq.s32.totalorder %s35, 1
      %p284 = scmp.ne.s32.totalorder %s279, %s281
      %p285 = scmp.eq.s32.totalorder %s35, 0
      %p286 = por %p284, %p285
      %p287 = scmp.ne.s32.totalorder %s279, %s281
      %p288 = scmp.eq.s32.totalorder %s40, 1
      %p289 = por %p287, %p288
      %p290 = scmp.ne.s32.totalorder %s281, %s282
      %p291 = scmp.eq.s32.totalorder %s40, 0
      %p292 = por %p290, %p291
      %p293 = scmp.ne.s32.totalorder %s281, %s282
      %p294 = scmp.eq.s32.totalorder %s41, 1
      %p295 = por %p293, %p294
      %p297 = scmp.ne.s32.totalorder %s282, %s296
      %p298 = scmp.eq.s32.totalorder %s41, 0
      %p299 = por %p297, %p298
      %s301 = sadd.s32 %s300, 1
      %p304 = scmp.eq.s32.totalorder %s35, 1
      %p305 = scmp.ne.s32.totalorder %s300, %s302
      %p306 = scmp.eq.s32.totalorder %s35, 0
      %p307 = por %p305, %p306
      %p308 = scmp.ne.s32.totalorder %s300, %s302
      %p309 = scmp.eq.s32.totalorder %s40, 1
      %p310 = por %p308, %p309
      %p311 = scmp.ne.s32.totalorder %s302, %s303
      %p312 = scmp.eq.s32.totalorder %s40, 0
      %p313 = por %p311, %p312
      %p314 = scmp.ne.s32.totalorder %s302, %s303
      %p315 = scmp.eq.s32.totalorder %s41, 1
      %p316 = por %p314, %p315
      %p318 = scmp.ne.s32.totalorder %s303, %s317
      %p319 = scmp.eq.s32.totalorder %s41, 0
      %p320 = por %p318, %p319
      %s322 = sadd.s32 %s321, 1
      %p325 = scmp.eq.s32.totalorder %s35, 1
      %p326 = scmp.ne.s32.totalorder %s321, %s323
      %p327 = scmp.eq.s32.totalorder %s35, 0
      %p328 = por %p326, %p327
      %p329 = scmp.ne.s32.totalorder %s321, %s323
      %p330 = scmp.eq.s32.totalorder %s40, 1
      %p331 = por %p329, %p330
      %p332 = scmp.ne.s32.totalorder %s323, %s324
      %p333 = scmp.eq.s32.totalorder %s40, 0
      %p334 = por %p332, %p333
      %p335 = scmp.ne.s32.totalorder %s323, %s324
      %p336 = scmp.eq.s32.totalorder %s41, 1
      %p337 = por %p335, %p336
      %p339 = scmp.ne.s32.totalorder %s324, %s338
      %p340 = scmp.eq.s32.totalorder %s41, 0
      %p341 = por %p339, %p340
      %s343 = sadd.s32 %s342, 1
      %p346 = scmp.eq.s32.totalorder %s35, 1
      %p347 = scmp.ne.s32.totalorder %s342, %s344
      %p348 = scmp.eq.s32.totalorder %s35, 0
      %p349 = por %p347, %p348
      %p350 = scmp.ne.s32.totalorder %s342, %s344
      %p351 = scmp.eq.s32.totalorder %s40, 1
      %p352 = por %p350, %p351
      %p353 = scmp.ne.s32.totalorder %s344, %s345
      %p354 = scmp.eq.s32.totalorder %s40, 0
      %p355 = por %p353, %p354
      %p356 = scmp.ne.s32.totalorder %s344, %s345
      %p357 = scmp.eq.s32.totalorder %s41, 1
      %p358 = por %p356, %p357
      %p360 = scmp.ne.s32.totalorder %s345, %s359
      %p361 = scmp.eq.s32.totalorder %s41, 0
      %p362 = por %p360, %p361
      %s364 = sadd.s32 %s363, 1
      %p367 = scmp.eq.s32.totalorder %s35, 1
      %p368 = scmp.ne.s32.totalorder %s363, %s365
      %p369 = scmp.eq.s32.totalorder %s35, 0
      %p370 = por %p368, %p369
      %p371 = scmp.ne.s32.totalorder %s363, %s365
      %p372 = scmp.eq.s32.totalorder %s40, 1
      %p373 = por %p371, %p372
      %p374 = scmp.ne.s32.totalorder %s365, %s366
      %p375 = scmp.eq.s32.totalorder %s40, 0
      %p376 = por %p374, %p375
      %p377 = scmp.ne.s32.totalorder %s365, %s366
      %p378 = scmp.eq.s32.totalorder %s41, 1
      %p379 = por %p377, %p378
      %p381 = scmp.ne.s32.totalorder %s366, %s380
      %p382 = scmp.eq.s32.totalorder %s41, 0
      %p383 = por %p381, %p382
      %s385 = sadd.s32 %s384, 1
      %p388 = scmp.eq.s32.totalorder %s35, 1
      %p389 = scmp.ne.s32.totalorder %s384, %s386
      %p390 = scmp.eq.s32.totalorder %s35, 0
      %p391 = por %p389, %p390
      %p392 = scmp.ne.s32.totalorder %s384, %s386
      %p393 = scmp.eq.s32.totalorder %s40, 1
      %p394 = por %p392, %p393
      %p395 = scmp.ne.s32.totalorder %s386, %s387
      %p396 = scmp.eq.s32.totalorder %s40, 0
      %p397 = por %p395, %p396
      %p398 = scmp.ne.s32.totalorder %s386, %s387
      %p399 = scmp.eq.s32.totalorder %s41, 1
      %p400 = por %p398, %p399
      %p402 = scmp.ne.s32.totalorder %s387, %s401
      %p403 = scmp.eq.s32.totalorder %s41, 0
      %p404 = por %p402, %p403
      %s406 = sadd.s32 %s405, 1
      %p409 = scmp.eq.s32.totalorder %s35, 1
      %p410 = scmp.ne.s32.totalorder %s405, %s407
      %p411 = scmp.eq.s32.totalorder %s35, 0
      %p412 = por %p410, %p411
      %p413 = scmp.ne.s32.totalorder %s405, %s407
      %p414 = scmp.eq.s32.totalorder %s40, 1
      %p415 = por %p413, %p414
      %p416 = scmp.ne.s32.totalorder %s407, %s408
      %p417 = scmp.eq.s32.totalorder %s40, 0
      %p418 = por %p416, %p417
      %p419 = scmp.ne.s32.totalorder %s407, %s408
      %p420 = scmp.eq.s32.totalorder %s41, 1
      %p421 = por %p419, %p420
      %p423 = scmp.ne.s32.totalorder %s408, %s422
      %p424 = scmp.eq.s32.totalorder %s41, 0
      %p425 = por %p423, %p424
      %s427 = sadd.s32 %s426, 1
      %p430 = scmp.eq.s32.totalorder %s35, 1
      %p431 = scmp.ne.s32.totalorder %s426, %s428
      %p432 = scmp.eq.s32.totalorder %s35, 0
      %p433 = por %p431, %p432
      %p434 = scmp.ne.s32.totalorder %s426, %s428
      %p435 = scmp.eq.s32.totalorder %s40, 1
      %p436 = por %p434, %p435
      %p437 = scmp.ne.s32.totalorder %s428, %s429
      %p438 = scmp.eq.s32.totalorder %s40, 0
      %p439 = por %p437, %p438
      %p440 = scmp.ne.s32.totalorder %s428, %s429
      %p441 = scmp.eq.s32.totalorder %s41, 1
      %p442 = por %p440, %p441
      %p444 = scmp.ne.s32.totalorder %s429, %s443
      %p445 = scmp.eq.s32.totalorder %s41, 0
      %p446 = por %p444, %p445
      %s448 = sadd.s32 %s447, 1
      %p451 = scmp.eq.s32.totalorder %s35, 1
      %p452 = scmp.ne.s32.totalorder %s447, %s449
      %p453 = scmp.eq.s32.totalorder %s35, 0
      %p454 = por %p452, %p453
      %p455 = scmp.ne.s32.totalorder %s447, %s449
      %p456 = scmp.eq.s32.totalorder %s40, 1
      %p457 = por %p455, %p456
      %p458 = scmp.ne.s32.totalorder %s449, %s450
      %p459 = scmp.eq.s32.totalorder %s40, 0
      %p460 = por %p458, %p459
      %p461 = scmp.ne.s32.totalorder %s449, %s450
      %p462 = scmp.eq.s32.totalorder %s41, 1
      %p463 = por %p461, %p462
      %p465 = scmp.ne.s32.totalorder %s450, %s464
      %p466 = scmp.eq.s32.totalorder %s41, 0
      %p467 = por %p465, %p466
      %s469 = sadd.s32 %s468, 1
      %p472 = scmp.eq.s32.totalorder %s35, 1
      %p473 = scmp.ne.s32.totalorder %s468, %s470
      %p474 = scmp.eq.s32.totalorder %s35, 0
      %p475 = por %p473, %p474
      %p476 = scmp.ne.s32.totalorder %s468, %s470
      %p477 = scmp.eq.s32.totalorder %s40, 1
      %p478 = por %p476, %p477
      %p479 = scmp.ne.s32.totalorder %s470, %s471
      %p480 = scmp.eq.s32.totalorder %s40, 0
      %p481 = por %p479, %p480
      %p482 = scmp.ne.s32.totalorder %s470, %s471
      %p483 = scmp.eq.s32.totalorder %s41, 1
      %p484 = por %p482, %p483
      %p486 = scmp.ne.s32.totalorder %s471, %s485
      %p487 = scmp.eq.s32.totalorder %s41, 0
      %p488 = por %p486, %p487
      %s490 = sadd.s32 %s489, 1
      %p493 = scmp.eq.s32.totalorder %s35, 1
      %p494 = scmp.ne.s32.totalorder %s489, %s491
      %p495 = scmp.eq.s32.totalorder %s35, 0
      %p496 = por %p494, %p495
      %p497 = scmp.ne.s32.totalorder %s489, %s491
      %p498 = scmp.eq.s32.totalorder %s40, 1
      %p499 = por %p497, %p498
      %p500 = scmp.ne.s32.totalorder %s491, %s492
      %p501 = scmp.eq.s32.totalorder %s40, 0
      %p502 = por %p500, %p501
      %p503 = scmp.ne.s32.totalorder %s491, %s492
      %p504 = scmp.eq.s32.totalorder %s41, 1
      %p505 = por %p503, %p504
      %p507 = scmp.ne.s32.totalorder %s492, %s506
      %p508 = scmp.eq.s32.totalorder %s41, 0
      %p509 = por %p507, %p508
      %s510 = ssub.s32 %s35, %s42
      %p511 = scmp.eq.s32.totalorder %s510, 0
      %s513 = sadd.s32 %s512, 1
      %s514 = scalar_select %p511, %s512, %s513
      %p517 = pneg %p511
      %p518 = scmp.eq.s32.totalorder %s35, 1
      %p519 = por %p517, %p518
      %p520 = scmp.ne.s32.totalorder %s512, %s515
      %p521 = scmp.eq.s32.totalorder %s35, 0
      %p522 = por %p520, %p521
      %p523 = scmp.ne.s32.totalorder %s512, %s515
      %p524 = scmp.eq.s32.totalorder %s40, 1
      %p525 = por %p523, %p524
      %p526 = scmp.ne.s32.totalorder %s515, %s516
      %p527 = scmp.eq.s32.totalorder %s40, 0
      %p528 = por %p526, %p527
      %p529 = scmp.ne.s32.totalorder %s515, %s516
      %p530 = scmp.eq.s32.totalorder %s41, 1
      %p531 = por %p529, %p530
      %p533 = scmp.ne.s32.totalorder %s516, %s532
      %p534 = scmp.eq.s32.totalorder %s41, 0
      %p535 = por %p533, %p534
      %s536 = ssub.s32 %s35, %s42
      %p537 = scmp.eq.s32.totalorder %s536, 0
      %s539 = sadd.s32 %s538, 1
      %s540 = scalar_select %p537, %s538, %s539
      %p543 = pneg %p537
      %p544 = scmp.eq.s32.totalorder %s35, 1
      %p545 = por %p543, %p544
      %p546 = scmp.ne.s32.totalorder %s538, %s541
      %p547 = scmp.eq.s32.totalorder %s35, 0
      %p548 = por %p546, %p547
      %p549 = scmp.ne.s32.totalorder %s538, %s541
      %p550 = scmp.eq.s32.totalorder %s40, 1
      %p551 = por %p549, %p550
      %p552 = scmp.ne.s32.totalorder %s541, %s542
      %p553 = scmp.eq.s32.totalorder %s40, 0
      %p554 = por %p552, %p553
      %p555 = scmp.ne.s32.totalorder %s541, %s542
      %p556 = scmp.eq.s32.totalorder %s41, 1
      %p557 = por %p555, %p556
      %p559 = scmp.ne.s32.totalorder %s542, %s558
      %p560 = scmp.eq.s32.totalorder %s41, 0
      %p561 = por %p559, %p560
      %p562 = scmp.le.s32.totalorder 1, %s35
      %p563 = scmp.lt.s32.totalorder %s35, 3
      %p564 = pnand %p562, %p563
      %p565 = pneg %p564
      // Predicated region
      $region9: #{model_forward.1} parent=5 // pred_check
        _
      $region10: #{model_forward.1} parent=5 // pred_check_branch
        %567 = sbr.rel (%p564) target = $region12
      $region11: #{model_forward.1} parent=5 // pred_region
        %s568 = ssub.s32 %s35, 1
        // Predicated region
        $region13: #{model_forward.1} parent=11 // pred_check
          %p569 = pneg %p82
        $region14: #{model_forward.1} parent=11 // pred_check_branch
          %571 = sbr.rel (%p569) target = $region16
        $region15: #{model_forward.1} parent=11 // pred_region
          _
        $region16: #{model_forward.1} parent=11 // pred_fallthru
          _
        // Predicated region
        $region17: #{model_forward.1} parent=11 // pred_check
          %p572 = pneg %p103
        $region18: #{model_forward.1} parent=11 // pred_check_branch
          %574 = sbr.rel (%p572) target = $region20
        $region19: #{model_forward.1} parent=11 // pred_region
          _
        $region20: #{model_forward.1} parent=11 // pred_fallthru
          _
        // Predicated region
        $region21: #{model_forward.1} parent=11 // pred_check
          %p575 = pneg %p124
        $region22: #{model_forward.1} parent=11 // pred_check_branch
          %577 = sbr.rel (%p575) target = $region24
        $region23: #{model_forward.1} parent=11 // pred_region
          _
        $region24: #{model_forward.1} parent=11 // pred_fallthru
          _
        // Predicated region
        $region25: #{model_forward.1} parent=11 // pred_check
          %p578 = pneg %p145
        $region26: #{model_forward.1} parent=11 // pred_check_branch
          %580 = sbr.rel (%p578) target = $region28
        $region27: #{model_forward.1} parent=11 // pred_region
          _
        $region28: #{model_forward.1} parent=11 // pred_fallthru
          _
        // Predicated region
        $region29: #{model_forward.1} parent=11 // pred_check
          %p581 = pneg %p166
        $region30: #{model_forward.1} parent=11 // pred_check_branch
          %583 = sbr.rel (%p581) target = $region32
        $region31: #{model_forward.1} parent=11 // pred_region
          _
        $region32: #{model_forward.1} parent=11 // pred_fallthru
          _
        // Predicated region
        $region33: #{model_forward.1} parent=11 // pred_check
          %p584 = pneg %p187
        $region34: #{model_forward.1} parent=11 // pred_check_branch
          %586 = sbr.rel (%p584) target = $region36
        $region35: #{model_forward.1} parent=11 // pred_region
          _
        $region36: #{model_forward.1} parent=11 // pred_fallthru
          _
        // Predicated region
        $region37: #{model_forward.1} parent=11 // pred_check
          %p587 = pneg %p208
        $region38: #{model_forward.1} parent=11 // pred_check_branch
          %589 = sbr.rel (%p587) target = $region40
        $region39: #{model_forward.1} parent=11 // pred_region
          _
        $region40: #{model_forward.1} parent=11 // pred_fallthru
          _
        // Predicated region
        $region41: #{model_forward.1} parent=11 // pred_check
          %p590 = pneg %p229
        $region42: #{model_forward.1} parent=11 // pred_check_branch
          %592 = sbr.rel (%p590) target = $region44
        $region43: #{model_forward.1} parent=11 // pred_region
          _
        $region44: #{model_forward.1} parent=11 // pred_fallthru
          _
        // Predicated region
        $region45: #{model_forward.1} parent=11 // pred_check
          %p593 = pneg %p250
        $region46: #{model_forward.1} parent=11 // pred_check_branch
          %595 = sbr.rel (%p593) target = $region48
        $region47: #{model_forward.1} parent=11 // pred_region
          _
        $region48: #{model_forward.1} parent=11 // pred_fallthru
          _
        // Predicated region
        $region49: #{model_forward.1} parent=11 // pred_check
          %p596 = pneg %p271
        $region50: #{model_forward.1} parent=11 // pred_check_branch
          %598 = sbr.rel (%p596) target = $region52
        $region51: #{model_forward.1} parent=11 // pred_region
          _
        $region52: #{model_forward.1} parent=11 // pred_fallthru
          _
        // Predicated region
        $region53: #{model_forward.1} parent=11 // pred_check
          %p599 = pneg %p292
        $region54: #{model_forward.1} parent=11 // pred_check_branch
          %601 = sbr.rel (%p599) target = $region56
        $region55: #{model_forward.1} parent=11 // pred_region
          _
        $region56: #{model_forward.1} parent=11 // pred_fallthru
          _
        // Predicated region
        $region57: #{model_forward.1} parent=11 // pred_check
          %p602 = pneg %p313
        $region58: #{model_forward.1} parent=11 // pred_check_branch
          %604 = sbr.rel (%p602) target = $region60
        $region59: #{model_forward.1} parent=11 // pred_region
          _
        $region60: #{model_forward.1} parent=11 // pred_fallthru
          _
        // Predicated region
        $region61: #{model_forward.1} parent=11 // pred_check
          %p605 = pneg %p334
        $region62: #{model_forward.1} parent=11 // pred_check_branch
          %607 = sbr.rel (%p605) target = $region64
        $region63: #{model_forward.1} parent=11 // pred_region
          _
        $region64: #{model_forward.1} parent=11 // pred_fallthru
          _
        // Predicated region
        $region65: #{model_forward.1} parent=11 // pred_check
          %p608 = pneg %p355
        $region66: #{model_forward.1} parent=11 // pred_check_branch
          %610 = sbr.rel (%p608) target = $region68
        $region67: #{model_forward.1} parent=11 // pred_region
          _
        $region68: #{model_forward.1} parent=11 // pred_fallthru
          _
        // Predicated region
        $region69: #{model_forward.1} parent=11 // pred_check
          %p611 = pneg %p376
        $region70: #{model_forward.1} parent=11 // pred_check_branch
          %613 = sbr.rel (%p611) target = $region72
        $region71: #{model_forward.1} parent=11 // pred_region
          _
        $region72: #{model_forward.1} parent=11 // pred_fallthru
          _
        // Predicated region
        $region73: #{model_forward.1} parent=11 // pred_check
          %p614 = pneg %p397
        $region74: #{model_forward.1} parent=11 // pred_check_branch
          %616 = sbr.rel (%p614) target = $region76
        $region75: #{model_forward.1} parent=11 // pred_region
          _
        $region76: #{model_forward.1} parent=11 // pred_fallthru
          _
        // Predicated region
        $region77: #{model_forward.1} parent=11 // pred_check
          %p617 = pneg %p418
        $region78: #{model_forward.1} parent=11 // pred_check_branch
          %619 = sbr.rel (%p617) target = $region80
        $region79: #{model_forward.1} parent=11 // pred_region
          _
        $region80: #{model_forward.1} parent=11 // pred_fallthru
          _
        // Predicated region
        $region81: #{model_forward.1} parent=11 // pred_check
          %p620 = pneg %p439
        $region82: #{model_forward.1} parent=11 // pred_check_branch
          %622 = sbr.rel (%p620) target = $region84
        $region83: #{model_forward.1} parent=11 // pred_region
          _
        $region84: #{model_forward.1} parent=11 // pred_fallthru
          _
        // Predicated region
        $region85: #{model_forward.1} parent=11 // pred_check
          %p623 = pneg %p460
        $region86: #{model_forward.1} parent=11 // pred_check_branch
          %625 = sbr.rel (%p623) target = $region88
        $region87: #{model_forward.1} parent=11 // pred_region
          _
        $region88: #{model_forward.1} parent=11 // pred_fallthru
          _
        // Predicated region
        $region89: #{model_forward.1} parent=11 // pred_check
          %p626 = pneg %p481
        $region90: #{model_forward.1} parent=11 // pred_check_branch
          %628 = sbr.rel (%p626) target = $region92
        $region91: #{model_forward.1} parent=11 // pred_region
          _
        $region92: #{model_forward.1} parent=11 // pred_fallthru
          _
        // Predicated region
        $region93: #{model_forward.1} parent=11 // pred_check
          %p629 = pneg %p502
        $region94: #{model_forward.1} parent=11 // pred_check_branch
          %631 = sbr.rel (%p629) target = $region96
        $region95: #{model_forward.1} parent=11 // pred_region
          _
        $region96: #{model_forward.1} parent=11 // pred_fallthru
          _
      $region12: #{model_forward.1} parent=5 // pred_fallthru
        _
      %p632 = scmp.lt.s32.totalorder %s35, 2
      // Predicated region
      $region97: #{model_forward.1} parent=5 // pred_check
        %p633 = pneg %p632
      $region98: #{model_forward.1} parent=5 // pred_check_branch
        %635 = sbr.rel (%p633) target = $region100
      $region99: #{model_forward.1} parent=5 // pred_region
        // Predicated region
        $region101: #{model_forward.1} parent=99 // pred_check
          %p636 = pneg %p55
        $region102: #{model_forward.1} parent=99 // pred_check_branch
          %638 = sbr.rel (%p636) target = $region104
        $region103: #{model_forward.1} parent=99 // pred_region
          %s639 = sand.u32 %s45, 1
          %s640 = sand.u32 %s45, 1
          %s641 = smul.addr %s640, 96
          %s642 = scalar_lea.vmem [#allocation3], %s641
          %s643 = smul.u32 2, %s35
          %s644 = smul.addr %s643, 8
          %s645 = scalar_lea.vmem %s0, %s644
          // Predicated region
          $region105: #{model_forward.1} parent=103 // pred_check
            _
          $region106: #{model_forward.1} parent=103 // pred_check_branch
            %647 = sbr.rel (0) target = $region108
          $region107: #{model_forward.1} parent=103 // pred_region
            // Predicated region
            $region109: #{model_forward.1} parent=107 // pred_check
              _
            $region110: #{model_forward.1} parent=107 // pred_check_branch
              %649 = sbr.rel (0) target = $region112
            $region111: #{model_forward.1} parent=107 // pred_region
              loop: start=0, step=1, limit=1
              $region113: #{model_forward.1} parent=111 // loop_pre_header
                _
              $region114: #{model_forward.1} parent=111 // loop_header
                %s651 = sphi 0, %s655
                %p652 = scmp.ge.s32.totalorder %s651, 1
                %s656 = sphi %s645, %s645
                %s657 = sphi %s642, %s642
              $region115: #{model_forward.1} parent=111 // loop_header_branch
                %654 = sbr.rel (%p652) target = $region119
              $region116: #{model_forward.1} parent=111 // loop_body
                %v658 = vld [vmem:[%s656] sm:$0xff]
                %659 = vst [vmem:[%s657] sm:$0xff] %v658
                %v660 = vld [vmem:[%s656 + $0x8] sm:$0xff]
                %661 = vst [vmem:[%s657 + $0x8] sm:$0xff] %v660
                %v662 = vld [vmem:[%s656 + $0x20] sm:$0xff]
                %663 = vst [vmem:[%s657 + $0x10] sm:$0xff] %v662
                %v664 = vld [vmem:[%s656 + $0x28] sm:$0xff]
                %665 = vst [vmem:[%s657 + $0x18] sm:$0xff] %v664
                %v666 = vld [vmem:[%s656 + $0x40] sm:$0xff]
                %667 = vst [vmem:[%s657 + $0x20] sm:$0xff] %v666
                %v668 = vld [vmem:[%s656 + $0x48] sm:$0xff]
                %669 = vst [vmem:[%s657 + $0x28] sm:$0xff] %v668
                %v670 = vld [vmem:[%s656 + $0x60] sm:$0xff]
                %671 = vst [vmem:[%s657 + $0x30] sm:$0xff] %v670
                %v672 = vld [vmem:[%s656 + $0x68] sm:$0xff]
                %673 = vst [vmem:[%s657 + $0x38] sm:$0xff] %v672
                %v674 = vld [vmem:[%s656 + $0x80] sm:$0xff]
                %675 = vst [vmem:[%s657 + $0x40] sm:$0xff] %v674
                %v676 = vld [vmem:[%s656 + $0x88] sm:$0xff]
                %677 = vst [vmem:[%s657 + $0x48] sm:$0xff] %v676
                %v678 = vld [vmem:[%s656 + $0xa0] sm:$0xff]
                %679 = vst [vmem:[%s657 + $0x50] sm:$0xff] %v678
                %v680 = vld [vmem:[%s656 + $0xa8] sm:$0xff]
                %681 = vst [vmem:[%s657 + $0x58] sm:$0xff] %v680
              $region117: #{model_forward.1} parent=111 // loop_footer
                %s655 = sadd.s32 1, %s651
              $region118: #{model_forward.1} parent=111 // loop_footer_branch
                %650 = sbr.rel target = $region114
              $region119: #{model_forward.1} parent=111 // loop_exit
                _
            $region112: #{model_forward.1} parent=107 // pred_fallthru
              _
            // Predicated region
            $region120: #{model_forward.1} parent=107 // pred_check
              _
            $region121: #{model_forward.1} parent=107 // pred_check_branch
              %683 = sbr.rel target = $region123
            $region122: #{model_forward.1} parent=107 // pred_region
              _
            $region123: #{model_forward.1} parent=107 // pred_fallthru
              _
          $region108: #{model_forward.1} parent=103 // pred_fallthru
            _
          %684 = vnop
        $region104: #{model_forward.1} parent=99 // pred_fallthru
          _
      $region100: #{model_forward.1} parent=5 // pred_fallthru
        _
      %p685 = scmp.le.s32.totalorder 1, %s35
      %p686 = scmp.lt.s32.totalorder %s35, 3
      %p687 = pnand %p685, %p686
      %p688 = pneg %p687
      // Predicated region
      $region124: #{model_forward.1} parent=5 // pred_check
        _
      $region125: #{model_forward.1} parent=5 // pred_check_branch
        %690 = sbr.rel (%p687) target = $region127
      $region126: #{model_forward.1} parent=5 // pred_region
        %s691 = ssub.s32 %s35, 1
        %s692 = sand.u32 %s48, 1
        %s693 = sand.u32 %s48, 1
        %s694 = smul.addr %s693, 96
        %s695 = scalar_lea.vmem [#allocation3], %s694
        // Predicated region
        $region128: #{model_forward.1} parent=126 // pred_check
          %p696 = pneg %p61
        $region129: #{model_forward.1} parent=126 // pred_check_branch
          %698 = sbr.rel (%p696) target = $region131
        $region130: #{model_forward.1} parent=126 // pred_region
          _
        $region131: #{model_forward.1} parent=126 // pred_fallthru
          _
        %s699 = sand.u32 %s48, 1
        %s700 = sand.u32 %s48, 1
        %s701 = smul.addr %s700, 96
        %s702 = scalar_lea.vmem [#allocation3], %s701
        %p703 = pneg %p61
        %p704 = pneg %p58
        %p705 = pneg %p82
        %p706 = pneg %p79
        %p707 = pneg %p103
        %p708 = pneg %p100
        %p709 = pneg %p124
        %p710 = pneg %p121
        %p711 = pneg %p145
        %p712 = pneg %p142
        %p713 = pneg %p166
        %p714 = pneg %p163
        %p715 = pneg %p187
        %p716 = pneg %p184
        %p717 = pneg %p208
        %p718 = pneg %p205
        %p719 = pneg %p229
        %p720 = pneg %p226
        %p721 = pneg %p250
        %p722 = pneg %p247
        %p723 = pneg %p271
        %p724 = pneg %p268
        %p725 = pneg %p292
        %p726 = pneg %p289
        %p727 = pneg %p313
        %p728 = pneg %p310
        %p729 = pneg %p334
        %p730 = pneg %p331
        %p731 = pneg %p355
        %p732 = pneg %p352
        %p733 = pneg %p376
        %p734 = pneg %p373
        %p735 = pneg %p397
        %p736 = pneg %p394
        %p737 = pneg %p418
        %p738 = pneg %p415
        %p739 = pneg %p439
        %p740 = pneg %p436
        %p741 = pneg %p460
        %p742 = pneg %p457
        %p743 = pneg %p481
        %p744 = pneg %p478
        %p745 = pneg %p502
        %p746 = pneg %p499
        %p747 = pneg %p528
        %p748 = pneg %p525
        %s749 = sand.u32 %s515, 1
        %s750 = scalar_lea.sflag [#allocation5], %s749
        %s751 = sand.u32 %s515, 1
        %s752 = smul.addr %s751, 2
        %s753 = scalar_lea.vmem [#allocation4], %s752
        %p754 = pneg %p554
        %p755 = pneg %p551
        %s756 = sand.u32 %s541, 1
        %s757 = sand.u32 %s541, 1
        %s758 = smul.addr %s757, 96
        %s759 = scalar_lea.vmem [#allocation6], %s758
        %s760 = smul.u32 2, %s40
        %s761 = smul.u32 2, %s40
        %s762 = smul.u32 2, %s40
        %v763 = vld [vmem:[%s695] sm:$0xff]
        %v764 = vld [vmem:[%s695 + $0x8] sm:$0xff]
        %v765 = vld [vmem:[%s695 + $0x10] sm:$0x3]
        %v766 = vld [vmem:[%s695 + $0x18] sm:$0x3]
        %v767 = vld [vmem:[%s695 + $0x20] sm:$0xff]
        %v768 = vld [vmem:[%s695 + $0x28] sm:$0xff]
        %v769 = vld [vmem:[%s695 + $0x30] sm:$0x3]
        %v770 = vld [vmem:[%s695 + $0x38] sm:$0x3]
        %v771 = vld [vmem:[%s695 + $0x40] sm:$0xff]
        %v772 = vld [vmem:[%s695 + $0x48] sm:$0xff]
        %v773 = vld [vmem:[%s695 + $0x50] sm:$0x3]
        %v774 = vld [vmem:[%s695 + $0x58] sm:$0x3]
        %v775 = vld [vmem:[%s1] sm:$0xff]
        %v776 = vld [vmem:[%s1 + $0x8] sm:$0xff]
        %v777 = vld [vmem:[%s1 + $0x10] sm:$0xff]
        %v778 = vld [vmem:[%s1 + $0x18] sm:$0xff]
        %v779 = vld [vmem:[%s1 + $0x20] sm:$0xff]
        %v780 = vld [vmem:[%s1 + $0x28] sm:$0x1f]
        %vm781 = vcmask 80896
        %v783 = vsel %vm781, %v775, 0
        %v786 = vsel %vm781, %v776, 0
        %v789 = vsel %vm781, %v777, 0
        %v792 = vsel %vm781, %v778, 0
        %v795 = vsel %vm781, %v779, 0
        %v798 = vsel %vm781, %v780, 0
        %vm800 = vcmask 1041408
        %v802 = vsel %vm800, %v765, 0
        %v805 = vsel %vm800, %v766, 0
        %807 = vmatpush.msra.mxu0 0.0
        %808 = vmatpush.msra.mxu0 0.0
        %809 = vmatpush.msra.mxu0 0.0
        %810 = vmatpush.msra.mxu0 0.0
        %811 = vmatpush.msra.mxu0 0.0
        %812 = vmatpush.msra.mxu0 0.0
        %813 = vmatpush.msra.mxu0 0.0
        %814 = vmatpush.msra.mxu0 0.0
        %815 = vmatpush.msra.mxu0 0.0
        %816 = vmatpush.msra.mxu0 0.0
        %817 = vmatpush.msra.mxu0 0.0
        %818 = vmatpush.msra.mxu0 0.0
        %819 = vmatpush.msra.mxu0 0.0
        %820 = vmatpush.msra.mxu0 0.0
        %821 = vmatpush.msra.mxu0 %v802
        %822 = vmatpush.msra.mxu0 %v763
        %823 = vmatmul.f32.gmra.mxu0 %v783
        %v824 = vpop.f32.mrf.mxu0
        %v825 = vadd.f32 0.0, %v824
        %826 = vmatmul.f32.gmra.mxu0 %v786
        %v827 = vpop.f32.mrf.mxu0
        %v828 = vadd.f32 0.0, %v827
        %829 = vmatmul.f32.gmra.mxu0 %v789
        %v830 = vpop.f32.mrf.mxu0
        %v831 = vadd.f32 0.0, %v830
        %832 = vmatmul.f32.gmra.mxu0 %v792
        %v833 = vpop.f32.mrf.mxu0
        %v834 = vadd.f32 0.0, %v833
        %835 = vmatmul.f32.gmra.mxu0 %v795
        %v836 = vpop.f32.mrf.mxu0
        %v837 = vadd.f32 0.0, %v836
        %838 = vmatmul.f32.gmra.mxu0 %v798
        %v839 = vpop.f32.mrf.mxu0
        %v840 = vadd.f32 0.0, %v839
        %841 = vdwg.mxu0
        %842 = vmatpush.msra.mxu0 0.0
        %843 = vmatpush.msra.mxu0 0.0
        %844 = vmatpush.msra.mxu0 0.0
        %845 = vmatpush.msra.mxu0 0.0
        %846 = vmatpush.msra.mxu0 0.0
        %847 = vmatpush.msra.mxu0 0.0
        %848 = vmatpush.msra.mxu0 0.0
        %849 = vmatpush.msra.mxu0 0.0
        %850 = vmatpush.msra.mxu0 0.0
        %851 = vmatpush.msra.mxu0 0.0
        %852 = vmatpush.msra.mxu0 0.0
        %853 = vmatpush.msra.mxu0 0.0
        %854 = vmatpush.msra.mxu0 0.0
        %855 = vmatpush.msra.mxu0 0.0
        %856 = vmatpush.msra.mxu0 %v805
        %857 = vmatpush.msra.mxu0 %v764
        %858 = vmatmul.f32.gmra.mxu0 %v783
        %v859 = vpop.f32.mrf.mxu0
        %v860 = vadd.f32 0.0, %v859
        %861 = vmatmul.f32.gmra.mxu0 %v786
        %v862 = vpop.f32.mrf.mxu0
        %v863 = vadd.f32 0.0, %v862
        %864 = vmatmul.f32.gmra.mxu0 %v789
        %v865 = vpop.f32.mrf.mxu0
        %v866 = vadd.f32 0.0, %v865
        %867 = vmatmul.f32.gmra.mxu0 %v792
        %v868 = vpop.f32.mrf.mxu0
        %v869 = vadd.f32 0.0, %v868
        %870 = vmatmul.f32.gmra.mxu0 %v795
        %v871 = vpop.f32.mrf.mxu0
        %v872 = vadd.f32 0.0, %v871
        %873 = vmatmul.f32.gmra.mxu0 %v798
        %v874 = vpop.f32.mrf.mxu0
        %v875 = vadd.f32 0.0, %v874
        %876 = vdwg.mxu0
        %v878 = vsel %vm800, %v769, 0
        %v881 = vsel %vm800, %v770, 0
        %883 = vmatpush.msra.mxu0 0.0
        %884 = vmatpush.msra.mxu0 0.0
        %885 = vmatpush.msra.mxu0 0.0
        %886 = vmatpush.msra.mxu0 0.0
        %887 = vmatpush.msra.mxu0 0.0
        %888 = vmatpush.msra.mxu0 0.0
        %889 = vmatpush.msra.mxu0 0.0
        %890 = vmatpush.msra.mxu0 0.0
        %891 = vmatpush.msra.mxu0 0.0
        %892 = vmatpush.msra.mxu0 0.0
        %893 = vmatpush.msra.mxu0 0.0
        %894 = vmatpush.msra.mxu0 0.0
        %895 = vmatpush.msra.mxu0 0.0
        %896 = vmatpush.msra.mxu0 0.0
        %897 = vmatpush.msra.mxu0 %v878
        %898 = vmatpush.msra.mxu0 %v767
        %899 = vmatmul.f32.gmra.mxu0 %v783
        %v900 = vpop.f32.mrf.mxu0
        %v901 = vadd.f32 0.0, %v900
        %902 = vmatmul.f32.gmra.mxu0 %v786
        %v903 = vpop.f32.mrf.mxu0
        %v904 = vadd.f32 0.0, %v903
        %905 = vmatmul.f32.gmra.mxu0 %v789
        %v906 = vpop.f32.mrf.mxu0
        %v907 = vadd.f32 0.0, %v906
        %908 = vmatmul.f32.gmra.mxu0 %v792
        %v909 = vpop.f32.mrf.mxu0
        %v910 = vadd.f32 0.0, %v909
        %911 = vmatmul.f32.gmra.mxu0 %v795
        %v912 = vpop.f32.mrf.mxu0
        %v913 = vadd.f32 0.0, %v912
        %914 = vmatmul.f32.gmra.mxu0 %v798
        %v915 = vpop.f32.mrf.mxu0
        %v916 = vadd.f32 0.0, %v915
        %917 = vdwg.mxu0
        %918 = vmatpush.msra.mxu0 0.0
        %919 = vmatpush.msra.mxu0 0.0
        %920 = vmatpush.msra.mxu0 0.0
        %921 = vmatpush.msra.mxu0 0.0
        %922 = vmatpush.msra.mxu0 0.0
        %923 = vmatpush.msra.mxu0 0.0
        %924 = vmatpush.msra.mxu0 0.0
        %925 = vmatpush.msra.mxu0 0.0
        %926 = vmatpush.msra.mxu0 0.0
        %927 = vmatpush.msra.mxu0 0.0
        %928 = vmatpush.msra.mxu0 0.0
        %929 = vmatpush.msra.mxu0 0.0
        %930 = vmatpush.msra.mxu0 0.0
        %931 = vmatpush.msra.mxu0 0.0
        %932 = vmatpush.msra.mxu0 %v881
        %933 = vmatpush.msra.mxu0 %v768
        %934 = vmatmul.f32.gmra.mxu0 %v783
        %v935 = vpop.f32.mrf.mxu0
        %v936 = vadd.f32 0.0, %v935
        %937 = vmatmul.f32.gmra.mxu0 %v786
        %v938 = vpop.f32.mrf.mxu0
        %v939 = vadd.f32 0.0, %v938
        %940 = vmatmul.f32.gmra.mxu0 %v789
        %v941 = vpop.f32.mrf.mxu0
        %v942 = vadd.f32 0.0, %v941
        %943 = vmatmul.f32.gmra.mxu0 %v792
        %v944 = vpop.f32.mrf.mxu0
        %v945 = vadd.f32 0.0, %v944
        %946 = vmatmul.f32.gmra.mxu0 %v795
        %v947 = vpop.f32.mrf.mxu0
        %v948 = vadd.f32 0.0, %v947
        %949 = vmatmul.f32.gmra.mxu0 %v798
        %v950 = vpop.f32.mrf.mxu0
        %v951 = vadd.f32 0.0, %v950
        %952 = vdwg.mxu0
        %v954 = vsel %vm800, %v773, 0
        %v957 = vsel %vm800, %v774, 0
        %959 = vmatpush.msra.mxu0 0.0
        %960 = vmatpush.msra.mxu0 0.0
        %961 = vmatpush.msra.mxu0 0.0
        %962 = vmatpush.msra.mxu0 0.0
        %963 = vmatpush.msra.mxu0 0.0
        %964 = vmatpush.msra.mxu0 0.0
        %965 = vmatpush.msra.mxu0 0.0
        %966 = vmatpush.msra.mxu0 0.0
        %967 = vmatpush.msra.mxu0 0.0
        %968 = vmatpush.msra.mxu0 0.0
        %969 = vmatpush.msra.mxu0 0.0
        %970 = vmatpush.msra.mxu0 0.0
        %971 = vmatpush.msra.mxu0 0.0
        %972 = vmatpush.msra.mxu0 0.0
        %973 = vmatpush.msra.mxu0 %v954
        %974 = vmatpush.msra.mxu0 %v771
        %975 = vmatmul.f32.gmra.mxu0 %v783
        %v976 = vpop.f32.mrf.mxu0
        %v977 = vadd.f32 0.0, %v976
        %978 = vmatmul.f32.gmra.mxu0 %v786
        %v979 = vpop.f32.mrf.mxu0
        %v980 = vadd.f32 0.0, %v979
        %981 = vmatmul.f32.gmra.mxu0 %v789
        %v982 = vpop.f32.mrf.mxu0
        %v983 = vadd.f32 0.0, %v982
        %984 = vmatmul.f32.gmra.mxu0 %v792
        %v985 = vpop.f32.mrf.mxu0
        %v986 = vadd.f32 0.0, %v985
        %987 = vmatmul.f32.gmra.mxu0 %v795
        %v988 = vpop.f32.mrf.mxu0
        %v989 = vadd.f32 0.0, %v988
        %990 = vmatmul.f32.gmra.mxu0 %v798
        %v991 = vpop.f32.mrf.mxu0
        %v992 = vadd.f32 0.0, %v991
        %993 = vdwg.mxu0
        %994 = vmatpush.msra.mxu0 0.0
        %995 = vmatpush.msra.mxu0 0.0
        %996 = vmatpush.msra.mxu0 0.0
        %997 = vmatpush.msra.mxu0 0.0
        %998 = vmatpush.msra.mxu0 0.0
        %999 = vmatpush.msra.mxu0 0.0
        %1000 = vmatpush.msra.mxu0 0.0
        %1001 = vmatpush.msra.mxu0 0.0
        %1002 = vmatpush.msra.mxu0 0.0
        %1003 = vmatpush.msra.mxu0 0.0
        %1004 = vmatpush.msra.mxu0 0.0
        %1005 = vmatpush.msra.mxu0 0.0
        %1006 = vmatpush.msra.mxu0 0.0
        %1007 = vmatpush.msra.mxu0 0.0
        %1008 = vmatpush.msra.mxu0 %v957
        %1009 = vmatpush.msra.mxu0 %v772
        %1010 = vmatmul.f32.gmra.mxu0 %v783
        %v1011 = vpop.f32.mrf.mxu0
        %v1012 = vadd.f32 0.0, %v1011
        %1013 = vmatmul.f32.gmra.mxu0 %v786
        %v1014 = vpop.f32.mrf.mxu0
        %v1015 = vadd.f32 0.0, %v1014
        %1016 = vmatmul.f32.gmra.mxu0 %v789
        %v1017 = vpop.f32.mrf.mxu0
        %v1018 = vadd.f32 0.0, %v1017
        %1019 = vmatmul.f32.gmra.mxu0 %v792
        %v1020 = vpop.f32.mrf.mxu0
        %v1021 = vadd.f32 0.0, %v1020
        %1022 = vmatmul.f32.gmra.mxu0 %v795
        %v1023 = vpop.f32.mrf.mxu0
        %v1024 = vadd.f32 0.0, %v1023
        %1025 = vmatmul.f32.gmra.mxu0 %v798
        %v1026 = vpop.f32.mrf.mxu0
        %v1027 = vadd.f32 0.0, %v1026
        %1028 = vdwg.mxu0
        %v1029 = vmul.f32 %v825, %v825
        %v1030 = vmul.f32 %v860, %v860
        %v1031 = vmul.f32 %v828, %v828
        %v1032 = vmul.f32 %v863, %v863
        %v1033 = vmul.f32 %v831, %v831
        %v1034 = vmul.f32 %v866, %v866
        %v1035 = vmul.f32 %v834, %v834
        %v1036 = vmul.f32 %v869, %v869
        %v1037 = vmul.f32 %v837, %v837
        %v1038 = vmul.f32 %v872, %v872
        %v1039 = vmul.f32 %v840, %v840
        %v1040 = vmul.f32 %v875, %v875
        %v1041 = vmul.f32 %v901, %v901
        %v1042 = vmul.f32 %v936, %v936
        %v1043 = vmul.f32 %v904, %v904
        %v1044 = vmul.f32 %v939, %v939
        %v1045 = vmul.f32 %v907, %v907
        %v1046 = vmul.f32 %v942, %v942
        %v1047 = vmul.f32 %v910, %v910
        %v1048 = vmul.f32 %v945, %v945
        %v1049 = vmul.f32 %v913, %v913
        %v1050 = vmul.f32 %v948, %v948
        %v1051 = vmul.f32 %v916, %v916
        %v1052 = vmul.f32 %v951, %v951
        %v1053 = vadd.f32 %v1029, %v1041
        %v1054 = vadd.f32 %v1030, %v1042
        %v1055 = vadd.f32 %v1031, %v1043
        %v1056 = vadd.f32 %v1032, %v1044
        %v1057 = vadd.f32 %v1033, %v1045
        %v1058 = vadd.f32 %v1034, %v1046
        %v1059 = vadd.f32 %v1035, %v1047
        %v1060 = vadd.f32 %v1036, %v1048
        %v1061 = vadd.f32 %v1037, %v1049
        %v1062 = vadd.f32 %v1038, %v1050
        %v1063 = vadd.f32 %v1039, %v1051
        %v1064 = vadd.f32 %v1040, %v1052
        %v1065 = vmul.f32 %v977, %v977
        %v1066 = vmul.f32 %v1012, %v1012
        %v1067 = vmul.f32 %v980, %v980
        %v1068 = vmul.f32 %v1015, %v1015
        %v1069 = vmul.f32 %v983, %v983
        %v1070 = vmul.f32 %v1018, %v1018
        %v1071 = vmul.f32 %v986, %v986
        %v1072 = vmul.f32 %v1021, %v1021
        %v1073 = vmul.f32 %v989, %v989
        %v1074 = vmul.f32 %v1024, %v1024
        %v1075 = vmul.f32 %v992, %v992
        %v1076 = vmul.f32 %v1027, %v1027
        %v1077 = vadd.f32 %v1053, %v1065
        %v1078 = vadd.f32 %v1054, %v1066
        %v1079 = vadd.f32 %v1055, %v1067
        %v1080 = vadd.f32 %v1056, %v1068
        %v1081 = vadd.f32 %v1057, %v1069
        %v1082 = vadd.f32 %v1058, %v1070
        %v1083 = vadd.f32 %v1059, %v1071
        %v1084 = vadd.f32 %v1060, %v1072
        %v1085 = vadd.f32 %v1061, %v1073
        %v1086 = vadd.f32 %v1062, %v1074
        %v1087 = vadd.f32 %v1063, %v1075
        %v1088 = vadd.f32 %v1064, %v1076
        %v1089 = vrsqrt.pop %v1077
        %v1090 = vmul.f32 %v1089, %v1077
        %v1091 = vmul.f32 %v1090, %v1089
        %v1092 = vmul.f32 0.5, %v1091
        %v1093 = vsub.f32 1.5, %v1092
        %v1094 = vmul.f32 %v1089, %v1093
        %vm1095 = vweird.f32 %v1077
        %vm1096 = vweird.f32 %v1089
        %vm1097 = vmor %vm1095, %vm1096
        %v1098 = vsel %vm1097, %v1089, %v1094
        %v1099 = vrsqrt.pop %v1078
        %v1100 = vmul.f32 %v1099, %v1078
        %v1101 = vmul.f32 %v1100, %v1099
        %v1102 = vmul.f32 0.5, %v1101
        %v1103 = vsub.f32 1.5, %v1102
        %v1104 = vmul.f32 %v1099, %v1103
        %vm1105 = vweird.f32 %v1078
        %vm1106 = vweird.f32 %v1099
        %vm1107 = vmor %vm1105, %vm1106
        %v1108 = vsel %vm1107, %v1099, %v1104
        %v1109 = vrsqrt.pop %v1079
        %v1110 = vmul.f32 %v1109, %v1079
        %v1111 = vmul.f32 %v1110, %v1109
        %v1112 = vmul.f32 0.5, %v1111
        %v1113 = vsub.f32 1.5, %v1112
        %v1114 = vmul.f32 %v1109, %v1113
        %vm1115 = vweird.f32 %v1079
        %vm1116 = vweird.f32 %v1109
        %vm1117 = vmor %vm1115, %vm1116
        %v1118 = vsel %vm1117, %v1109, %v1114
        %v1119 = vrsqrt.pop %v1080
        %v1120 = vmul.f32 %v1119, %v1080
        %v1121 = vmul.f32 %v1120, %v1119
        %v1122 = vmul.f32 0.5, %v1121
        %v1123 = vsub.f32 1.5, %v1122
        %v1124 = vmul.f32 %v1119, %v1123
        %vm1125 = vweird.f32 %v1080
        %vm1126 = vweird.f32 %v1119
        %vm1127 = vmor %vm1125, %vm1126
        %v1128 = vsel %vm1127, %v1119, %v1124
        %v1129 = vrsqrt.pop %v1081
        %v1130 = vmul.f32 %v1129, %v1081
        %v1131 = vmul.f32 %v1130, %v1129
        %v1132 = vmul.f32 0.5, %v1131
        %v1133 = vsub.f32 1.5, %v1132
        %v1134 = vmul.f32 %v1129, %v1133
        %vm1135 = vweird.f32 %v1081
        %vm1136 = vweird.f32 %v1129
        %vm1137 = vmor %vm1135, %vm1136
        %v1138 = vsel %vm1137, %v1129, %v1134
        %v1139 = vrsqrt.pop %v1082
        %v1140 = vmul.f32 %v1139, %v1082
        %v1141 = vmul.f32 %v1140, %v1139
        %v1142 = vmul.f32 0.5, %v1141
        %v1143 = vsub.f32 1.5, %v1142
        %v1144 = vmul.f32 %v1139, %v1143
        %vm1145 = vweird.f32 %v1082
        %vm1146 = vweird.f32 %v1139
        %vm1147 = vmor %vm1145, %vm1146
        %v1148 = vsel %vm1147, %v1139, %v1144
        %v1149 = vrsqrt.pop %v1083
        %v1150 = vmul.f32 %v1149, %v1083
        %v1151 = vmul.f32 %v1150, %v1149
        %v1152 = vmul.f32 0.5, %v1151
        %v1153 = vsub.f32 1.5, %v1152
        %v1154 = vmul.f32 %v1149, %v1153
        %vm1155 = vweird.f32 %v1083
        %vm1156 = vweird.f32 %v1149
        %vm1157 = vmor %vm1155, %vm1156
        %v1158 = vsel %vm1157, %v1149, %v1154
        %v1159 = vrsqrt.pop %v1084
        %v1160 = vmul.f32 %v1159, %v1084
        %v1161 = vmul.f32 %v1160, %v1159
        %v1162 = vmul.f32 0.5, %v1161
        %v1163 = vsub.f32 1.5, %v1162
        %v1164 = vmul.f32 %v1159, %v1163
        %vm1165 = vweird.f32 %v1084
        %vm1166 = vweird.f32 %v1159
        %vm1167 = vmor %vm1165, %vm1166
        %v1168 = vsel %vm1167, %v1159, %v1164
        %v1169 = vrsqrt.pop %v1085
        %v1170 = vmul.f32 %v1169, %v1085
        %v1171 = vmul.f32 %v1170, %v1169
        %v1172 = vmul.f32 0.5, %v1171
        %v1173 = vsub.f32 1.5, %v1172
        %v1174 = vmul.f32 %v1169, %v1173
        %vm1175 = vweird.f32 %v1085
        %vm1176 = vweird.f32 %v1169
        %vm1177 = vmor %vm1175, %vm1176
        %v1178 = vsel %vm1177, %v1169, %v1174
        %v1179 = vrsqrt.pop %v1086
        %v1180 = vmul.f32 %v1179, %v1086
        %v1181 = vmul.f32 %v1180, %v1179
        %v1182 = vmul.f32 0.5, %v1181
        %v1183 = vsub.f32 1.5, %v1182
        %v1184 = vmul.f32 %v1179, %v1183
        %vm1185 = vweird.f32 %v1086
        %vm1186 = vweird.f32 %v1179
        %vm1187 = vmor %vm1185, %vm1186
        %v1188 = vsel %vm1187, %v1179, %v1184
        %v1189 = vrsqrt.pop %v1087
        %v1190 = vmul.f32 %v1189, %v1087
        %v1191 = vmul.f32 %v1190, %v1189
        %v1192 = vmul.f32 0.5, %v1191
        %v1193 = vsub.f32 1.5, %v1192
        %v1194 = vmul.f32 %v1189, %v1193
        %vm1195 = vweird.f32 %v1087
        %vm1196 = vweird.f32 %v1189
        %vm1197 = vmor %vm1195, %vm1196
        %v1198 = vsel %vm1197, %v1189, %v1194
        %v1199 = vrsqrt.pop %v1088
        %v1200 = vmul.f32 %v1199, %v1088
        %v1201 = vmul.f32 %v1200, %v1199
        %v1202 = vmul.f32 0.5, %v1201
        %v1203 = vsub.f32 1.5, %v1202
        %v1204 = vmul.f32 %v1199, %v1203
        %vm1205 = vweird.f32 %v1088
        %vm1206 = vweird.f32 %v1199
        %vm1207 = vmor %vm1205, %vm1206
        %v1208 = vsel %vm1207, %v1199, %v1204
        %v1209 = vmul.f32 %v1077, %v1098
        %v1210 = vmul.f32 %v1078, %v1108
        %v1211 = vmul.f32 %v1079, %v1118
        %v1212 = vmul.f32 %v1080, %v1128
        %v1213 = vmul.f32 %v1081, %v1138
        %v1214 = vmul.f32 %v1082, %v1148
        %v1215 = vmul.f32 %v1083, %v1158
        %v1216 = vmul.f32 %v1084, %v1168
        %v1217 = vmul.f32 %v1085, %v1178
        %v1218 = vmul.f32 %v1086, %v1188
        %v1219 = vmul.f32 %v1087, %v1198
        %v1220 = vmul.f32 %v1088, %v1208
        %vm1225 = vcmask 1046528
        %v1226 = vrot.slane %v977, 1
        %v1227 = vrot.slane %v980, 1
        %v1228 = vsel %vm1225, %v1226, %v1227
        %v1229 = vrot.slane %v1012, 1
        %v1230 = vrot.slane %v1015, 1
        %v1231 = vsel %vm1225, %v1229, %v1230
        %v1234 = vmul.f32 %v901, %v1228
        %v1235 = vmul.f32 %v936, %v1231
        %v1240 = vrot.slane %v901, 1
        %v1241 = vrot.slane %v904, 1
        %v1242 = vsel %vm1225, %v1240, %v1241
        %v1243 = vrot.slane %v936, 1
        %v1244 = vrot.slane %v939, 1
        %v1245 = vsel %vm1225, %v1243, %v1244
        %v1248 = vmul.f32 %v977, %v1242
        %v1249 = vmul.f32 %v1012, %v1245
        %v1250 = vsub.f32 %v1234, %v1248
        %v1251 = vsub.f32 %v1235, %v1249
        %v1256 = vrot.slane %v825, 1
        %v1257 = vrot.slane %v828, 1
        %v1258 = vsel %vm1225, %v1256, %v1257
        %v1259 = vrot.slane %v860, 1
        %v1260 = vrot.slane %v863, 1
        %v1261 = vsel %vm1225, %v1259, %v1260
        %v1264 = vmul.f32 %v977, %v1258
        %v1265 = vmul.f32 %v1012, %v1261
        %v1266 = vmul.f32 %v825, %v1228
        %v1267 = vmul.f32 %v860, %v1231
        %v1268 = vsub.f32 %v1264, %v1266
        %v1269 = vsub.f32 %v1265, %v1267
        %v1270 = vmul.f32 %v825, %v1242
        %v1271 = vmul.f32 %v860, %v1245
        %v1272 = vmul.f32 %v901, %v1258
        %v1273 = vmul.f32 %v936, %v1261
        %v1274 = vsub.f32 %v1270, %v1272
        %v1275 = vsub.f32 %v1271, %v1273
        %v1276 = vmul.f32 %v1250, %v1250
        %v1277 = vmul.f32 %v1251, %v1251
        %v1278 = vmul.f32 %v1268, %v1268
        %v1279 = vmul.f32 %v1269, %v1269
        %v1280 = vadd.f32 %v1276, %v1278
        %v1281 = vadd.f32 %v1277, %v1279
        %v1282 = vmul.f32 %v1274, %v1274
        %v1283 = vmul.f32 %v1275, %v1275
        %v1284 = vadd.f32 %v1280, %v1282
        %v1285 = vadd.f32 %v1281, %v1283
        %v1286 = vrsqrt.pop %v1284
        %v1287 = vmul.f32 %v1286, %v1284
        %v1288 = vmul.f32 %v1287, %v1286
        %v1289 = vmul.f32 0.5, %v1288
        %v1290 = vsub.f32 1.5, %v1289
        %v1291 = vmul.f32 %v1286, %v1290
        %vm1292 = vweird.f32 %v1284
        %vm1293 = vweird.f32 %v1286
        %vm1294 = vmor %vm1292, %vm1293
        %v1295 = vsel %vm1294, %v1286, %v1291
        %v1296 = vrsqrt.pop %v1285
        %v1297 = vmul.f32 %v1296, %v1285
        %v1298 = vmul.f32 %v1297, %v1296
        %v1299 = vmul.f32 0.5, %v1298
        %v1300 = vsub.f32 1.5, %v1299
        %v1301 = vmul.f32 %v1296, %v1300
        %vm1302 = vweird.f32 %v1285
        %vm1303 = vweird.f32 %v1296
        %vm1304 = vmor %vm1302, %vm1303
        %v1305 = vsel %vm1304, %v1296, %v1301
        %v1310 = vrot.slane %v1098, 1
        %v1311 = vrot.slane %v1118, 1
        %v1312 = vsel %vm1225, %v1310, %v1311
        %v1313 = vrot.slane %v1108, 1
        %v1314 = vrot.slane %v1128, 1
        %v1315 = vsel %vm1225, %v1313, %v1314
        %v1318 = vmul.f32 %v1098, %v1312
        %v1319 = vmul.f32 %v1108, %v1315
        %v1320 = vmul.f32 %v825, %v1258
        %v1321 = vmul.f32 %v860, %v1261
        %v1322 = vmul.f32 %v901, %v1242
        %v1323 = vmul.f32 %v936, %v1245
        %v1324 = vadd.f32 %v1320, %v1322
        %v1325 = vadd.f32 %v1321, %v1323
        %v1326 = vmul.f32 %v977, %v1228
        %v1327 = vmul.f32 %v1012, %v1231
        %v1328 = vadd.f32 %v1324, %v1326
        %v1329 = vadd.f32 %v1325, %v1327
        %v1330 = vmul.f32 %v1328, %v1318
        %v1331 = vmul.f32 %v1329, %v1319
        %v1332 = vmax.f32 %v1330, -1.0
        %v1333 = vmax.f32 %v1331, -1.0
        %v1334 = vmin.f32 %v1332, 1.0
        %v1335 = vmin.f32 %v1333, 1.0
        %v1336 = vand.u32 2147483647, %v1334
        %v1337 = vand.u32 2147483647, %v1335
        %v1338 = vmul.f32 %v1336, -0.0012624911
        %v1339 = vmul.f32 %v1337, -0.0012624911
        %v1340 = vadd.f32 %v1338, 0.00667009
        %v1341 = vadd.f32 %v1339, 0.00667009
        %v1342 = vmul.f32 %v1340, %v1336
        %v1343 = vmul.f32 %v1341, %v1337
        %v1344 = vadd.f32 %v1342, -0.017088126
        %v1345 = vadd.f32 %v1343, -0.017088126
        %v1346 = vmul.f32 %v1344, %v1336
        %v1347 = vmul.f32 %v1345, %v1337
        %v1348 = vadd.f32 %v1346, 0.03089188
        %v1349 = vadd.f32 %v1347, 0.03089188
        %v1350 = vmul.f32 %v1348, %v1336
        %v1351 = vmul.f32 %v1349, %v1337
        %v1352 = vadd.f32 %v1350, -0.050174303
        %v1353 = vadd.f32 %v1351, -0.050174303
        %v1354 = vmul.f32 %v1352, %v1336
        %v1355 = vmul.f32 %v1353, %v1337
        %v1356 = vadd.f32 %v1354, 0.08897899
        %v1357 = vadd.f32 %v1355, 0.08897899
        %v1358 = vmul.f32 %v1356, %v1336
        %v1359 = vmul.f32 %v1357, %v1337
        %v1360 = vadd.f32 %v1358, -0.2145988
        %v1361 = vadd.f32 %v1359, -0.2145988
        %v1362 = vmul.f32 %v1360, %v1336
        %v1363 = vmul.f32 %v1361, %v1337
        %v1364 = vadd.f32 %v1362, 1.5707963
        %v1365 = vadd.f32 %v1363, 1.5707963
        %v1366 = vsub.f32 1.0, %v1336
        %v1367 = vsub.f32 1.0, %v1337
        %v1368 = vmax.f32 %v1366, 0.0
        %v1369 = vmax.f32 %v1367, 0.0
        %v1370 = vrsqrt.pop %v1368
        %v1371 = vmul.f32 %v1370, %v1368
        %v1372 = vmul.f32 %v1371, %v1370
        %v1373 = vmul.f32 0.5, %v1372
        %v1374 = vsub.f32 1.5, %v1373
        %v1375 = vmul.f32 %v1370, %v1374
        %v1376 = vmul.f32 %v1368, %v1375
        %vm1377 = vcmp.eq.f32.partialorder %v1368, inf
        %v1378 = vsel %vm1377, %v1368, %v1376
        %vm1379 = vcmp.eq.f32.partialorder %v1368, 0.0
        %v1380 = vand.u32 %v1368, 2147483648
        %v1381 = vsel %vm1379, %v1380, %v1378
        %v1382 = vrsqrt.pop %v1369
        %v1383 = vmul.f32 %v1382, %v1369
        %v1384 = vmul.f32 %v1383, %v1382
        %v1385 = vmul.f32 0.5, %v1384
        %v1386 = vsub.f32 1.5, %v1385
        %v1387 = vmul.f32 %v1382, %v1386
        %v1388 = vmul.f32 %v1369, %v1387
        %vm1389 = vcmp.eq.f32.partialorder %v1369, inf
        %v1390 = vsel %vm1389, %v1369, %v1388
        %vm1391 = vcmp.eq.f32.partialorder %v1369, 0.0
        %v1392 = vand.u32 %v1369, 2147483648
        %v1393 = vsel %vm1391, %v1392, %v1390
        %v1394 = vmul.f32 %v1381, %v1364
        %v1395 = vmul.f32 %v1393, %v1365
        %vm1396 = vcmp.ge.f32.partialorder %v1334, 0.0
        %vm1397 = vcmp.ge.f32.partialorder %v1335, 0.0
        %v1398 = vsub.f32 3.1415927, %v1394
        %v1399 = vsub.f32 3.1415927, %v1395
        %v1400 = vsel %vm1396, %v1394, %v1398
        %v1401 = vsel %vm1397, %v1395, %v1399
        %v1402 = vmul.f32 %v1268, %v977
        %v1403 = vmul.f32 %v1269, %v1012
        %v1404 = vmul.f32 %v1274, %v901
        %v1405 = vmul.f32 %v1275, %v936
        %v1406 = vsub.f32 %v1402, %v1404
        %v1407 = vsub.f32 %v1403, %v1405
        %v1408 = vmul.f32 %v1274, %v825
        %v1409 = vmul.f32 %v1275, %v860
        %v1410 = vmul.f32 %v1250, %v977
        %v1411 = vmul.f32 %v1251, %v1012
        %v1412 = vsub.f32 %v1408, %v1410
        %v1413 = vsub.f32 %v1409, %v1411
        %v1414 = vmul.f32 %v1250, %v901
        %v1415 = vmul.f32 %v1251, %v936
        %v1416 = vmul.f32 %v1268, %v825
        %v1417 = vmul.f32 %v1269, %v860
        %v1418 = vsub.f32 %v1414, %v1416
        %v1419 = vsub.f32 %v1415, %v1417
        %v1420 = vmul.f32 %v1406, %v1406
        %v1421 = vmul.f32 %v1407, %v1407
        %v1422 = vmul.f32 %v1412, %v1412
        %v1423 = vmul.f32 %v1413, %v1413
        %v1424 = vadd.f32 %v1420, %v1422
        %v1425 = vadd.f32 %v1421, %v1423
        %v1426 = vmul.f32 %v1418, %v1418
        %v1427 = vmul.f32 %v1419, %v1419
        %v1428 = vadd.f32 %v1424, %v1426
        %v1429 = vadd.f32 %v1425, %v1427
        %v1430 = vrsqrt.pop %v1428
        %v1431 = vmul.f32 %v1430, %v1428
        %v1432 = vmul.f32 %v1431, %v1430
        %v1433 = vmul.f32 0.5, %v1432
        %v1434 = vsub.f32 1.5, %v1433
        %v1435 = vmul.f32 %v1430, %v1434
        %vm1436 = vweird.f32 %v1428
        %vm1437 = vweird.f32 %v1430
        %vm1438 = vmor %vm1436, %vm1437
        %v1439 = vsel %vm1438, %v1430, %v1435
        %v1440 = vrsqrt.pop %v1429
        %v1441 = vmul.f32 %v1440, %v1429
        %v1442 = vmul.f32 %v1441, %v1440
        %v1443 = vmul.f32 0.5, %v1442
        %v1444 = vsub.f32 1.5, %v1443
        %v1445 = vmul.f32 %v1440, %v1444
        %vm1446 = vweird.f32 %v1429
        %vm1447 = vweird.f32 %v1440
        %vm1448 = vmor %vm1446, %vm1447
        %v1449 = vsel %vm1448, %v1440, %v1445
        %v1452 = vrot.slane %v1295, 1
        %v1453 = vrot.slane %v1305, 1
        %v1456 = vmul.f32 %v1295, %v1452
        %v1457 = vmul.f32 %v1305, %v1453
        %v1460 = vrot.slane %v1439, 1
        %v1461 = vrot.slane %v1449, 1
        %v1464 = vmul.f32 %v1295, %v1460
        %v1465 = vmul.f32 %v1305, %v1461
        %v1468 = vrot.slane %v1250, 1
        %v1469 = vrot.slane %v1251, 1
        %v1472 = vmul.f32 %v1250, %v1468
        %v1473 = vmul.f32 %v1251, %v1469
        %v1476 = vrot.slane %v1268, 1
        %v1477 = vrot.slane %v1269, 1
        %v1480 = vmul.f32 %v1268, %v1476
        %v1481 = vmul.f32 %v1269, %v1477
        %v1482 = vadd.f32 %v1472, %v1480
        %v1483 = vadd.f32 %v1473, %v1481
        %v1486 = vrot.slane %v1274, 1
        %v1487 = vrot.slane %v1275, 1
        %v1490 = vmul.f32 %v1274, %v1486
        %v1491 = vmul.f32 %v1275, %v1487
        %v1492 = vadd.f32 %v1482, %v1490
        %v1493 = vadd.f32 %v1483, %v1491
        %v1494 = vmul.f32 %v1492, %v1456
        %v1495 = vmul.f32 %v1493, %v1457
        %v1498 = vrot.slane %v1406, 1
        %v1499 = vrot.slane %v1407, 1
        %v1502 = vmul.f32 %v1250, %v1498
        %v1503 = vmul.f32 %v1251, %v1499
        %v1506 = vrot.slane %v1412, 1
        %v1507 = vrot.slane %v1413, 1
        %v1510 = vmul.f32 %v1268, %v1506
        %v1511 = vmul.f32 %v1269, %v1507
        %v1512 = vadd.f32 %v1502, %v1510
        %v1513 = vadd.f32 %v1503, %v1511
        %v1516 = vrot.slane %v1418, 1
        %v1517 = vrot.slane %v1419, 1
        %v1520 = vmul.f32 %v1274, %v1516
        %v1521 = vmul.f32 %v1275, %v1517
        %v1522 = vadd.f32 %v1512, %v1520
        %v1523 = vadd.f32 %v1513, %v1521
        %v1524 = vmul.f32 %v1522, %v1464
        %v1525 = vmul.f32 %v1523, %v1465
        %v1526 = vld [vmem:[%s7] sm:$0xff]
        %v1527 = vld [vmem:[%s7 + $0x8] sm:$0xff]
        %v1528 = vld [vmem:[%s7 + $0x10] sm:$0xff]
        %v1529 = vld [vmem:[%s7 + $0x18] sm:$0xff]
        %v1530 = vld [vmem:[%s8] sm:$0xff]
        %v1531 = vld [vmem:[%s8 + $0x8] sm:$0xff]
        %v1532 = vld [vmem:[%s8 + $0x10] sm:$0xff]
        %v1533 = vld [vmem:[%s8 + $0x18] sm:$0xff]
        %vm1534 = vcmask 56320
        %v1536 = vsel %vm1534, %v1530, 0
        %v1539 = vsel %vm1534, %v1531, 0
        %v1542 = vsel %vm1534, %v1532, 0
        %v1545 = vsel %vm1534, %v1533, 0
        %v1548 = vsel %vm1225, %v1494, 0
        %v1551 = vsel %vm1225, %v1495, 0
        %1553 = vmatpush.msra.mxu0 0.0
        %1554 = vmatpush.msra.mxu0 0.0
        %1555 = vmatpush.msra.mxu0 0.0
        %1556 = vmatpush.msra.mxu0 0.0
        %1557 = vmatpush.msra.mxu0 0.0
        %1558 = vmatpush.msra.mxu0 0.0
        %1559 = vmatpush.msra.mxu0 0.0
        %1560 = vmatpush.msra.mxu0 0.0
        %1561 = vmatpush.msra.mxu0 0.0
        %1562 = vmatpush.msra.mxu0 0.0
        %1563 = vmatpush.msra.mxu0 0.0
        %1564 = vmatpush.msra.mxu0 0.0
        %1565 = vmatpush.msra.mxu0 0.0
        %1566 = vmatpush.msra.mxu0 0.0
        %1567 = vmatpush.msra.mxu0 0.0
        %1568 = vmatpush.msra.mxu0 %v1548
        %1569 = vmatmul.f32.gmra.mxu0 %v1536
        %v1570 = vpop.f32.mrf.mxu0
        %v1571 = vadd.f32 0.0, %v1570
        %1572 = vmatmul.f32.gmra.mxu0 %v1539
        %v1573 = vpop.f32.mrf.mxu0
        %v1574 = vadd.f32 0.0, %v1573
        %1575 = vmatmul.f32.gmra.mxu0 %v1542
        %v1576 = vpop.f32.mrf.mxu0
        %v1577 = vadd.f32 0.0, %v1576
        %1578 = vmatmul.f32.gmra.mxu0 %v1545
        %v1579 = vpop.f32.mrf.mxu0
        %v1580 = vadd.f32 0.0, %v1579
        %1581 = vdwg.mxu0
        %1582 = vmatpush.msra.mxu0 0.0
        %1583 = vmatpush.msra.mxu0 0.0
        %1584 = vmatpush.msra.mxu0 0.0
        %1585 = vmatpush.msra.mxu0 0.0
        %1586 = vmatpush.msra.mxu0 0.0
        %1587 = vmatpush.msra.mxu0 0.0
        %1588 = vmatpush.msra.mxu0 0.0
        %1589 = vmatpush.msra.mxu0 0.0
        %1590 = vmatpush.msra.mxu0 0.0
        %1591 = vmatpush.msra.mxu0 0.0
        %1592 = vmatpush.msra.mxu0 0.0
        %1593 = vmatpush.msra.mxu0 0.0
        %1594 = vmatpush.msra.mxu0 0.0
        %1595 = vmatpush.msra.mxu0 0.0
        %1596 = vmatpush.msra.mxu0 0.0
        %1597 = vmatpush.msra.mxu0 %v1551
        %1598 = vmatmul.f32.gmra.mxu0 %v1536
        %v1599 = vpop.f32.mrf.mxu0
        %v1600 = vadd.f32 0.0, %v1599
        %1601 = vmatmul.f32.gmra.mxu0 %v1539
        %v1602 = vpop.f32.mrf.mxu0
        %v1603 = vadd.f32 0.0, %v1602
        %1604 = vmatmul.f32.gmra.mxu0 %v1542
        %v1605 = vpop.f32.mrf.mxu0
        %v1606 = vadd.f32 0.0, %v1605
        %1607 = vmatmul.f32.gmra.mxu0 %v1545
        %v1608 = vpop.f32.mrf.mxu0
        %v1609 = vadd.f32 0.0, %v1608
        %1610 = vdwg.mxu0
        %vm1611 = vcmask 367616
        %v1613 = vsel %vm1611, %v1526, 0
        %v1616 = vsel %vm1611, %v1527, 0
        %v1619 = vsel %vm1611, %v1528, 0
        %v1622 = vsel %vm1611, %v1529, 0
        %vm1624 = vcmask 1044480
        %v1626 = vsel %vm1624, %v1219, 0
        %v1629 = vsel %vm1624, %v1220, 0
        %1631 = vmatpush.msra.mxu0 0.0
        %1632 = vmatpush.msra.mxu0 0.0
        %1633 = vmatpush.msra.mxu0 0.0
        %1634 = vmatpush.msra.mxu0 0.0
        %1635 = vmatpush.msra.mxu0 0.0
        %1636 = vmatpush.msra.mxu0 0.0
        %1637 = vmatpush.msra.mxu0 0.0
        %1638 = vmatpush.msra.mxu0 0.0
        %1639 = vmatpush.msra.mxu0 0.0
        %1640 = vmatpush.msra.mxu0 0.0
        %1641 = vmatpush.msra.mxu0 %v1626
        %1642 = vmatpush.msra.mxu0 %v1217
        %1643 = vmatpush.msra.mxu0 %v1215
        %1644 = vmatpush.msra.mxu0 %v1213
        %1645 = vmatpush.msra.mxu0 %v1211
        %1646 = vmatpush.msra.mxu0 %v1209
        %1647 = vmatmul.f32.gmra.mxu0 %v1613
        %v1648 = vpop.f32.mrf.mxu0
        %v1649 = vadd.f32 %v1571, %v1648
        %1650 = vmatmul.f32.gmra.mxu0 %v1616
        %v1651 = vpop.f32.mrf.mxu0
        %v1652 = vadd.f32 %v1574, %v1651
        %1653 = vmatmul.f32.gmra.mxu0 %v1619
        %v1654 = vpop.f32.mrf.mxu0
        %v1655 = vadd.f32 %v1577, %v1654
        %1656 = vmatmul.f32.gmra.mxu0 %v1622
        %v1657 = vpop.f32.mrf.mxu0
        %v1658 = vadd.f32 %v1580, %v1657
        %1659 = vdwg.mxu0
        %1660 = vmatpush.msra.mxu0 0.0
        %1661 = vmatpush.msra.mxu0 0.0
        %1662 = vmatpush.msra.mxu0 0.0
        %1663 = vmatpush.msra.mxu0 0.0
        %1664 = vmatpush.msra.mxu0 0.0
        %1665 = vmatpush.msra.mxu0 0.0
        %1666 = vmatpush.msra.mxu0 0.0
        %1667 = vmatpush.msra.mxu0 0.0
        %1668 = vmatpush.msra.mxu0 0.0
        %1669 = vmatpush.msra.mxu0 0.0
        %1670 = vmatpush.msra.mxu0 %v1629
        %1671 = vmatpush.msra.mxu0 %v1218
        %1672 = vmatpush.msra.mxu0 %v1216
        %1673 = vmatpush.msra.mxu0 %v1214
        %1674 = vmatpush.msra.mxu0 %v1212
        %1675 = vmatpush.msra.mxu0 %v1210
        %1676 = vmatmul.f32.gmra.mxu0 %v1613
        %v1677 = vpop.f32.mrf.mxu0
        %v1678 = vadd.f32 %v1600, %v1677
        %1679 = vmatmul.f32.gmra.mxu0 %v1616
        %v1680 = vpop.f32.mrf.mxu0
        %v1681 = vadd.f32 %v1603, %v1680
        %1682 = vmatmul.f32.gmra.mxu0 %v1619
        %v1683 = vpop.f32.mrf.mxu0
        %v1684 = vadd.f32 %v1606, %v1683
        %1685 = vmatmul.f32.gmra.mxu0 %v1622
        %v1686 = vpop.f32.mrf.mxu0
        %v1687 = vadd.f32 %v1609, %v1686
        %1688 = vdwg.mxu0
        %v1689 = vld [vmem:[%s9] sm:$0xff]
        %v1690 = vld [vmem:[%s9 + $0x8] sm:$0xff]
        %v1691 = vld [vmem:[%s9 + $0x10] sm:$0xff]
        %v1692 = vld [vmem:[%s9 + $0x18] sm:$0xff]
        %v1694 = vsel %vm1534, %v1689, 0
        %v1697 = vsel %vm1534, %v1690, 0
        %v1700 = vsel %vm1534, %v1691, 0
        %v1703 = vsel %vm1534, %v1692, 0
        %v1706 = vsel %vm1225, %v1524, 0
        %v1709 = vsel %vm1225, %v1525, 0
        %1711 = vmatpush.msra.mxu0 0.0
        %1712 = vmatpush.msra.mxu0 0.0
        %1713 = vmatpush.msra.mxu0 0.0
        %1714 = vmatpush.msra.mxu0 0.0
        %1715 = vmatpush.msra.mxu0 0.0
        %1716 = vmatpush.msra.mxu0 0.0
        %1717 = vmatpush.msra.mxu0 0.0
        %1718 = vmatpush.msra.mxu0 0.0
        %1719 = vmatpush.msra.mxu0 0.0
        %1720 = vmatpush.msra.mxu0 0.0
        %1721 = vmatpush.msra.mxu0 0.0
        %1722 = vmatpush.msra.mxu0 0.0
        %1723 = vmatpush.msra.mxu0 0.0
        %1724 = vmatpush.msra.mxu0 0.0
        %1725 = vmatpush.msra.mxu0 0.0
        %1726 = vmatpush.msra.mxu0 %v1706
        %1727 = vmatmul.f32.gmra.mxu0 %v1694
        %v1728 = vpop.f32.mrf.mxu0
        %v1729 = vadd.f32 0.0, %v1728
        %1730 = vmatmul.f32.gmra.mxu0 %v1697
        %v1731 = vpop.f32.mrf.mxu0
        %v1732 = vadd.f32 0.0, %v1731
        %1733 = vmatmul.f32.gmra.mxu0 %v1700
        %v1734 = vpop.f32.mrf.mxu0
        %v1735 = vadd.f32 0.0, %v1734
        %1736 = vmatmul.f32.gmra.mxu0 %v1703
        %v1737 = vpop.f32.mrf.mxu0
        %v1738 = vadd.f32 0.0, %v1737
        %1739 = vdwg.mxu0
        %1740 = vmatpush.msra.mxu0 0.0
        %1741 = vmatpush.msra.mxu0 0.0
        %1742 = vmatpush.msra.mxu0 0.0
        %1743 = vmatpush.msra.mxu0 0.0
        %1744 = vmatpush.msra.mxu0 0.0
        %1745 = vmatpush.msra.mxu0 0.0
        %1746 = vmatpush.msra.mxu0 0.0
        %1747 = vmatpush.msra.mxu0 0.0
        %1748 = vmatpush.msra.mxu0 0.0
        %1749 = vmatpush.msra.mxu0 0.0
        %1750 = vmatpush.msra.mxu0 0.0
        %1751 = vmatpush.msra.mxu0 0.0
        %1752 = vmatpush.msra.mxu0 0.0
        %1753 = vmatpush.msra.mxu0 0.0
        %1754 = vmatpush.msra.mxu0 0.0
        %1755 = vmatpush.msra.mxu0 %v1709
        %1756 = vmatmul.f32.gmra.mxu0 %v1694
        %v1757 = vpop.f32.mrf.mxu0
        %v1758 = vadd.f32 0.0, %v1757
        %1759 = vmatmul.f32.gmra.mxu0 %v1697
        %v1760 = vpop.f32.mrf.mxu0
        %v1761 = vadd.f32 0.0, %v1760
        %1762 = vmatmul.f32.gmra.mxu0 %v1700
        %v1763 = vpop.f32.mrf.mxu0
        %v1764 = vadd.f32 0.0, %v1763
        %1765 = vmatmul.f32.gmra.mxu0 %v1703
        %v1766 = vpop.f32.mrf.mxu0
        %v1767 = vadd.f32 0.0, %v1766
        %1768 = vdwg.mxu0
        %v1769 = vadd.f32 %v1649, %v1729
        %v1770 = vadd.f32 %v1678, %v1758
        %v1771 = vadd.f32 %v1652, %v1732
        %v1772 = vadd.f32 %v1681, %v1761
        %v1773 = vadd.f32 %v1655, %v1735
        %v1774 = vadd.f32 %v1684, %v1764
        %v1775 = vadd.f32 %v1658, %v1738
        %v1776 = vadd.f32 %v1687, %v1767
        %v1777 = vld [vmem:[%s13] sm:$0xff]
        %v1778 = vld [vmem:[%s13 + $0x8] sm:$0xff]
        %v1779 = vld [vmem:[%s13 + $0x10] sm:$0xff]
        %v1780 = vld [vmem:[%s13 + $0x18] sm:$0xff]
        %1782 = vset.pattern.permute.xlu0 0
        %1783 = vperm.xlu0 %1782, %v1777
        %v1784 = vpop.permute.xlu0 %1783
        %1787 = vset.pattern.permute.xlu0 0
        %1788 = vperm.xlu0 %1787, %v1778
        %v1789 = vpop.permute.xlu0 %1788
        %1792 = vset.pattern.permute.xlu0 0
        %1793 = vperm.xlu0 %1792, %v1779
        %v1794 = vpop.permute.xlu0 %1793
        %1797 = vset.pattern.permute.xlu0 0
        %1798 = vperm.xlu0 %1797, %v1780
        %v1799 = vpop.permute.xlu0 %1798
        %v1801 = vadd.f32 %v1769, %v1784
        %v1802 = vadd.f32 %v1770, %v1784
        %v1803 = vadd.f32 %v1771, %v1789
        %v1804 = vadd.f32 %v1772, %v1789
        %v1805 = vadd.f32 %v1773, %v1794
        %v1806 = vadd.f32 %v1774, %v1794
        %v1807 = vadd.f32 %v1775, %v1799
        %v1808 = vadd.f32 %v1776, %v1799
        %v1809 = vld [vmem:[%s14] sm:$0xff]
        %v1810 = vld [vmem:[%s14 + $0x8] sm:$0xff]
        %v1811 = vld [vmem:[%s14 + $0x10] sm:$0xff]
        %v1812 = vld [vmem:[%s14 + $0x18] sm:$0xff]
        %v1813 = vld [vmem:[%s16] sm:$0xff]
        %v1814 = vld [vmem:[%s16 + $0x8] sm:$0xff]
        %v1815 = vld [vmem:[%s16 + $0x10] sm:$0xff]
        %v1816 = vld [vmem:[%s16 + $0x18] sm:$0xff]
        %1818 = vset.pattern.permute.xlu0 0
        %1819 = vperm.xlu0 %1818, %v1813
        %v1820 = vpop.permute.xlu0 %1819
        %1823 = vset.pattern.permute.xlu0 0
        %1824 = vperm.xlu0 %1823, %v1814
        %v1825 = vpop.permute.xlu0 %1824
        %1828 = vset.pattern.permute.xlu0 0
        %1829 = vperm.xlu0 %1828, %v1815
        %v1830 = vpop.permute.xlu0 %1829
        %1833 = vset.pattern.permute.xlu0 0
        %1834 = vperm.xlu0 %1833, %v1816
        %v1835 = vpop.permute.xlu0 %1834
        %vm1837 = vcmask 261120
        %v1839 = vsel %vm1837, %v1809, 0
        %v1842 = vsel %vm1837, %v1810, 0
        %v1845 = vsel %vm1837, %v1811, 0
        %v1848 = vsel %vm1837, %v1812, 0
        %1850 = vmatpush.msra.mxu0 0.0
        %1851 = vmatpush.msra.mxu0 0.0
        %1852 = vmatpush.msra.mxu0 0.0
        %1853 = vmatpush.msra.mxu0 0.0
        %1854 = vmatpush.msra.mxu0 0.0
        %1855 = vmatpush.msra.mxu0 0.0
        %1856 = vmatpush.msra.mxu0 0.0
        %1857 = vmatpush.msra.mxu0 0.0
        %1858 = vmatpush.msra.mxu0 0.0
        %1859 = vmatpush.msra.mxu0 0.0
        %1860 = vmatpush.msra.mxu0 0.0
        %1861 = vmatpush.msra.mxu0 0.0
        %1862 = vmatpush.msra.mxu0 %v1807
        %1863 = vmatpush.msra.mxu0 %v1805
        %1864 = vmatpush.msra.mxu0 %v1803
        %1865 = vmatpush.msra.mxu0 %v1801
        %1866 = vmatmul.f32.gmra.mxu0 %v1839
        %v1867 = vpop.f32.mrf.mxu0
        %v1868 = vadd.f32 %v1820, %v1867
        %1869 = vmatmul.f32.gmra.mxu0 %v1842
        %v1870 = vpop.f32.mrf.mxu0
        %v1871 = vadd.f32 %v1825, %v1870
        %1872 = vmatmul.f32.gmra.mxu0 %v1845
        %v1873 = vpop.f32.mrf.mxu0
        %v1874 = vadd.f32 %v1830, %v1873
        %1875 = vmatmul.f32.gmra.mxu0 %v1848
        %v1876 = vpop.f32.mrf.mxu0
        %v1877 = vadd.f32 %v1835, %v1876
        %1878 = vdwg.mxu0
        %1879 = vmatpush.msra.mxu0 0.0
        %1880 = vmatpush.msra.mxu0 0.0
        %1881 = vmatpush.msra.mxu0 0.0
        %1882 = vmatpush.msra.mxu0 0.0
        %1883 = vmatpush.msra.mxu0 0.0
        %1884 = vmatpush.msra.mxu0 0.0
        %1885 = vmatpush.msra.mxu0 0.0
        %1886 = vmatpush.msra.mxu0 0.0
        %1887 = vmatpush.msra.mxu0 0.0
        %1888 = vmatpush.msra.mxu0 0.0
        %1889 = vmatpush.msra.mxu0 0.0
        %1890 = vmatpush.msra.mxu0 0.0
        %1891 = vmatpush.msra.mxu0 %v1808
        %1892 = vmatpush.msra.mxu0 %v1806
        %1893 = vmatpush.msra.mxu0 %v1804
        %1894 = vmatpush.msra.mxu0 %v1802
        %1895 = vmatmul.f32.gmra.mxu0 %v1839
        %v1896 = vpop.f32.mrf.mxu0
        %v1897 = vadd.f32 %v1820, %v1896
        %1898 = vmatmul.f32.gmra.mxu0 %v1842
        %v1899 = vpop.f32.mrf.mxu0
        %v1900 = vadd.f32 %v1825, %v1899
        %1901 = vmatmul.f32.gmra.mxu0 %v1845
        %v1902 = vpop.f32.mrf.mxu0
        %v1903 = vadd.f32 %v1830, %v1902
        %1904 = vmatmul.f32.gmra.mxu0 %v1848
        %v1905 = vpop.f32.mrf.mxu0
        %v1906 = vadd.f32 %v1835, %v1905
        %1907 = vdwg.mxu0
        %v1908 = vtanh.pop %v1868
        %v1909 = vtanh.pop %v1897
        %v1910 = vtanh.pop %v1871
        %v1911 = vtanh.pop %v1900
        %v1912 = vtanh.pop %v1874
        %v1913 = vtanh.pop %v1903
        %v1914 = vtanh.pop %v1877
        %v1915 = vtanh.pop %v1906
        %v1916 = vld [vmem:[%s17] sm:$0x1]
        %v1917 = vld [vmem:[#allocation2] sm:$0x1]
        %1919 = vset.pattern.permute.xlu0 0
        %1920 = vperm.xlu0 %1919, %v1917
        %v1921 = vpop.permute.xlu0 %1920
        %v1923 = vperm.slane %v1921, 0
        %v1925 = vsel %vm1837, %v1916, 0
        %1927 = vmatpush.msra.mxu0 0.0
        %1928 = vmatpush.msra.mxu0 0.0
        %1929 = vmatpush.msra.mxu0 0.0
        %1930 = vmatpush.msra.mxu0 0.0
        %1931 = vmatpush.msra.mxu0 0.0
        %1932 = vmatpush.msra.mxu0 0.0
        %1933 = vmatpush.msra.mxu0 0.0
        %1934 = vmatpush.msra.mxu0 0.0
        %1935 = vmatpush.msra.mxu0 0.0
        %1936 = vmatpush.msra.mxu0 0.0
        %1937 = vmatpush.msra.mxu0 0.0
        %1938 = vmatpush.msra.mxu0 0.0
        %1939 = vmatpush.msra.mxu0 %v1914
        %1940 = vmatpush.msra.mxu0 %v1912
        %1941 = vmatpush.msra.mxu0 %v1910
        %1942 = vmatpush.msra.mxu0 %v1908
        %1943 = vmatmul.f32.gmra.mxu0 %v1925
        %v1944 = vpop.f32.mrf.mxu0
        %v1945 = vadd.f32 %v1923, %v1944
        %1946 = vdwg.mxu0
        %1947 = vmatpush.msra.mxu0 0.0
        %1948 = vmatpush.msra.mxu0 0.0
        %1949 = vmatpush.msra.mxu0 0.0
        %1950 = vmatpush.msra.mxu0 0.0
        %1951 = vmatpush.msra.mxu0 0.0
        %1952 = vmatpush.msra.mxu0 0.0
        %1953 = vmatpush.msra.mxu0 0.0
        %1954 = vmatpush.msra.mxu0 0.0
        %1955 = vmatpush.msra.mxu0 0.0
        %1956 = vmatpush.msra.mxu0 0.0
        %1957 = vmatpush.msra.mxu0 0.0
        %1958 = vmatpush.msra.mxu0 0.0
        %1959 = vmatpush.msra.mxu0 %v1915
        %1960 = vmatpush.msra.mxu0 %v1913
        %1961 = vmatpush.msra.mxu0 %v1911
        %1962 = vmatpush.msra.mxu0 %v1909
        %1963 = vmatmul.f32.gmra.mxu0 %v1925
        %v1964 = vpop.f32.mrf.mxu0
        %v1965 = vadd.f32 %v1923, %v1964
        %1966 = vdwg.mxu0
        %v1967 = vld [vmem:[%s20] sm:$0xff]
        %v1968 = vld [vmem:[%s20 + $0x8] sm:$0xff]
        %v1969 = vld [vmem:[%s20 + $0x10] sm:$0xff]
        %v1970 = vld [vmem:[%s20 + $0x18] sm:$0xff]
        %v1971 = vld [vmem:[%s20 + $0x20] sm:$0xff]
        %v1972 = vld [vmem:[%s20 + $0x28] sm:$0x1f]
        %v1973 = vld [vmem:[%s21] sm:$0xff]
        %1975 = vset.pattern.permute.xlu0 1
        %1976 = vperm.xlu0 %1975, %v1967
        %v1977 = vpop.permute.xlu0 %1976
        %1980 = vset.pattern.permute.xlu0 1
        %1981 = vperm.xlu0 %1980, %v1968
        %v1982 = vpop.permute.xlu0 %1981
        %1985 = vset.pattern.permute.xlu0 1
        %1986 = vperm.xlu0 %1985, %v1969
        %v1987 = vpop.permute.xlu0 %1986
        %1990 = vset.pattern.permute.xlu0 1
        %1991 = vperm.xlu0 %1990, %v1970
        %v1992 = vpop.permute.xlu0 %1991
        %1995 = vset.pattern.permute.xlu0 1
        %1996 = vperm.xlu0 %1995, %v1971
        %v1997 = vpop.permute.xlu0 %1996
        %2000 = vset.pattern.permute.xlu0 1
        %2001 = vperm.xlu0 %2000, %v1972
        %v2002 = vpop.permute.xlu0 %2001
        %v2004 = vsub.f32 %v1209, %v1977
        %v2005 = vsub.f32 %v1210, %v1977
        %v2006 = vsub.f32 %v1211, %v1982
        %v2007 = vsub.f32 %v1212, %v1982
        %v2008 = vsub.f32 %v1213, %v1987
        %v2009 = vsub.f32 %v1214, %v1987
        %v2010 = vsub.f32 %v1215, %v1992
        %v2011 = vsub.f32 %v1216, %v1992
        %v2012 = vsub.f32 %v1217, %v1997
        %v2013 = vsub.f32 %v1218, %v1997
        %v2014 = vsub.f32 %v1219, %v2002
        %v2015 = vsub.f32 %v1220, %v2002
        %2016 = vset.pattern.permute.xlu0 0
        %2017 = vperm.xlu0 %2016, %v1967
        %v2018 = vpop.permute.xlu0 %2017
        %2020 = vset.pattern.permute.xlu0 0
        %2021 = vperm.xlu0 %2020, %v1968
        %v2022 = vpop.permute.xlu0 %2021
        %2024 = vset.pattern.permute.xlu0 0
        %2025 = vperm.xlu0 %2024, %v1969
        %v2026 = vpop.permute.xlu0 %2025
        %2028 = vset.pattern.permute.xlu0 0
        %2029 = vperm.xlu0 %2028, %v1970
        %v2030 = vpop.permute.xlu0 %2029
        %2032 = vset.pattern.permute.xlu0 0
        %2033 = vperm.xlu0 %2032, %v1971
        %v2034 = vpop.permute.xlu0 %2033
        %2036 = vset.pattern.permute.xlu0 0
        %2037 = vperm.xlu0 %2036, %v1972
        %v2038 = vpop.permute.xlu0 %2037
        %v2040 = vmul.f32 %v2018, %v2004
        %v2041 = vmul.f32 %v2018, %v2005
        %v2042 = vmul.f32 %v2022, %v2006
        %v2043 = vmul.f32 %v2022, %v2007
        %v2044 = vmul.f32 %v2026, %v2008
        %v2045 = vmul.f32 %v2026, %v2009
        %v2046 = vmul.f32 %v2030, %v2010
        %v2047 = vmul.f32 %v2030, %v2011
        %v2048 = vmul.f32 %v2034, %v2012
        %v2049 = vmul.f32 %v2034, %v2013
        %v2050 = vmul.f32 %v2038, %v2014
        %v2051 = vmul.f32 %v2038, %v2015
        %v2052 = vmul.f32 %v1098, %v1098
        %v2053 = vmul.f32 %v1108, %v1108
        %v2054 = vmul.f32 %v1118, %v1118
        %v2055 = vmul.f32 %v1128, %v1128
        %v2056 = vmul.f32 %v1138, %v1138
        %v2057 = vmul.f32 %v1148, %v1148
        %v2058 = vmul.f32 %v1158, %v1158
        %v2059 = vmul.f32 %v1168, %v1168
        %v2060 = vmul.f32 %v1178, %v1178
        %v2061 = vmul.f32 %v1188, %v1188
        %v2062 = vmul.f32 %v1198, %v1198
        %v2063 = vmul.f32 %v1208, %v1208
        %2064 = vset.pattern.permute.xlu0 2
        %2065 = vperm.xlu0 %2064, %v1967
        %v2066 = vpop.permute.xlu0 %2065
        %2068 = vset.pattern.permute.xlu0 2
        %2069 = vperm.xlu0 %2068, %v1968
        %v2070 = vpop.permute.xlu0 %2069
        %2072 = vset.pattern.permute.xlu0 2
        %2073 = vperm.xlu0 %2072, %v1969
        %v2074 = vpop.permute.xlu0 %2073
        %2076 = vset.pattern.permute.xlu0 2
        %2077 = vperm.xlu0 %2076, %v1970
        %v2078 = vpop.permute.xlu0 %2077
        %2080 = vset.pattern.permute.xlu0 2
        %2081 = vperm.xlu0 %2080, %v1971
        %v2082 = vpop.permute.xlu0 %2081
        %2084 = vset.pattern.permute.xlu0 2
        %2085 = vperm.xlu0 %2084, %v1972
        %v2086 = vpop.permute.xlu0 %2085
        %v2088 = vmul.f32 %v2066, %v2052
        %v2089 = vmul.f32 %v2066, %v2053
        %v2090 = vmul.f32 %v2070, %v2054
        %v2091 = vmul.f32 %v2070, %v2055
        %v2092 = vmul.f32 %v2074, %v2056
        %v2093 = vmul.f32 %v2074, %v2057
        %v2094 = vmul.f32 %v2078, %v2058
        %v2095 = vmul.f32 %v2078, %v2059
        %v2096 = vmul.f32 %v2082, %v2060
        %v2097 = vmul.f32 %v2082, %v2061
        %v2098 = vmul.f32 %v2086, %v2062
        %v2099 = vmul.f32 %v2086, %v2063
        %v2100 = vmul.f32 %v2040, 0.5
        %v2101 = vmul.f32 %v2041, 0.5
        %v2102 = vmul.f32 %v2042, 0.5
        %v2103 = vmul.f32 %v2043, 0.5
        %v2104 = vmul.f32 %v2044, 0.5
        %v2105 = vmul.f32 %v2045, 0.5
        %v2106 = vmul.f32 %v2046, 0.5
        %v2107 = vmul.f32 %v2047, 0.5
        %v2108 = vmul.f32 %v2048, 0.5
        %v2109 = vmul.f32 %v2049, 0.5
        %v2110 = vmul.f32 %v2050, 0.5
        %v2111 = vmul.f32 %v2051, 0.5
        %v2112 = vmul.f32 %v2100, %v2004
        %v2113 = vmul.f32 %v2101, %v2005
        %v2114 = vmul.f32 %v2102, %v2006
        %v2115 = vmul.f32 %v2103, %v2007
        %v2116 = vmul.f32 %v2104, %v2008
        %v2117 = vmul.f32 %v2105, %v2009
        %v2118 = vmul.f32 %v2106, %v2010
        %v2119 = vmul.f32 %v2107, %v2011
        %v2120 = vmul.f32 %v2108, %v2012
        %v2121 = vmul.f32 %v2109, %v2013
        %v2122 = vmul.f32 %v2110, %v2014
        %v2123 = vmul.f32 %v2111, %v2015
        %v2124 = vadd.f32 %v2112, %v2088
        %v2125 = vadd.f32 %v2113, %v2089
        %v2126 = vadd.f32 %v2114, %v2090
        %v2127 = vadd.f32 %v2115, %v2091
        %v2128 = vadd.f32 %v2116, %v2092
        %v2129 = vadd.f32 %v2117, %v2093
        %v2130 = vadd.f32 %v2118, %v2094
        %v2131 = vadd.f32 %v2119, %v2095
        %v2132 = vadd.f32 %v2120, %v2096
        %v2133 = vadd.f32 %v2121, %v2097
        %v2134 = vadd.f32 %v2122, %v2098
        %v2135 = vadd.f32 %v2123, %v2099
        %2137 = vset.pattern.permute.xlu0 1
        %2138 = vperm.xlu0 %2137, %v1973
        %v2139 = vpop.permute.xlu0 %2138
        %v2141 = vsub.f32 %v1400, %v2139
        %v2142 = vsub.f32 %v1401, %v2139
        %2143 = vset.pattern.permute.xlu0 0
        %2144 = vperm.xlu0 %2143, %v1973
        %v2145 = vpop.permute.xlu0 %2144
        %v2147 = vmul.f32 %v2145, %v2141
        %v2148 = vmul.f32 %v2145, %v2142
        %v2149 = vld [vmem:[%s6] sm:$0x1]
        %v2151 = vsel %vm1611, %v2149, 0
        %v2154 = vsel %vm1624, %v2134, 0
        %v2157 = vsel %vm1624, %v2135, 0
        %2159 = vmatpush.msra.mxu0 0.0
        %2160 = vmatpush.msra.mxu0 0.0
        %2161 = vmatpush.msra.mxu0 0.0
        %2162 = vmatpush.msra.mxu0 0.0
        %2163 = vmatpush.msra.mxu0 0.0
        %2164 = vmatpush.msra.mxu0 0.0
        %2165 = vmatpush.msra.mxu0 0.0
        %2166 = vmatpush.msra.mxu0 0.0
        %2167 = vmatpush.msra.mxu0 0.0
        %2168 = vmatpush.msra.mxu0 0.0
        %2169 = vmatpush.msra.mxu0 %v2154
        %2170 = vmatpush.msra.mxu0 %v2132
        %2171 = vmatpush.msra.mxu0 %v2130
        %2172 = vmatpush.msra.mxu0 %v2128
        %2173 = vmatpush.msra.mxu0 %v2126
        %2174 = vmatpush.msra.mxu0 %v2124
        %2175 = vmatmul.f32.gmra.mxu0 %v2151
        %v2176 = vpop.f32.mrf.mxu0
        %v2177 = vadd.f32 0.0, %v2176
        %2178 = vdwg.mxu0
        %2179 = vmatpush.msra.mxu0 0.0
        %2180 = vmatpush.msra.mxu0 0.0
        %2181 = vmatpush.msra.mxu0 0.0
        %2182 = vmatpush.msra.mxu0 0.0
        %2183 = vmatpush.msra.mxu0 0.0
        %2184 = vmatpush.msra.mxu0 0.0
        %2185 = vmatpush.msra.mxu0 0.0
        %2186 = vmatpush.msra.mxu0 0.0
        %2187 = vmatpush.msra.mxu0 0.0
        %2188 = vmatpush.msra.mxu0 0.0
        %2189 = vmatpush.msra.mxu0 %v2157
        %2190 = vmatpush.msra.mxu0 %v2133
        %2191 = vmatpush.msra.mxu0 %v2131
        %2192 = vmatpush.msra.mxu0 %v2129
        %2193 = vmatpush.msra.mxu0 %v2127
        %2194 = vmatpush.msra.mxu0 %v2125
        %2195 = vmatmul.f32.gmra.mxu0 %v2151
        %v2196 = vpop.f32.mrf.mxu0
        %v2197 = vadd.f32 0.0, %v2196
        %2198 = vdwg.mxu0
        %v2199 = vadd.f32 %v1945, %v2177
        %v2200 = vadd.f32 %v1965, %v2197
        %v2201 = vmul.f32 %v2147, %v2141
        %v2202 = vmul.f32 %v2148, %v2142
        %v2203 = vrot.slane %v2201, 4
        %v2204 = vadd.f32 %v2201, %v2203
        %v2205 = vrot.slane %v2204, 2
        %v2206 = vadd.f32 %v2204, %v2205
        %v2207 = vrot.slane %v2206, 1
        %v2208 = vadd.f32 %v2206, %v2207
        %v2209 = vrot.slane %v2202, 4
        %v2210 = vadd.f32 %v2202, %v2209
        %v2211 = vrot.slane %v2210, 2
        %v2212 = vadd.f32 %v2210, %v2211
        %v2213 = vrot.slane %v2212, 1
        %v2214 = vadd.f32 %v2212, %v2213
        %v2215 = vmul.f32 %v2208, 0.5
        %v2216 = vmul.f32 %v2214, 0.5
        %v2217 = vadd.f32 %v2199, %v2215
        %v2218 = vadd.f32 %v2200, %v2216
        %v2221 = vrot.slane %v2218, 7
        %vm2222 = vcmask 1040384
        %v2223 = vsel %vm2222, %v2217, %v2221
        %v2225 = vlaneseq
        %vm2226 = vcmp.ge.s32.totalorder %v2225, 0
        %vm2227 = vcmp.lt.s32.totalorder %v2225, 256
        %vm2228 = vmand %vm2226, %vm2227
        %2229 = vst.msk [vmem:[%s753] sm:$0x3] %vm2228, %v2223
        %v2230 = vmul.f32 %v1908, %v1908
        %v2231 = vmul.f32 %v1909, %v1909
        %v2232 = vmul.f32 %v1910, %v1910
        %v2233 = vmul.f32 %v1911, %v1911
        %v2234 = vmul.f32 %v1912, %v1912
        %v2235 = vmul.f32 %v1913, %v1913
        %v2236 = vmul.f32 %v1914, %v1914
        %v2237 = vmul.f32 %v1915, %v1915
        %v2238 = vsub.f32 1.0, %v2230
        %v2239 = vsub.f32 1.0, %v2231
        %v2240 = vsub.f32 1.0, %v2232
        %v2241 = vsub.f32 1.0, %v2233
        %v2242 = vsub.f32 1.0, %v2234
        %v2243 = vsub.f32 1.0, %v2235
        %v2244 = vsub.f32 1.0, %v2236
        %v2245 = vsub.f32 1.0, %v2237
        %v2246 = vld [vmem:[%s18] sm:$0xff]
        %v2247 = vld [vmem:[%s18 + $0x8] sm:$0xff]
        %v2248 = vld [vmem:[%s18 + $0x10] sm:$0xff]
        %v2249 = vld [vmem:[%s18 + $0x18] sm:$0xff]
        %2251 = vset.pattern.permute.xlu0 0
        %2252 = vperm.xlu0 %2251, %v2246
        %v2253 = vpop.permute.xlu0 %2252
        %2256 = vset.pattern.permute.xlu0 0
        %2257 = vperm.xlu0 %2256, %v2247
        %v2258 = vpop.permute.xlu0 %2257
        %2261 = vset.pattern.permute.xlu0 0
        %2262 = vperm.xlu0 %2261, %v2248
        %v2263 = vpop.permute.xlu0 %2262
        %2266 = vset.pattern.permute.xlu0 0
        %2267 = vperm.xlu0 %2266, %v2249
        %v2268 = vpop.permute.xlu0 %2267
        %v2270 = vmul.f32 %v2238, %v2253
        %v2271 = vmul.f32 %v2239, %v2253
        %v2272 = vmul.f32 %v2240, %v2258
        %v2273 = vmul.f32 %v2241, %v2258
        %v2274 = vmul.f32 %v2242, %v2263
        %v2275 = vmul.f32 %v2243, %v2263
        %v2276 = vmul.f32 %v2244, %v2268
        %v2277 = vmul.f32 %v2245, %v2268
        %v2278 = vld [vmem:[%s15] sm:$0xff]
        %v2279 = vld [vmem:[%s15 + $0x8] sm:$0xff]
        %v2280 = vld [vmem:[%s15 + $0x10] sm:$0xff]
        %v2281 = vld [vmem:[%s15 + $0x18] sm:$0xff]
        %v2283 = vsel %vm1837, %v2278, 0
        %v2286 = vsel %vm1837, %v2279, 0
        %v2289 = vsel %vm1837, %v2280, 0
        %v2292 = vsel %vm1837, %v2281, 0
        %2294 = vmatpush.msra.mxu0 0.0
        %2295 = vmatpush.msra.mxu0 0.0
        %2296 = vmatpush.msra.mxu0 0.0
        %2297 = vmatpush.msra.mxu0 0.0
        %2298 = vmatpush.msra.mxu0 0.0
        %2299 = vmatpush.msra.mxu0 0.0
        %2300 = vmatpush.msra.mxu0 0.0
        %2301 = vmatpush.msra.mxu0 0.0
        %2302 = vmatpush.msra.mxu0 0.0
        %2303 = vmatpush.msra.mxu0 0.0
        %2304 = vmatpush.msra.mxu0 0.0
        %2305 = vmatpush.msra.mxu0 0.0
        %2306 = vmatpush.msra.mxu0 %v2276
        %2307 = vmatpush.msra.mxu0 %v2274
        %2308 = vmatpush.msra.mxu0 %v2272
        %2309 = vmatpush.msra.mxu0 %v2270
        %2310 = vmatmul.f32.gmra.mxu0 %v2283
        %v2311 = vpop.f32.mrf.mxu0
        %v2312 = vadd.f32 0.0, %v2311
        %2313 = vmatmul.f32.gmra.mxu0 %v2286
        %v2314 = vpop.f32.mrf.mxu0
        %v2315 = vadd.f32 0.0, %v2314
        %2316 = vmatmul.f32.gmra.mxu0 %v2289
        %v2317 = vpop.f32.mrf.mxu0
        %v2318 = vadd.f32 0.0, %v2317
        %2319 = vmatmul.f32.gmra.mxu0 %v2292
        %v2320 = vpop.f32.mrf.mxu0
        %v2321 = vadd.f32 0.0, %v2320
        %2322 = vdwg.mxu0
        %2323 = vmatpush.msra.mxu0 0.0
        %2324 = vmatpush.msra.mxu0 0.0
        %2325 = vmatpush.msra.mxu0 0.0
        %2326 = vmatpush.msra.mxu0 0.0
        %2327 = vmatpush.msra.mxu0 0.0
        %2328 = vmatpush.msra.mxu0 0.0
        %2329 = vmatpush.msra.mxu0 0.0
        %2330 = vmatpush.msra.mxu0 0.0
        %2331 = vmatpush.msra.mxu0 0.0
        %2332 = vmatpush.msra.mxu0 0.0
        %2333 = vmatpush.msra.mxu0 0.0
        %2334 = vmatpush.msra.mxu0 0.0
        %2335 = vmatpush.msra.mxu0 %v2277
        %2336 = vmatpush.msra.mxu0 %v2275
        %2337 = vmatpush.msra.mxu0 %v2273
        %2338 = vmatpush.msra.mxu0 %v2271
        %2339 = vmatmul.f32.gmra.mxu0 %v2283
        %v2340 = vpop.f32.mrf.mxu0
        %v2341 = vadd.f32 0.0, %v2340
        %2342 = vmatmul.f32.gmra.mxu0 %v2286
        %v2343 = vpop.f32.mrf.mxu0
        %v2344 = vadd.f32 0.0, %v2343
        %2345 = vmatmul.f32.gmra.mxu0 %v2289
        %v2346 = vpop.f32.mrf.mxu0
        %v2347 = vadd.f32 0.0, %v2346
        %2348 = vmatmul.f32.gmra.mxu0 %v2292
        %v2349 = vpop.f32.mrf.mxu0
        %v2350 = vadd.f32 0.0, %v2349
        %2351 = vdwg.mxu0
        %v2352 = vld [vmem:[%s10] sm:$0xff]
        %v2353 = vld [vmem:[%s10 + $0x8] sm:$0xff]
        %v2354 = vld [vmem:[%s10 + $0x10] sm:$0xff]
        %v2355 = vld [vmem:[%s10 + $0x18] sm:$0xff]
        %v2356 = vld [vmem:[%s10 + $0x20] sm:$0xff]
        %v2357 = vld [vmem:[%s10 + $0x28] sm:$0x1f]
        %v2358 = vld [vmem:[%s11] sm:$0x7f]
        %v2360 = vsel %vm1837, %v2358, 0
        %2362 = vmatpush.msra.mxu0 0.0
        %2363 = vmatpush.msra.mxu0 0.0
        %2364 = vmatpush.msra.mxu0 0.0
        %2365 = vmatpush.msra.mxu0 0.0
        %2366 = vmatpush.msra.mxu0 0.0
        %2367 = vmatpush.msra.mxu0 0.0
        %2368 = vmatpush.msra.mxu0 0.0
        %2369 = vmatpush.msra.mxu0 0.0
        %2370 = vmatpush.msra.mxu0 0.0
        %2371 = vmatpush.msra.mxu0 0.0
        %2372 = vmatpush.msra.mxu0 0.0
        %2373 = vmatpush.msra.mxu0 0.0
        %2374 = vmatpush.msra.mxu0 %v2321
        %2375 = vmatpush.msra.mxu0 %v2318
        %2376 = vmatpush.msra.mxu0 %v2315
        %2377 = vmatpush.msra.mxu0 %v2312
        %2378 = vmatmul.f32.gmra.mxu0 %v2360
        %v2379 = vpop.f32.mrf.mxu0
        %v2380 = vadd.f32 0.0, %v2379
        %2381 = vdwg.mxu0
        %2382 = vmatpush.msra.mxu0 0.0
        %2383 = vmatpush.msra.mxu0 0.0
        %2384 = vmatpush.msra.mxu0 0.0
        %2385 = vmatpush.msra.mxu0 0.0
        %2386 = vmatpush.msra.mxu0 0.0
        %2387 = vmatpush.msra.mxu0 0.0
        %2388 = vmatpush.msra.mxu0 0.0
        %2389 = vmatpush.msra.mxu0 0.0
        %2390 = vmatpush.msra.mxu0 0.0
        %2391 = vmatpush.msra.mxu0 0.0
        %2392 = vmatpush.msra.mxu0 0.0
        %2393 = vmatpush.msra.mxu0 0.0
        %2394 = vmatpush.msra.mxu0 %v2350
        %2395 = vmatpush.msra.mxu0 %v2347
        %2396 = vmatpush.msra.mxu0 %v2344
        %2397 = vmatpush.msra.mxu0 %v2341
        %2398 = vmatmul.f32.gmra.mxu0 %v2360
        %v2399 = vpop.f32.mrf.mxu0
        %v2400 = vadd.f32 0.0, %v2399
        %2401 = vdwg.mxu0
        %v2402 = vld [vmem:[%s12] sm:$0x7f]
        %v2404 = vsel %vm1837, %v2402, 0
        %2406 = vmatpush.msra.mxu0 0.0
        %2407 = vmatpush.msra.mxu0 0.0
        %2408 = vmatpush.msra.mxu0 0.0
        %2409 = vmatpush.msra.mxu0 0.0
        %2410 = vmatpush.msra.mxu0 0.0
        %2411 = vmatpush.msra.mxu0 0.0
        %2412 = vmatpush.msra.mxu0 0.0
        %2413 = vmatpush.msra.mxu0 0.0
        %2414 = vmatpush.msra.mxu0 0.0
        %2415 = vmatpush.msra.mxu0 0.0
        %2416 = vmatpush.msra.mxu0 0.0
        %2417 = vmatpush.msra.mxu0 0.0
        %2418 = vmatpush.msra.mxu0 %v2321
        %2419 = vmatpush.msra.mxu0 %v2318
        %2420 = vmatpush.msra.mxu0 %v2315
        %2421 = vmatpush.msra.mxu0 %v2312
        %2422 = vmatmul.f32.gmra.mxu0 %v2404
        %v2423 = vpop.f32.mrf.mxu0
        %v2424 = vadd.f32 0.0, %v2423
        %2425 = vdwg.mxu0
        %2426 = vmatpush.msra.mxu0 0.0
        %2427 = vmatpush.msra.mxu0 0.0
        %2428 = vmatpush.msra.mxu0 0.0
        %2429 = vmatpush.msra.mxu0 0.0
        %2430 = vmatpush.msra.mxu0 0.0
        %2431 = vmatpush.msra.mxu0 0.0
        %2432 = vmatpush.msra.mxu0 0.0
        %2433 = vmatpush.msra.mxu0 0.0
        %2434 = vmatpush.msra.mxu0 0.0
        %2435 = vmatpush.msra.mxu0 0.0
        %2436 = vmatpush.msra.mxu0 0.0
        %2437 = vmatpush.msra.mxu0 0.0
        %2438 = vmatpush.msra.mxu0 %v2350
        %2439 = vmatpush.msra.mxu0 %v2347
        %2440 = vmatpush.msra.mxu0 %v2344
        %2441 = vmatpush.msra.mxu0 %v2341
        %2442 = vmatmul.f32.gmra.mxu0 %v2404
        %v2443 = vpop.f32.mrf.mxu0
        %v2444 = vadd.f32 0.0, %v2443
        %2445 = vdwg.mxu0
        %v2447 = vsel %vm1837, %v2352, 0
        %v2450 = vsel %vm1837, %v2353, 0
        %v2453 = vsel %vm1837, %v2354, 0
        %v2456 = vsel %vm1837, %v2355, 0
        %v2459 = vsel %vm1837, %v2356, 0
        %v2462 = vsel %vm1837, %v2357, 0
        %2464 = vmatpush.msra.mxu0 0.0
        %2465 = vmatpush.msra.mxu0 0.0
        %2466 = vmatpush.msra.mxu0 0.0
        %2467 = vmatpush.msra.mxu0 0.0
        %2468 = vmatpush.msra.mxu0 0.0
        %2469 = vmatpush.msra.mxu0 0.0
        %2470 = vmatpush.msra.mxu0 0.0
        %2471 = vmatpush.msra.mxu0 0.0
        %2472 = vmatpush.msra.mxu0 0.0
        %2473 = vmatpush.msra.mxu0 0.0
        %2474 = vmatpush.msra.mxu0 0.0
        %2475 = vmatpush.msra.mxu0 0.0
        %2476 = vmatpush.msra.mxu0 %v2321
        %2477 = vmatpush.msra.mxu0 %v2318
        %2478 = vmatpush.msra.mxu0 %v2315
        %2479 = vmatpush.msra.mxu0 %v2312
        %2480 = vmatmul.f32.gmra.mxu0 %v2447
        %v2481 = vpop.f32.mrf.mxu0
        %v2482 = vadd.f32 %v2040, %v2481
        %2483 = vmatmul.f32.gmra.mxu0 %v2450
        %v2484 = vpop.f32.mrf.mxu0
        %v2485 = vadd.f32 %v2042, %v2484
        %2486 = vmatmul.f32.gmra.mxu0 %v2453
        %v2487 = vpop.f32.mrf.mxu0
        %v2488 = vadd.f32 %v2044, %v2487
        %2489 = vmatmul.f32.gmra.mxu0 %v2456
        %v2490 = vpop.f32.mrf.mxu0
        %v2491 = vadd.f32 %v2046, %v2490
        %2492 = vmatmul.f32.gmra.mxu0 %v2459
        %v2493 = vpop.f32.mrf.mxu0
        %v2494 = vadd.f32 %v2048, %v2493
        %2495 = vmatmul.f32.gmra.mxu0 %v2462
        %v2496 = vpop.f32.mrf.mxu0
        %v2497 = vadd.f32 %v2050, %v2496
        %2498 = vdwg.mxu0
        %2499 = vmatpush.msra.mxu0 0.0
        %2500 = vmatpush.msra.mxu0 0.0
        %2501 = vmatpush.msra.mxu0 0.0
        %2502 = vmatpush.msra.mxu0 0.0
        %2503 = vmatpush.msra.mxu0 0.0
        %2504 = vmatpush.msra.mxu0 0.0
        %2505 = vmatpush.msra.mxu0 0.0
        %2506 = vmatpush.msra.mxu0 0.0
        %2507 = vmatpush.msra.mxu0 0.0
        %2508 = vmatpush.msra.mxu0 0.0
        %2509 = vmatpush.msra.mxu0 0.0
        %2510 = vmatpush.msra.mxu0 0.0
        %2511 = vmatpush.msra.mxu0 %v2350
        %2512 = vmatpush.msra.mxu0 %v2347
        %2513 = vmatpush.msra.mxu0 %v2344
        %2514 = vmatpush.msra.mxu0 %v2341
        %2515 = vmatmul.f32.gmra.mxu0 %v2447
        %v2516 = vpop.f32.mrf.mxu0
        %v2517 = vadd.f32 %v2041, %v2516
        %2518 = vmatmul.f32.gmra.mxu0 %v2450
        %v2519 = vpop.f32.mrf.mxu0
        %v2520 = vadd.f32 %v2043, %v2519
        %2521 = vmatmul.f32.gmra.mxu0 %v2453
        %v2522 = vpop.f32.mrf.mxu0
        %v2523 = vadd.f32 %v2045, %v2522
        %2524 = vmatmul.f32.gmra.mxu0 %v2456
        %v2525 = vpop.f32.mrf.mxu0
        %v2526 = vadd.f32 %v2047, %v2525
        %2527 = vmatmul.f32.gmra.mxu0 %v2459
        %v2528 = vpop.f32.mrf.mxu0
        %v2529 = vadd.f32 %v2049, %v2528
        %2530 = vmatmul.f32.gmra.mxu0 %v2462
        %v2531 = vpop.f32.mrf.mxu0
        %v2532 = vadd.f32 %v2051, %v2531
        %2533 = vdwg.mxu0
        %v2534 = vmul.f32 %v2088, 2.0
        %v2535 = vmul.f32 %v2089, 2.0
        %v2536 = vmul.f32 %v2090, 2.0
        %v2537 = vmul.f32 %v2091, 2.0
        %v2538 = vmul.f32 %v2092, 2.0
        %v2539 = vmul.f32 %v2093, 2.0
        %v2540 = vmul.f32 %v2094, 2.0
        %v2541 = vmul.f32 %v2095, 2.0
        %v2542 = vmul.f32 %v2096, 2.0
        %v2543 = vmul.f32 %v2097, 2.0
        %v2544 = vmul.f32 %v2098, 2.0
        %v2545 = vmul.f32 %v2099, 2.0
        %v2546 = vmul.f32 %v2534, %v1098
        %v2547 = vmul.f32 %v2535, %v1108
        %v2548 = vmul.f32 %v2536, %v1118
        %v2549 = vmul.f32 %v2537, %v1128
        %v2550 = vmul.f32 %v2538, %v1138
        %v2551 = vmul.f32 %v2539, %v1148
        %v2552 = vmul.f32 %v2540, %v1158
        %v2553 = vmul.f32 %v2541, %v1168
        %v2554 = vmul.f32 %v2542, %v1178
        %v2555 = vmul.f32 %v2543, %v1188
        %v2556 = vmul.f32 %v2544, %v1198
        %v2557 = vmul.f32 %v2545, %v1208
        %v2558 = vsub.f32 %v2482, %v2546
        %v2559 = vsub.f32 %v2517, %v2547
        %v2560 = vsub.f32 %v2485, %v2548
        %v2561 = vsub.f32 %v2520, %v2549
        %v2562 = vsub.f32 %v2488, %v2550
        %v2563 = vsub.f32 %v2523, %v2551
        %v2564 = vsub.f32 %v2491, %v2552
        %v2565 = vsub.f32 %v2526, %v2553
        %v2566 = vsub.f32 %v2494, %v2554
        %v2567 = vsub.f32 %v2529, %v2555
        %v2568 = vsub.f32 %v2497, %v2556
        %v2569 = vsub.f32 %v2532, %v2557
        %v2570 = vmul.f32 %v2558, %v1098
        %v2571 = vmul.f32 %v2559, %v1108
        %v2572 = vmul.f32 %v2560, %v1118
        %v2573 = vmul.f32 %v2561, %v1128
        %v2574 = vmul.f32 %v2562, %v1138
        %v2575 = vmul.f32 %v2563, %v1148
        %v2576 = vmul.f32 %v2564, %v1158
        %v2577 = vmul.f32 %v2565, %v1168
        %v2578 = vmul.f32 %v2566, %v1178
        %v2579 = vmul.f32 %v2567, %v1188
        %v2580 = vmul.f32 %v2568, %v1198
        %v2581 = vmul.f32 %v2569, %v1208
        %v2582 = vmul.f32 %v2570, %v825
        %v2583 = vmul.f32 %v2571, %v860
        %v2584 = vmul.f32 %v2572, %v828
        %v2585 = vmul.f32 %v2573, %v863
        %v2586 = vmul.f32 %v2574, %v831
        %v2587 = vmul.f32 %v2575, %v866
        %v2588 = vmul.f32 %v2576, %v834
        %v2589 = vmul.f32 %v2577, %v869
        %v2590 = vmul.f32 %v2578, %v837
        %v2591 = vmul.f32 %v2579, %v872
        %v2592 = vmul.f32 %v2580, %v840
        %v2593 = vmul.f32 %v2581, %v875
        %v2594 = vmul.f32 %v2570, %v901
        %v2595 = vmul.f32 %v2571, %v936
        %v2596 = vmul.f32 %v2572, %v904
        %v2597 = vmul.f32 %v2573, %v939
        %v2598 = vmul.f32 %v2574, %v907
        %v2599 = vmul.f32 %v2575, %v942
        %v2600 = vmul.f32 %v2576, %v910
        %v2601 = vmul.f32 %v2577, %v945
        %v2602 = vmul.f32 %v2578, %v913
        %v2603 = vmul.f32 %v2579, %v948
        %v2604 = vmul.f32 %v2580, %v916
        %v2605 = vmul.f32 %v2581, %v951
        %v2606 = vmul.f32 %v2570, %v977
        %v2607 = vmul.f32 %v2571, %v1012
        %v2608 = vmul.f32 %v2572, %v980
        %v2609 = vmul.f32 %v2573, %v1015
        %v2610 = vmul.f32 %v2574, %v983
        %v2611 = vmul.f32 %v2575, %v1018
        %v2612 = vmul.f32 %v2576, %v986
        %v2613 = vmul.f32 %v2577, %v1021
        %v2614 = vmul.f32 %v2578, %v989
        %v2615 = vmul.f32 %v2579, %v1024
        %v2616 = vmul.f32 %v2580, %v992
        %v2617 = vmul.f32 %v2581, %v1027
        %v2618 = vmul.f32 %v2147, %v1209
        %v2619 = vmul.f32 %v2148, %v1210
        %v2624 = vrot.slane %v1209, 1
        %v2625 = vrot.slane %v1211, 1
        %v2626 = vsel %vm1225, %v2624, %v2625
        %v2627 = vrot.slane %v1210, 1
        %v2628 = vrot.slane %v1212, 1
        %v2629 = vsel %vm1225, %v2627, %v2628
        %v2632 = vmul.f32 %v2618, %v2626
        %v2633 = vmul.f32 %v2619, %v2629
        %v2634 = vsub.f32 0.0, %v2632
        %v2635 = vsub.f32 0.0, %v2633
        %v2636 = vmul.f32 %v2634, %v1295
        %v2637 = vmul.f32 %v2635, %v1305
        %v2640 = vrot.slane %v1318, 7
        %v2641 = vrot.slane %v1319, 7
        %v2644 = vmul.f32 %v825, %v2640
        %v2645 = vmul.f32 %v860, %v2641
        %v2646 = vmul.f32 %v828, %v2640
        %v2647 = vmul.f32 %v863, %v2641
        %v2648 = vmul.f32 %v1334, %v825
        %v2649 = vmul.f32 %v1335, %v860
        %v2650 = vmul.f32 %v2648, %v2052
        %v2651 = vmul.f32 %v2649, %v2053
        %v2654 = vrot.slane %v2650, 7
        %v2655 = vrot.slane %v2651, 7
        %v2658 = vsub.f32 %v2644, %v2654
        %v2659 = vsub.f32 %v2645, %v2655
        %v2660 = vsub.f32 %v2646, %v2654
        %v2661 = vsub.f32 %v2647, %v2655
        %v2666 = vrot.slane %v2658, 1
        %v2667 = vrot.slane %v2660, 1
        %v2668 = vsel %vm1225, %v2666, %v2667
        %v2669 = vrot.slane %v2659, 1
        %v2670 = vrot.slane %v2661, 1
        %v2671 = vsel %vm1225, %v2669, %v2670
        %v2674 = vmul.f32 %v2636, %v2668
        %v2675 = vmul.f32 %v2637, %v2671
        %v2676 = vmul.f32 %v901, %v2640
        %v2677 = vmul.f32 %v936, %v2641
        %v2678 = vmul.f32 %v904, %v2640
        %v2679 = vmul.f32 %v939, %v2641
        %v2680 = vmul.f32 %v1334, %v901
        %v2681 = vmul.f32 %v1335, %v936
        %v2682 = vmul.f32 %v2680, %v2052
        %v2683 = vmul.f32 %v2681, %v2053
        %v2686 = vrot.slane %v2682, 7
        %v2687 = vrot.slane %v2683, 7
        %v2690 = vsub.f32 %v2676, %v2686
        %v2691 = vsub.f32 %v2677, %v2687
        %v2692 = vsub.f32 %v2678, %v2686
        %v2693 = vsub.f32 %v2679, %v2687
        %v2698 = vrot.slane %v2690, 1
        %v2699 = vrot.slane %v2692, 1
        %v2700 = vsel %vm1225, %v2698, %v2699
        %v2701 = vrot.slane %v2691, 1
        %v2702 = vrot.slane %v2693, 1
        %v2703 = vsel %vm1225, %v2701, %v2702
        %v2706 = vmul.f32 %v2636, %v2700
        %v2707 = vmul.f32 %v2637, %v2703
        %v2708 = vmul.f32 %v977, %v2640
        %v2709 = vmul.f32 %v1012, %v2641
        %v2710 = vmul.f32 %v980, %v2640
        %v2711 = vmul.f32 %v1015, %v2641
        %v2712 = vmul.f32 %v1334, %v977
        %v2713 = vmul.f32 %v1335, %v1012
        %v2714 = vmul.f32 %v2712, %v2052
        %v2715 = vmul.f32 %v2713, %v2053
        %v2718 = vrot.slane %v2714, 7
        %v2719 = vrot.slane %v2715, 7
        %v2722 = vsub.f32 %v2708, %v2718
        %v2723 = vsub.f32 %v2709, %v2719
        %v2724 = vsub.f32 %v2710, %v2718
        %v2725 = vsub.f32 %v2711, %v2719
        %v2730 = vrot.slane %v2722, 1
        %v2731 = vrot.slane %v2724, 1
        %v2732 = vsel %vm1225, %v2730, %v2731
        %v2733 = vrot.slane %v2723, 1
        %v2734 = vrot.slane %v2725, 1
        %v2735 = vsel %vm1225, %v2733, %v2734
        %v2738 = vmul.f32 %v2636, %v2732
        %v2739 = vmul.f32 %v2637, %v2735
        %v2740 = vmul.f32 %v825, %v1318
        %v2741 = vmul.f32 %v860, %v1319
        %v2742 = vmul.f32 %v1334, %v1258
        %v2743 = vmul.f32 %v1335, %v1261
        %v2748 = vrot.slane %v2052, 1
        %v2749 = vrot.slane %v2054, 1
        %v2750 = vsel %vm1225, %v2748, %v2749
        %v2751 = vrot.slane %v2053, 1
        %v2752 = vrot.slane %v2055, 1
        %v2753 = vsel %vm1225, %v2751, %v2752
        %v2756 = vmul.f32 %v2742, %v2750
        %v2757 = vmul.f32 %v2743, %v2753
        %v2758 = vsub.f32 %v2740, %v2756
        %v2759 = vsub.f32 %v2741, %v2757
        %v2760 = vmul.f32 %v2636, %v2758
        %v2761 = vmul.f32 %v2637, %v2759
        %v2762 = vmul.f32 %v901, %v1318
        %v2763 = vmul.f32 %v936, %v1319
        %v2764 = vmul.f32 %v1334, %v1242
        %v2765 = vmul.f32 %v1335, %v1245
        %v2766 = vmul.f32 %v2764, %v2750
        %v2767 = vmul.f32 %v2765, %v2753
        %v2768 = vsub.f32 %v2762, %v2766
        %v2769 = vsub.f32 %v2763, %v2767
        %v2770 = vmul.f32 %v2636, %v2768
        %v2771 = vmul.f32 %v2637, %v2769
        %v2772 = vmul.f32 %v977, %v1318
        %v2773 = vmul.f32 %v1012, %v1319
        %v2774 = vmul.f32 %v1334, %v1228
        %v2775 = vmul.f32 %v1335, %v1231
        %v2776 = vmul.f32 %v2774, %v2750
        %v2777 = vmul.f32 %v2775, %v2753
        %v2778 = vsub.f32 %v2772, %v2776
        %v2779 = vsub.f32 %v2773, %v2777
        %v2780 = vmul.f32 %v2636, %v2778
        %v2781 = vmul.f32 %v2637, %v2779
        %v2782 = vmul.f32 %v1295, %v1295
        %v2783 = vmul.f32 %v1305, %v1305
        %v2786 = vrot.slane %v1456, 7
        %v2787 = vrot.slane %v1457, 7
        %v2790 = vmul.f32 %v1250, %v2786
        %v2791 = vmul.f32 %v1251, %v2787
        %v2792 = vmul.f32 %v1494, %v1250
        %v2793 = vmul.f32 %v1495, %v1251
        %v2794 = vmul.f32 %v2792, %v2782
        %v2795 = vmul.f32 %v2793, %v2783
        %v2798 = vrot.slane %v2794, 7
        %v2799 = vrot.slane %v2795, 7
        %v2802 = vsub.f32 %v2790, %v2798
        %v2803 = vsub.f32 %v2791, %v2799
        %v2806 = vrot.slane %v2802, 1
        %v2807 = vrot.slane %v2803, 1
        %v2810 = vmul.f32 %v2380, %v2806
        %v2811 = vmul.f32 %v2400, %v2807
        %v2812 = vmul.f32 %v1268, %v2786
        %v2813 = vmul.f32 %v1269, %v2787
        %v2814 = vmul.f32 %v1494, %v1268
        %v2815 = vmul.f32 %v1495, %v1269
        %v2816 = vmul.f32 %v2814, %v2782
        %v2817 = vmul.f32 %v2815, %v2783
        %v2820 = vrot.slane %v2816, 7
        %v2821 = vrot.slane %v2817, 7
        %v2824 = vsub.f32 %v2812, %v2820
        %v2825 = vsub.f32 %v2813, %v2821
        %v2828 = vrot.slane %v2824, 1
        %v2829 = vrot.slane %v2825, 1
        %v2832 = vmul.f32 %v2380, %v2828
        %v2833 = vmul.f32 %v2400, %v2829
        %v2834 = vmul.f32 %v1274, %v2786
        %v2835 = vmul.f32 %v1275, %v2787
        %v2836 = vmul.f32 %v1494, %v1274
        %v2837 = vmul.f32 %v1495, %v1275
        %v2838 = vmul.f32 %v2836, %v2782
        %v2839 = vmul.f32 %v2837, %v2783
        %v2842 = vrot.slane %v2838, 7
        %v2843 = vrot.slane %v2839, 7
        %v2846 = vsub.f32 %v2834, %v2842
        %v2847 = vsub.f32 %v2835, %v2843
        %v2850 = vrot.slane %v2846, 1
        %v2851 = vrot.slane %v2847, 1
        %v2854 = vmul.f32 %v2380, %v2850
        %v2855 = vmul.f32 %v2400, %v2851
        %v2856 = vmul.f32 %v1250, %v1456
        %v2857 = vmul.f32 %v1251, %v1457
        %v2858 = vmul.f32 %v1494, %v1468
        %v2859 = vmul.f32 %v1495, %v1469
        %v2862 = vrot.slane %v2782, 1
        %v2863 = vrot.slane %v2783, 1
        %v2866 = vmul.f32 %v2858, %v2862
        %v2867 = vmul.f32 %v2859, %v2863
        %v2868 = vsub.f32 %v2856, %v2866
        %v2869 = vsub.f32 %v2857, %v2867
        %v2870 = vmul.f32 %v2380, %v2868
        %v2871 = vmul.f32 %v2400, %v2869
        %v2872 = vmul.f32 %v1268, %v1456
        %v2873 = vmul.f32 %v1269, %v1457
        %v2874 = vmul.f32 %v1494, %v1476
        %v2875 = vmul.f32 %v1495, %v1477
        %v2876 = vmul.f32 %v2874, %v2862
        %v2877 = vmul.f32 %v2875, %v2863
        %v2878 = vsub.f32 %v2872, %v2876
        %v2879 = vsub.f32 %v2873, %v2877
        %v2880 = vmul.f32 %v2380, %v2878
        %v2881 = vmul.f32 %v2400, %v2879
        %v2882 = vmul.f32 %v1274, %v1456
        %v2883 = vmul.f32 %v1275, %v1457
        %v2884 = vmul.f32 %v1494, %v1486
        %v2885 = vmul.f32 %v1495, %v1487
        %v2886 = vmul.f32 %v2884, %v2862
        %v2887 = vmul.f32 %v2885, %v2863
        %v2888 = vsub.f32 %v2882, %v2886
        %v2889 = vsub.f32 %v2883, %v2887
        %v2890 = vmul.f32 %v2380, %v2888
        %v2891 = vmul.f32 %v2400, %v2889
        %v2892 = vmul.f32 %v1439, %v1439
        %v2893 = vmul.f32 %v1449, %v1449
        %v2896 = vrot.slane %v1464, 7
        %v2897 = vrot.slane %v1465, 7
        %v2900 = vmul.f32 %v1406, %v2896
        %v2901 = vmul.f32 %v1407, %v2897
        %v2902 = vmul.f32 %v1524, %v1250
        %v2903 = vmul.f32 %v1525, %v1251
        %v2904 = vmul.f32 %v2902, %v2782
        %v2905 = vmul.f32 %v2903, %v2783
        %v2908 = vrot.slane %v2904, 7
        %v2909 = vrot.slane %v2905, 7
        %v2912 = vsub.f32 %v2900, %v2908
        %v2913 = vsub.f32 %v2901, %v2909
        %v2916 = vrot.slane %v2912, 1
        %v2917 = vrot.slane %v2913, 1
        %v2920 = vmul.f32 %v2424, %v2916
        %v2921 = vmul.f32 %v2444, %v2917
        %v2922 = vmul.f32 %v1412, %v2896
        %v2923 = vmul.f32 %v1413, %v2897
        %v2924 = vmul.f32 %v1524, %v1268
        %v2925 = vmul.f32 %v1525, %v1269
        %v2926 = vmul.f32 %v2924, %v2782
        %v2927 = vmul.f32 %v2925, %v2783
        %v2930 = vrot.slane %v2926, 7
        %v2931 = vrot.slane %v2927, 7
        %v2934 = vsub.f32 %v2922, %v2930
        %v2935 = vsub.f32 %v2923, %v2931
        %v2938 = vrot.slane %v2934, 1
        %v2939 = vrot.slane %v2935, 1
        %v2942 = vmul.f32 %v2424, %v2938
        %v2943 = vmul.f32 %v2444, %v2939
        %v2944 = vmul.f32 %v1418, %v2896
        %v2945 = vmul.f32 %v1419, %v2897
        %v2946 = vmul.f32 %v1524, %v1274
        %v2947 = vmul.f32 %v1525, %v1275
        %v2948 = vmul.f32 %v2946, %v2782
        %v2949 = vmul.f32 %v2947, %v2783
        %v2952 = vrot.slane %v2948, 7
        %v2953 = vrot.slane %v2949, 7
        %v2956 = vsub.f32 %v2944, %v2952
        %v2957 = vsub.f32 %v2945, %v2953
        %v2960 = vrot.slane %v2956, 1
        %v2961 = vrot.slane %v2957, 1
        %v2964 = vmul.f32 %v2424, %v2960
        %v2965 = vmul.f32 %v2444, %v2961
        %v2966 = vmul.f32 %v1250, %v1464
        %v2967 = vmul.f32 %v1251, %v1465
        %v2968 = vmul.f32 %v1524, %v1498
        %v2969 = vmul.f32 %v1525, %v1499
        %v2972 = vrot.slane %v2892, 1
        %v2973 = vrot.slane %v2893, 1
        %v2976 = vmul.f32 %v2968, %v2972
        %v2977 = vmul.f32 %v2969, %v2973
        %v2978 = vsub.f32 %v2966, %v2976
        %v2979 = vsub.f32 %v2967, %v2977
        %v2980 = vmul.f32 %v2424, %v2978
        %v2981 = vmul.f32 %v2444, %v2979
        %v2982 = vmul.f32 %v1268, %v1464
        %v2983 = vmul.f32 %v1269, %v1465
        %v2984 = vmul.f32 %v1524, %v1506
        %v2985 = vmul.f32 %v1525, %v1507
        %v2986 = vmul.f32 %v2984, %v2972
        %v2987 = vmul.f32 %v2985, %v2973
        %v2988 = vsub.f32 %v2982, %v2986
        %v2989 = vsub.f32 %v2983, %v2987
        %v2990 = vmul.f32 %v2424, %v2988
        %v2991 = vmul.f32 %v2444, %v2989
        %v2992 = vmul.f32 %v1274, %v1464
        %v2993 = vmul.f32 %v1275, %v1465
        %v2994 = vmul.f32 %v1524, %v1516
        %v2995 = vmul.f32 %v1525, %v1517
        %v2996 = vmul.f32 %v2994, %v2972
        %v2997 = vmul.f32 %v2995, %v2973
        %v2998 = vsub.f32 %v2992, %v2996
        %v2999 = vsub.f32 %v2993, %v2997
        %v3000 = vmul.f32 %v2424, %v2998
        %v3001 = vmul.f32 %v2444, %v2999
        %v3004 = vrot.slane %v3000, 7
        %v3005 = vrot.slane %v3001, 7
        %v3008 = vmul.f32 %v901, %v3004
        %v3009 = vmul.f32 %v936, %v3005
        %v3012 = vrot.slane %v2990, 7
        %v3013 = vrot.slane %v2991, 7
        %v3016 = vmul.f32 %v977, %v3012
        %v3017 = vmul.f32 %v1012, %v3013
        %v3018 = vsub.f32 %v3008, %v3016
        %v3019 = vsub.f32 %v3009, %v3017
        %v3022 = vrot.slane %v2980, 7
        %v3023 = vrot.slane %v2981, 7
        %v3026 = vmul.f32 %v977, %v3022
        %v3027 = vmul.f32 %v1012, %v3023
        %v3028 = vmul.f32 %v825, %v3004
        %v3029 = vmul.f32 %v860, %v3005
        %v3030 = vsub.f32 %v3026, %v3028
        %v3031 = vsub.f32 %v3027, %v3029
        %v3032 = vmul.f32 %v825, %v3012
        %v3033 = vmul.f32 %v860, %v3013
        %v3034 = vmul.f32 %v901, %v3022
        %v3035 = vmul.f32 %v936, %v3023
        %v3036 = vsub.f32 %v3032, %v3034
        %v3037 = vsub.f32 %v3033, %v3035
        %v3038 = vmul.f32 %v2990, %v1486
        %v3039 = vmul.f32 %v2991, %v1487
        %v3040 = vmul.f32 %v3000, %v1476
        %v3041 = vmul.f32 %v3001, %v1477
        %v3042 = vsub.f32 %v3038, %v3040
        %v3043 = vsub.f32 %v3039, %v3041
        %v3044 = vmul.f32 %v3000, %v1468
        %v3045 = vmul.f32 %v3001, %v1469
        %v3046 = vmul.f32 %v2980, %v1486
        %v3047 = vmul.f32 %v2981, %v1487
        %v3048 = vsub.f32 %v3044, %v3046
        %v3049 = vsub.f32 %v3045, %v3047
        %v3050 = vmul.f32 %v2980, %v1476
        %v3051 = vmul.f32 %v2981, %v1477
        %v3052 = vmul.f32 %v2990, %v1468
        %v3053 = vmul.f32 %v2991, %v1469
        %v3054 = vsub.f32 %v3050, %v3052
        %v3055 = vsub.f32 %v3051, %v3053
        %v3056 = vadd.f32 %v2810, %v2920
        %v3057 = vadd.f32 %v2811, %v2921
        %v3058 = vsel %vm1225, %v3056, 0.0
        %v3059 = vsel %vm1225, %v3057, 0.0
        %v3062 = vrot.slane %v3018, 1
        %v3063 = vrot.slane %v3019, 1
        %v3066 = vadd.f32 %v2870, %v3062
        %v3067 = vadd.f32 %v2871, %v3063
        %v3070 = vrot.slane %v3066, 7
        %v3071 = vrot.slane %v3067, 7
        %v3074 = vsel %vm2222, 0.0, %v3070
        %v3075 = vsel %vm2222, 0.0, %v3071
        %v3076 = vadd.f32 %v3058, %v3074
        %v3077 = vadd.f32 %v3059, %v3075
        %v3078 = vadd.f32 %v2832, %v2942
        %v3079 = vadd.f32 %v2833, %v2943
        %v3080 = vsel %vm1225, %v3078, 0.0
        %v3081 = vsel %vm1225, %v3079, 0.0
        %v3084 = vrot.slane %v3030, 1
        %v3085 = vrot.slane %v3031, 1
        %v3088 = vadd.f32 %v2880, %v3084
        %v3089 = vadd.f32 %v2881, %v3085
        %v3092 = vrot.slane %v3088, 7
        %v3093 = vrot.slane %v3089, 7
        %v3096 = vsel %vm2222, 0.0, %v3092
        %v3097 = vsel %vm2222, 0.0, %v3093
        %v3098 = vadd.f32 %v3080, %v3096
        %v3099 = vadd.f32 %v3081, %v3097
        %v3100 = vadd.f32 %v2854, %v2964
        %v3101 = vadd.f32 %v2855, %v2965
        %v3102 = vsel %vm1225, %v3100, 0.0
        %v3103 = vsel %vm1225, %v3101, 0.0
        %v3106 = vrot.slane %v3036, 1
        %v3107 = vrot.slane %v3037, 1
        %v3110 = vadd.f32 %v2890, %v3106
        %v3111 = vadd.f32 %v2891, %v3107
        %v3114 = vrot.slane %v3110, 7
        %v3115 = vrot.slane %v3111, 7
        %v3118 = vsel %vm2222, 0.0, %v3114
        %v3119 = vsel %vm2222, 0.0, %v3115
        %v3120 = vadd.f32 %v3102, %v3118
        %v3121 = vadd.f32 %v3103, %v3119
        %v3124 = vrot.slane %v3120, 7
        %v3125 = vrot.slane %v3121, 7
        %v3128 = vmul.f32 %v901, %v3124
        %v3129 = vmul.f32 %v936, %v3125
        %v3130 = vmul.f32 %v904, %v3124
        %v3131 = vmul.f32 %v939, %v3125
        %v3134 = vrot.slane %v3098, 7
        %v3135 = vrot.slane %v3099, 7
        %v3138 = vmul.f32 %v977, %v3134
        %v3139 = vmul.f32 %v1012, %v3135
        %v3140 = vmul.f32 %v980, %v3134
        %v3141 = vmul.f32 %v1015, %v3135
        %v3142 = vsub.f32 %v3128, %v3138
        %v3143 = vsub.f32 %v3129, %v3139
        %v3144 = vsub.f32 %v3130, %v3140
        %v3145 = vsub.f32 %v3131, %v3141
        %v3148 = vrot.slane %v3076, 7
        %v3149 = vrot.slane %v3077, 7
        %v3152 = vmul.f32 %v977, %v3148
        %v3153 = vmul.f32 %v1012, %v3149
        %v3154 = vmul.f32 %v980, %v3148
        %v3155 = vmul.f32 %v1015, %v3149
        %v3156 = vmul.f32 %v825, %v3124
        %v3157 = vmul.f32 %v860, %v3125
        %v3158 = vmul.f32 %v828, %v3124
        %v3159 = vmul.f32 %v863, %v3125
        %v3160 = vsub.f32 %v3152, %v3156
        %v3161 = vsub.f32 %v3153, %v3157
        %v3162 = vsub.f32 %v3154, %v3158
        %v3163 = vsub.f32 %v3155, %v3159
        %v3164 = vmul.f32 %v825, %v3134
        %v3165 = vmul.f32 %v860, %v3135
        %v3166 = vmul.f32 %v828, %v3134
        %v3167 = vmul.f32 %v863, %v3135
        %v3168 = vmul.f32 %v901, %v3148
        %v3169 = vmul.f32 %v936, %v3149
        %v3170 = vmul.f32 %v904, %v3148
        %v3171 = vmul.f32 %v939, %v3149
        %v3172 = vsub.f32 %v3164, %v3168
        %v3173 = vsub.f32 %v3165, %v3169
        %v3174 = vsub.f32 %v3166, %v3170
        %v3175 = vsub.f32 %v3167, %v3171
        %v3176 = vmul.f32 %v3098, %v977
        %v3177 = vmul.f32 %v3099, %v1012
        %v3178 = vmul.f32 %v3120, %v901
        %v3179 = vmul.f32 %v3121, %v936
        %v3180 = vsub.f32 %v3176, %v3178
        %v3181 = vsub.f32 %v3177, %v3179
        %v3182 = vmul.f32 %v3120, %v825
        %v3183 = vmul.f32 %v3121, %v860
        %v3184 = vmul.f32 %v3076, %v977
        %v3185 = vmul.f32 %v3077, %v1012
        %v3186 = vsub.f32 %v3182, %v3184
        %v3187 = vsub.f32 %v3183, %v3185
        %v3188 = vmul.f32 %v3076, %v901
        %v3189 = vmul.f32 %v3077, %v936
        %v3190 = vmul.f32 %v3098, %v825
        %v3191 = vmul.f32 %v3099, %v860
        %v3192 = vsub.f32 %v3188, %v3190
        %v3193 = vsub.f32 %v3189, %v3191
        %v3194 = vld [vmem:[%s2] sm:$0xff]
        %v3195 = vld [vmem:[%s2 + $0x8] sm:$0x3]
        %v3196 = vld [vmem:[%s3] sm:$0xff]
        %v3197 = vld [vmem:[%s3 + $0x8] sm:$0x3]
        %v3198 = vld [vmem:[%s4] sm:$0xff]
        %v3199 = vld [vmem:[%s4 + $0x8] sm:$0x3]
        %v3200 = vld [vmem:[%s5] sm:$0xff]
        %v3201 = vld [vmem:[%s5 + $0x8] sm:$0x3]
        %v3206 = vrot.slane %v3142, 1
        %v3207 = vrot.slane %v3144, 1
        %v3208 = vsel %vm1225, %v3206, %v3207
        %v3209 = vrot.slane %v3143, 1
        %v3210 = vrot.slane %v3145, 1
        %v3211 = vsel %vm1225, %v3209, %v3210
        %v3214 = vadd.f32 %v2674, %v3208
        %v3215 = vadd.f32 %v2675, %v3211
        %vm3216 = vcmask 64512
        %v3218 = vsel %vm3216, %v3196, 0
        %v3221 = vsel %vm3216, %v3197, 0
        %3223 = vmatpush.msra.mxu0 0.0
        %3224 = vmatpush.msra.mxu0 0.0
        %3225 = vmatpush.msra.mxu0 0.0
        %3226 = vmatpush.msra.mxu0 0.0
        %3227 = vmatpush.msra.mxu0 0.0
        %3228 = vmatpush.msra.mxu0 0.0
        %3229 = vmatpush.msra.mxu0 0.0
        %3230 = vmatpush.msra.mxu0 0.0
        %3231 = vmatpush.msra.mxu0 0.0
        %3232 = vmatpush.msra.mxu0 0.0
        %3233 = vmatpush.msra.mxu0 0.0
        %3234 = vmatpush.msra.mxu0 0.0
        %3235 = vmatpush.msra.mxu0 0.0
        %3236 = vmatpush.msra.mxu0 0.0
        %3237 = vmatpush.msra.mxu0 0.0
        %3238 = vmatpush.msra.mxu0 %v3214
        %3239 = vmatmul.f32.gmra.mxu0 %v3218
        %v3240 = vpop.f32.mrf.mxu0
        %v3241 = vadd.f32 0.0, %v3240
        %3242 = vmatmul.f32.gmra.mxu0 %v3221
        %v3243 = vpop.f32.mrf.mxu0
        %v3244 = vadd.f32 0.0, %v3243
        %3245 = vdwg.mxu0
        %3246 = vmatpush.msra.mxu0 0.0
        %3247 = vmatpush.msra.mxu0 0.0
        %3248 = vmatpush.msra.mxu0 0.0
        %3249 = vmatpush.msra.mxu0 0.0
        %3250 = vmatpush.msra.mxu0 0.0
        %3251 = vmatpush.msra.mxu0 0.0
        %3252 = vmatpush.msra.mxu0 0.0
        %3253 = vmatpush.msra.mxu0 0.0
        %3254 = vmatpush.msra.mxu0 0.0
        %3255 = vmatpush.msra.mxu0 0.0
        %3256 = vmatpush.msra.mxu0 0.0
        %3257 = vmatpush.msra.mxu0 0.0
        %3258 = vmatpush.msra.mxu0 0.0
        %3259 = vmatpush.msra.mxu0 0.0
        %3260 = vmatpush.msra.mxu0 0.0
        %3261 = vmatpush.msra.mxu0 %v3215
        %3262 = vmatmul.f32.gmra.mxu0 %v3218
        %v3263 = vpop.f32.mrf.mxu0
        %v3264 = vadd.f32 0.0, %v3263
        %3265 = vmatmul.f32.gmra.mxu0 %v3221
        %v3266 = vpop.f32.mrf.mxu0
        %v3267 = vadd.f32 0.0, %v3266
        %3268 = vdwg.mxu0
        %v3270 = vsel %vm1611, %v3194, 0
        %v3273 = vsel %vm1611, %v3195, 0
        %v3276 = vsel %vm1624, %v2592, 0
        %v3279 = vsel %vm1624, %v2593, 0
        %3281 = vmatpush.msra.mxu0 0.0
        %3282 = vmatpush.msra.mxu0 0.0
        %3283 = vmatpush.msra.mxu0 0.0
        %3284 = vmatpush.msra.mxu0 0.0
        %3285 = vmatpush.msra.mxu0 0.0
        %3286 = vmatpush.msra.mxu0 0.0
        %3287 = vmatpush.msra.mxu0 0.0
        %3288 = vmatpush.msra.mxu0 0.0
        %3289 = vmatpush.msra.mxu0 0.0
        %3290 = vmatpush.msra.mxu0 0.0
        %3291 = vmatpush.msra.mxu0 %v3276
        %3292 = vmatpush.msra.mxu0 %v2590
        %3293 = vmatpush.msra.mxu0 %v2588
        %3294 = vmatpush.msra.mxu0 %v2586
        %3295 = vmatpush.msra.mxu0 %v2584
        %3296 = vmatpush.msra.mxu0 %v2582
        %3297 = vmatmul.f32.gmra.mxu0 %v3270
        %v3298 = vpop.f32.mrf.mxu0
        %v3299 = vadd.f32 %v3241, %v3298
        %3300 = vmatmul.f32.gmra.mxu0 %v3273
        %v3301 = vpop.f32.mrf.mxu0
        %v3302 = vadd.f32 %v3244, %v3301
        %3303 = vdwg.mxu0
        %3304 = vmatpush.msra.mxu0 0.0
        %3305 = vmatpush.msra.mxu0 0.0
        %3306 = vmatpush.msra.mxu0 0.0
        %3307 = vmatpush.msra.mxu0 0.0
        %3308 = vmatpush.msra.mxu0 0.0
        %3309 = vmatpush.msra.mxu0 0.0
        %3310 = vmatpush.msra.mxu0 0.0
        %3311 = vmatpush.msra.mxu0 0.0
        %3312 = vmatpush.msra.mxu0 0.0
        %3313 = vmatpush.msra.mxu0 0.0
        %3314 = vmatpush.msra.mxu0 %v3279
        %3315 = vmatpush.msra.mxu0 %v2591
        %3316 = vmatpush.msra.mxu0 %v2589
        %3317 = vmatpush.msra.mxu0 %v2587
        %3318 = vmatpush.msra.mxu0 %v2585
        %3319 = vmatpush.msra.mxu0 %v2583
        %3320 = vmatmul.f32.gmra.mxu0 %v3270
        %v3321 = vpop.f32.mrf.mxu0
        %v3322 = vadd.f32 %v3264, %v3321
        %3323 = vmatmul.f32.gmra.mxu0 %v3273
        %v3324 = vpop.f32.mrf.mxu0
        %v3325 = vadd.f32 %v3267, %v3324
        %3326 = vdwg.mxu0
        %v3327 = vadd.f32 %v2760, %v3180
        %v3328 = vadd.f32 %v2761, %v3181
        %v3330 = vsel %vm3216, %v3198, 0
        %v3333 = vsel %vm3216, %v3199, 0
        %3335 = vmatpush.msra.mxu0 0.0
        %3336 = vmatpush.msra.mxu0 0.0
        %3337 = vmatpush.msra.mxu0 0.0
        %3338 = vmatpush.msra.mxu0 0.0
        %3339 = vmatpush.msra.mxu0 0.0
        %3340 = vmatpush.msra.mxu0 0.0
        %3341 = vmatpush.msra.mxu0 0.0
        %3342 = vmatpush.msra.mxu0 0.0
        %3343 = vmatpush.msra.mxu0 0.0
        %3344 = vmatpush.msra.mxu0 0.0
        %3345 = vmatpush.msra.mxu0 0.0
        %3346 = vmatpush.msra.mxu0 0.0
        %3347 = vmatpush.msra.mxu0 0.0
        %3348 = vmatpush.msra.mxu0 0.0
        %3349 = vmatpush.msra.mxu0 0.0
        %3350 = vmatpush.msra.mxu0 %v3327
        %3351 = vmatmul.f32.gmra.mxu0 %v3330
        %v3352 = vpop.f32.mrf.mxu0
        %v3353 = vadd.f32 0.0, %v3352
        %3354 = vmatmul.f32.gmra.mxu0 %v3333
        %v3355 = vpop.f32.mrf.mxu0
        %v3356 = vadd.f32 0.0, %v3355
        %3357 = vdwg.mxu0
        %3358 = vmatpush.msra.mxu0 0.0
        %3359 = vmatpush.msra.mxu0 0.0
        %3360 = vmatpush.msra.mxu0 0.0
        %3361 = vmatpush.msra.mxu0 0.0
        %3362 = vmatpush.msra.mxu0 0.0
        %3363 = vmatpush.msra.mxu0 0.0
        %3364 = vmatpush.msra.mxu0 0.0
        %3365 = vmatpush.msra.mxu0 0.0
        %3366 = vmatpush.msra.mxu0 0.0
        %3367 = vmatpush.msra.mxu0 0.0
        %3368 = vmatpush.msra.mxu0 0.0
        %3369 = vmatpush.msra.mxu0 0.0
        %3370 = vmatpush.msra.mxu0 0.0
        %3371 = vmatpush.msra.mxu0 0.0
        %3372 = vmatpush.msra.mxu0 0.0
        %3373 = vmatpush.msra.mxu0 %v3328
        %3374 = vmatmul.f32.gmra.mxu0 %v3330
        %v3375 = vpop.f32.mrf.mxu0
        %v3376 = vadd.f32 0.0, %v3375
        %3377 = vmatmul.f32.gmra.mxu0 %v3333
        %v3378 = vpop.f32.mrf.mxu0
        %v3379 = vadd.f32 0.0, %v3378
        %3380 = vdwg.mxu0
        %v3381 = vadd.f32 %v3299, %v3353
        %v3382 = vadd.f32 %v3322, %v3376
        %v3383 = vadd.f32 %v3302, %v3356
        %v3384 = vadd.f32 %v3325, %v3379
        %v3386 = vsel %vm1534, %v3200, 0
        %v3389 = vsel %vm1534, %v3201, 0
        %v3392 = vsel %vm1225, %v3042, 0
        %v3395 = vsel %vm1225, %v3043, 0
        %3397 = vmatpush.msra.mxu0 0.0
        %3398 = vmatpush.msra.mxu0 0.0
        %3399 = vmatpush.msra.mxu0 0.0
        %3400 = vmatpush.msra.mxu0 0.0
        %3401 = vmatpush.msra.mxu0 0.0
        %3402 = vmatpush.msra.mxu0 0.0
        %3403 = vmatpush.msra.mxu0 0.0
        %3404 = vmatpush.msra.mxu0 0.0
        %3405 = vmatpush.msra.mxu0 0.0
        %3406 = vmatpush.msra.mxu0 0.0
        %3407 = vmatpush.msra.mxu0 0.0
        %3408 = vmatpush.msra.mxu0 0.0
        %3409 = vmatpush.msra.mxu0 0.0
        %3410 = vmatpush.msra.mxu0 0.0
        %3411 = vmatpush.msra.mxu0 0.0
        %3412 = vmatpush.msra.mxu0 %v3392
        %3413 = vmatmul.f32.gmra.mxu0 %v3386
        %v3414 = vpop.f32.mrf.mxu0
        %v3415 = vadd.f32 0.0, %v3414
        %3416 = vmatmul.f32.gmra.mxu0 %v3389
        %v3417 = vpop.f32.mrf.mxu0
        %v3418 = vadd.f32 0.0, %v3417
        %3419 = vdwg.mxu0
        %3420 = vmatpush.msra.mxu0 0.0
        %3421 = vmatpush.msra.mxu0 0.0
        %3422 = vmatpush.msra.mxu0 0.0
        %3423 = vmatpush.msra.mxu0 0.0
        %3424 = vmatpush.msra.mxu0 0.0
        %3425 = vmatpush.msra.mxu0 0.0
        %3426 = vmatpush.msra.mxu0 0.0
        %3427 = vmatpush.msra.mxu0 0.0
        %3428 = vmatpush.msra.mxu0 0.0
        %3429 = vmatpush.msra.mxu0 0.0
        %3430 = vmatpush.msra.mxu0 0.0
        %3431 = vmatpush.msra.mxu0 0.0
        %3432 = vmatpush.msra.mxu0 0.0
        %3433 = vmatpush.msra.mxu0 0.0
        %3434 = vmatpush.msra.mxu0 0.0
        %3435 = vmatpush.msra.mxu0 %v3395
        %3436 = vmatmul.f32.gmra.mxu0 %v3386
        %v3437 = vpop.f32.mrf.mxu0
        %v3438 = vadd.f32 0.0, %v3437
        %3439 = vmatmul.f32.gmra.mxu0 %v3389
        %v3440 = vpop.f32.mrf.mxu0
        %v3441 = vadd.f32 0.0, %v3440
        %3442 = vdwg.mxu0
        %v3443 = vadd.f32 %v3381, %v3415
        %v3444 = vadd.f32 %v3382, %v3438
        %v3445 = vadd.f32 %v3383, %v3418
        %v3446 = vadd.f32 %v3384, %v3441
        %v3451 = vrot.slane %v3160, 1
        %v3452 = vrot.slane %v3162, 1
        %v3453 = vsel %vm1225, %v3451, %v3452
        %v3454 = vrot.slane %v3161, 1
        %v3455 = vrot.slane %v3163, 1
        %v3456 = vsel %vm1225, %v3454, %v3455
        %v3459 = vadd.f32 %v2706, %v3453
        %v3460 = vadd.f32 %v2707, %v3456
        %3461 = vmatpush.msra.mxu0 0.0
        %3462 = vmatpush.msra.mxu0 0.0
        %3463 = vmatpush.msra.mxu0 0.0
        %3464 = vmatpush.msra.mxu0 0.0
        %3465 = vmatpush.msra.mxu0 0.0
        %3466 = vmatpush.msra.mxu0 0.0
        %3467 = vmatpush.msra.mxu0 0.0
        %3468 = vmatpush.msra.mxu0 0.0
        %3469 = vmatpush.msra.mxu0 0.0
        %3470 = vmatpush.msra.mxu0 0.0
        %3471 = vmatpush.msra.mxu0 0.0
        %3472 = vmatpush.msra.mxu0 0.0
        %3473 = vmatpush.msra.mxu0 0.0
        %3474 = vmatpush.msra.mxu0 0.0
        %3475 = vmatpush.msra.mxu0 0.0
        %3476 = vmatpush.msra.mxu0 %v3459
        %3477 = vmatmul.f32.gmra.mxu0 %v3218
        %v3478 = vpop.f32.mrf.mxu0
        %v3479 = vadd.f32 0.0, %v3478
        %3480 = vmatmul.f32.gmra.mxu0 %v3221
        %v3481 = vpop.f32.mrf.mxu0
        %v3482 = vadd.f32 0.0, %v3481
        %3483 = vdwg.mxu0
        %3484 = vmatpush.msra.mxu0 0.0
        %3485 = vmatpush.msra.mxu0 0.0
        %3486 = vmatpush.msra.mxu0 0.0
        %3487 = vmatpush.msra.mxu0 0.0
        %3488 = vmatpush.msra.mxu0 0.0
        %3489 = vmatpush.msra.mxu0 0.0
        %3490 = vmatpush.msra.mxu0 0.0
        %3491 = vmatpush.msra.mxu0 0.0
        %3492 = vmatpush.msra.mxu0 0.0
        %3493 = vmatpush.msra.mxu0 0.0
        %3494 = vmatpush.msra.mxu0 0.0
        %3495 = vmatpush.msra.mxu0 0.0
        %3496 = vmatpush.msra.mxu0 0.0
        %3497 = vmatpush.msra.mxu0 0.0
        %3498 = vmatpush.msra.mxu0 0.0
        %3499 = vmatpush.msra.mxu0 %v3460
        %3500 = vmatmul.f32.gmra.mxu0 %v3218
        %v3501 = vpop.f32.mrf.mxu0
        %v3502 = vadd.f32 0.0, %v3501
        %3503 = vmatmul.f32.gmra.mxu0 %v3221
        %v3504 = vpop.f32.mrf.mxu0
        %v3505 = vadd.f32 0.0, %v3504
        %3506 = vdwg.mxu0
        %v3508 = vsel %vm1624, %v2604, 0
        %v3511 = vsel %vm1624, %v2605, 0
        %3513 = vmatpush.msra.mxu0 0.0
        %3514 = vmatpush.msra.mxu0 0.0
        %3515 = vmatpush.msra.mxu0 0.0
        %3516 = vmatpush.msra.mxu0 0.0
        %3517 = vmatpush.msra.mxu0 0.0
        %3518 = vmatpush.msra.mxu0 0.0
        %3519 = vmatpush.msra.mxu0 0.0
        %3520 = vmatpush.msra.mxu0 0.0
        %3521 = vmatpush.msra.mxu0 0.0
        %3522 = vmatpush.msra.mxu0 0.0
        %3523 = vmatpush.msra.mxu0 %v3508
        %3524 = vmatpush.msra.mxu0 %v2602
        %3525 = vmatpush.msra.mxu0 %v2600
        %3526 = vmatpush.msra.mxu0 %v2598
        %3527 = vmatpush.msra.mxu0 %v2596
        %3528 = vmatpush.msra.mxu0 %v2594
        %3529 = vmatmul.f32.gmra.mxu0 %v3270
        %v3530 = vpop.f32.mrf.mxu0
        %v3531 = vadd.f32 %v3479, %v3530
        %3532 = vmatmul.f32.gmra.mxu0 %v3273
        %v3533 = vpop.f32.mrf.mxu0
        %v3534 = vadd.f32 %v3482, %v3533
        %3535 = vdwg.mxu0
        %3536 = vmatpush.msra.mxu0 0.0
        %3537 = vmatpush.msra.mxu0 0.0
        %3538 = vmatpush.msra.mxu0 0.0
        %3539 = vmatpush.msra.mxu0 0.0
        %3540 = vmatpush.msra.mxu0 0.0
        %3541 = vmatpush.msra.mxu0 0.0
        %3542 = vmatpush.msra.mxu0 0.0
        %3543 = vmatpush.msra.mxu0 0.0
        %3544 = vmatpush.msra.mxu0 0.0
        %3545 = vmatpush.msra.mxu0 0.0
        %3546 = vmatpush.msra.mxu0 %v3511
        %3547 = vmatpush.msra.mxu0 %v2603
        %3548 = vmatpush.msra.mxu0 %v2601
        %3549 = vmatpush.msra.mxu0 %v2599
        %3550 = vmatpush.msra.mxu0 %v2597
        %3551 = vmatpush.msra.mxu0 %v2595
        %3552 = vmatmul.f32.gmra.mxu0 %v3270
        %v3553 = vpop.f32.mrf.mxu0
        %v3554 = vadd.f32 %v3502, %v3553
        %3555 = vmatmul.f32.gmra.mxu0 %v3273
        %v3556 = vpop.f32.mrf.mxu0
        %v3557 = vadd.f32 %v3505, %v3556
        %3558 = vdwg.mxu0
        %v3559 = vadd.f32 %v2770, %v3186
        %v3560 = vadd.f32 %v2771, %v3187
        %3561 = vmatpush.msra.mxu0 0.0
        %3562 = vmatpush.msra.mxu0 0.0
        %3563 = vmatpush.msra.mxu0 0.0
        %3564 = vmatpush.msra.mxu0 0.0
        %3565 = vmatpush.msra.mxu0 0.0
        %3566 = vmatpush.msra.mxu0 0.0
        %3567 = vmatpush.msra.mxu0 0.0
        %3568 = vmatpush.msra.mxu0 0.0
        %3569 = vmatpush.msra.mxu0 0.0
        %3570 = vmatpush.msra.mxu0 0.0
        %3571 = vmatpush.msra.mxu0 0.0
        %3572 = vmatpush.msra.mxu0 0.0
        %3573 = vmatpush.msra.mxu0 0.0
        %3574 = vmatpush.msra.mxu0 0.0
        %3575 = vmatpush.msra.mxu0 0.0
        %3576 = vmatpush.msra.mxu0 %v3559
        %3577 = vmatmul.f32.gmra.mxu0 %v3330
        %v3578 = vpop.f32.mrf.mxu0
        %v3579 = vadd.f32 0.0, %v3578
        %3580 = vmatmul.f32.gmra.mxu0 %v3333
        %v3581 = vpop.f32.mrf.mxu0
        %v3582 = vadd.f32 0.0, %v3581
        %3583 = vdwg.mxu0
        %3584 = vmatpush.msra.mxu0 0.0
        %3585 = vmatpush.msra.mxu0 0.0
        %3586 = vmatpush.msra.mxu0 0.0
        %3587 = vmatpush.msra.mxu0 0.0
        %3588 = vmatpush.msra.mxu0 0.0
        %3589 = vmatpush.msra.mxu0 0.0
        %3590 = vmatpush.msra.mxu0 0.0
        %3591 = vmatpush.msra.mxu0 0.0
        %3592 = vmatpush.msra.mxu0 0.0
        %3593 = vmatpush.msra.mxu0 0.0
        %3594 = vmatpush.msra.mxu0 0.0
        %3595 = vmatpush.msra.mxu0 0.0
        %3596 = vmatpush.msra.mxu0 0.0
        %3597 = vmatpush.msra.mxu0 0.0
        %3598 = vmatpush.msra.mxu0 0.0
        %3599 = vmatpush.msra.mxu0 %v3560
        %3600 = vmatmul.f32.gmra.mxu0 %v3330
        %v3601 = vpop.f32.mrf.mxu0
        %v3602 = vadd.f32 0.0, %v3601
        %3603 = vmatmul.f32.gmra.mxu0 %v3333
        %v3604 = vpop.f32.mrf.mxu0
        %v3605 = vadd.f32 0.0, %v3604
        %3606 = vdwg.mxu0
        %v3607 = vadd.f32 %v3531, %v3579
        %v3608 = vadd.f32 %v3554, %v3602
        %v3609 = vadd.f32 %v3534, %v3582
        %v3610 = vadd.f32 %v3557, %v3605
        %v3612 = vsel %vm1225, %v3048, 0
        %v3615 = vsel %vm1225, %v3049, 0
        %3617 = vmatpush.msra.mxu0 0.0
        %3618 = vmatpush.msra.mxu0 0.0
        %3619 = vmatpush.msra.mxu0 0.0
        %3620 = vmatpush.msra.mxu0 0.0
        %3621 = vmatpush.msra.mxu0 0.0
        %3622 = vmatpush.msra.mxu0 0.0
        %3623 = vmatpush.msra.mxu0 0.0
        %3624 = vmatpush.msra.mxu0 0.0
        %3625 = vmatpush.msra.mxu0 0.0
        %3626 = vmatpush.msra.mxu0 0.0
        %3627 = vmatpush.msra.mxu0 0.0
        %3628 = vmatpush.msra.mxu0 0.0
        %3629 = vmatpush.msra.mxu0 0.0
        %3630 = vmatpush.msra.mxu0 0.0
        %3631 = vmatpush.msra.mxu0 0.0
        %3632 = vmatpush.msra.mxu0 %v3612
        %3633 = vmatmul.f32.gmra.mxu0 %v3386
        %v3634 = vpop.f32.mrf.mxu0
        %v3635 = vadd.f32 0.0, %v3634
        %3636 = vmatmul.f32.gmra.mxu0 %v3389
        %v3637 = vpop.f32.mrf.mxu0
        %v3638 = vadd.f32 0.0, %v3637
        %3639 = vdwg.mxu0
        %3640 = vmatpush.msra.mxu0 0.0
        %3641 = vmatpush.msra.mxu0 0.0
        %3642 = vmatpush.msra.mxu0 0.0
        %3643 = vmatpush.msra.mxu0 0.0
        %3644 = vmatpush.msra.mxu0 0.0
        %3645 = vmatpush.msra.mxu0 0.0
        %3646 = vmatpush.msra.mxu0 0.0
        %3647 = vmatpush.msra.mxu0 0.0
        %3648 = vmatpush.msra.mxu0 0.0
        %3649 = vmatpush.msra.mxu0 0.0
        %3650 = vmatpush.msra.mxu0 0.0
        %3651 = vmatpush.msra.mxu0 0.0
        %3652 = vmatpush.msra.mxu0 0.0
        %3653 = vmatpush.msra.mxu0 0.0
        %3654 = vmatpush.msra.mxu0 0.0
        %3655 = vmatpush.msra.mxu0 %v3615
        %3656 = vmatmul.f32.gmra.mxu0 %v3386
        %v3657 = vpop.f32.mrf.mxu0
        %v3658 = vadd.f32 0.0, %v3657
        %3659 = vmatmul.f32.gmra.mxu0 %v3389
        %v3660 = vpop.f32.mrf.mxu0
        %v3661 = vadd.f32 0.0, %v3660
        %3662 = vdwg.mxu0
        %v3663 = vadd.f32 %v3607, %v3635
        %v3664 = vadd.f32 %v3608, %v3658
        %v3665 = vadd.f32 %v3609, %v3638
        %v3666 = vadd.f32 %v3610, %v3661
        %v3671 = vrot.slane %v3172, 1
        %v3672 = vrot.slane %v3174, 1
        %v3673 = vsel %vm1225, %v3671, %v3672
        %v3674 = vrot.slane %v3173, 1
        %v3675 = vrot.slane %v3175, 1
        %v3676 = vsel %vm1225, %v3674, %v3675
        %v3679 = vadd.f32 %v2738, %v3673
        %v3680 = vadd.f32 %v2739, %v3676
        %3681 = vmatpush.msra.mxu0 0.0
        %3682 = vmatpush.msra.mxu0 0.0
        %3683 = vmatpush.msra.mxu0 0.0
        %3684 = vmatpush.msra.mxu0 0.0
        %3685 = vmatpush.msra.mxu0 0.0
        %3686 = vmatpush.msra.mxu0 0.0
        %3687 = vmatpush.msra.mxu0 0.0
        %3688 = vmatpush.msra.mxu0 0.0
        %3689 = vmatpush.msra.mxu0 0.0
        %3690 = vmatpush.msra.mxu0 0.0
        %3691 = vmatpush.msra.mxu0 0.0
        %3692 = vmatpush.msra.mxu0 0.0
        %3693 = vmatpush.msra.mxu0 0.0
        %3694 = vmatpush.msra.mxu0 0.0
        %3695 = vmatpush.msra.mxu0 0.0
        %3696 = vmatpush.msra.mxu0 %v3679
        %3697 = vmatmul.f32.gmra.mxu0 %v3218
        %v3698 = vpop.f32.mrf.mxu0
        %v3699 = vadd.f32 0.0, %v3698
        %3700 = vmatmul.f32.gmra.mxu0 %v3221
        %v3701 = vpop.f32.mrf.mxu0
        %v3702 = vadd.f32 0.0, %v3701
        %3703 = vdwg.mxu0
        %3704 = vmatpush.msra.mxu0 0.0
        %3705 = vmatpush.msra.mxu0 0.0
        %3706 = vmatpush.msra.mxu0 0.0
        %3707 = vmatpush.msra.mxu0 0.0
        %3708 = vmatpush.msra.mxu0 0.0
        %3709 = vmatpush.msra.mxu0 0.0
        %3710 = vmatpush.msra.mxu0 0.0
        %3711 = vmatpush.msra.mxu0 0.0
        %3712 = vmatpush.msra.mxu0 0.0
        %3713 = vmatpush.msra.mxu0 0.0
        %3714 = vmatpush.msra.mxu0 0.0
        %3715 = vmatpush.msra.mxu0 0.0
        %3716 = vmatpush.msra.mxu0 0.0
        %3717 = vmatpush.msra.mxu0 0.0
        %3718 = vmatpush.msra.mxu0 0.0
        %3719 = vmatpush.msra.mxu0 %v3680
        %3720 = vmatmul.f32.gmra.mxu0 %v3218
        %v3721 = vpop.f32.mrf.mxu0
        %v3722 = vadd.f32 0.0, %v3721
        %3723 = vmatmul.f32.gmra.mxu0 %v3221
        %v3724 = vpop.f32.mrf.mxu0
        %v3725 = vadd.f32 0.0, %v3724
        %3726 = vdwg.mxu0
        %v3728 = vsel %vm1624, %v2616, 0
        %v3731 = vsel %vm1624, %v2617, 0
        %3733 = vmatpush.msra.mxu0 0.0
        %3734 = vmatpush.msra.mxu0 0.0
        %3735 = vmatpush.msra.mxu0 0.0
        %3736 = vmatpush.msra.mxu0 0.0
        %3737 = vmatpush.msra.mxu0 0.0
        %3738 = vmatpush.msra.mxu0 0.0
        %3739 = vmatpush.msra.mxu0 0.0
        %3740 = vmatpush.msra.mxu0 0.0
        %3741 = vmatpush.msra.mxu0 0.0
        %3742 = vmatpush.msra.mxu0 0.0
        %3743 = vmatpush.msra.mxu0 %v3728
        %3744 = vmatpush.msra.mxu0 %v2614
        %3745 = vmatpush.msra.mxu0 %v2612
        %3746 = vmatpush.msra.mxu0 %v2610
        %3747 = vmatpush.msra.mxu0 %v2608
        %3748 = vmatpush.msra.mxu0 %v2606
        %3749 = vmatmul.f32.gmra.mxu0 %v3270
        %v3750 = vpop.f32.mrf.mxu0
        %v3751 = vadd.f32 %v3699, %v3750
        %3752 = vmatmul.f32.gmra.mxu0 %v3273
        %v3753 = vpop.f32.mrf.mxu0
        %v3754 = vadd.f32 %v3702, %v3753
        %3755 = vdwg.mxu0
        %3756 = vmatpush.msra.mxu0 0.0
        %3757 = vmatpush.msra.mxu0 0.0
        %3758 = vmatpush.msra.mxu0 0.0
        %3759 = vmatpush.msra.mxu0 0.0
        %3760 = vmatpush.msra.mxu0 0.0
        %3761 = vmatpush.msra.mxu0 0.0
        %3762 = vmatpush.msra.mxu0 0.0
        %3763 = vmatpush.msra.mxu0 0.0
        %3764 = vmatpush.msra.mxu0 0.0
        %3765 = vmatpush.msra.mxu0 0.0
        %3766 = vmatpush.msra.mxu0 %v3731
        %3767 = vmatpush.msra.mxu0 %v2615
        %3768 = vmatpush.msra.mxu0 %v2613
        %3769 = vmatpush.msra.mxu0 %v2611
        %3770 = vmatpush.msra.mxu0 %v2609
        %3771 = vmatpush.msra.mxu0 %v2607
        %3772 = vmatmul.f32.gmra.mxu0 %v3270
        %v3773 = vpop.f32.mrf.mxu0
        %v3774 = vadd.f32 %v3722, %v3773
        %3775 = vmatmul.f32.gmra.mxu0 %v3273
        %v3776 = vpop.f32.mrf.mxu0
        %v3777 = vadd.f32 %v3725, %v3776
        %3778 = vdwg.mxu0
        %v3779 = vadd.f32 %v2780, %v3192
        %v3780 = vadd.f32 %v2781, %v3193
        %3781 = vmatpush.msra.mxu0 0.0
        %3782 = vmatpush.msra.mxu0 0.0
        %3783 = vmatpush.msra.mxu0 0.0
        %3784 = vmatpush.msra.mxu0 0.0
        %3785 = vmatpush.msra.mxu0 0.0
        %3786 = vmatpush.msra.mxu0 0.0
        %3787 = vmatpush.msra.mxu0 0.0
        %3788 = vmatpush.msra.mxu0 0.0
        %3789 = vmatpush.msra.mxu0 0.0
        %3790 = vmatpush.msra.mxu0 0.0
        %3791 = vmatpush.msra.mxu0 0.0
        %3792 = vmatpush.msra.mxu0 0.0
        %3793 = vmatpush.msra.mxu0 0.0
        %3794 = vmatpush.msra.mxu0 0.0
        %3795 = vmatpush.msra.mxu0 0.0
        %3796 = vmatpush.msra.mxu0 %v3779
        %3797 = vmatmul.f32.gmra.mxu0 %v3330
        %v3798 = vpop.f32.mrf.mxu0
        %v3799 = vadd.f32 0.0, %v3798
        %3800 = vmatmul.f32.gmra.mxu0 %v3333
        %v3801 = vpop.f32.mrf.mxu0
        %v3802 = vadd.f32 0.0, %v3801
        %3803 = vdwg.mxu0
        %3804 = vmatpush.msra.mxu0 0.0
        %3805 = vmatpush.msra.mxu0 0.0
        %3806 = vmatpush.msra.mxu0 0.0
        %3807 = vmatpush.msra.mxu0 0.0
        %3808 = vmatpush.msra.mxu0 0.0
        %3809 = vmatpush.msra.mxu0 0.0
        %3810 = vmatpush.msra.mxu0 0.0
        %3811 = vmatpush.msra.mxu0 0.0
        %3812 = vmatpush.msra.mxu0 0.0
        %3813 = vmatpush.msra.mxu0 0.0
        %3814 = vmatpush.msra.mxu0 0.0
        %3815 = vmatpush.msra.mxu0 0.0
        %3816 = vmatpush.msra.mxu0 0.0
        %3817 = vmatpush.msra.mxu0 0.0
        %3818 = vmatpush.msra.mxu0 0.0
        %3819 = vmatpush.msra.mxu0 %v3780
        %3820 = vmatmul.f32.gmra.mxu0 %v3330
        %v3821 = vpop.f32.mrf.mxu0
        %v3822 = vadd.f32 0.0, %v3821
        %3823 = vmatmul.f32.gmra.mxu0 %v3333
        %v3824 = vpop.f32.mrf.mxu0
        %v3825 = vadd.f32 0.0, %v3824
        %3826 = vdwg.mxu0
        %v3827 = vadd.f32 %v3751, %v3799
        %v3828 = vadd.f32 %v3774, %v3822
        %v3829 = vadd.f32 %v3754, %v3802
        %v3830 = vadd.f32 %v3777, %v3825
        %v3832 = vsel %vm1225, %v3054, 0
        %v3835 = vsel %vm1225, %v3055, 0
        %3837 = vmatpush.msra.mxu0 0.0
        %3838 = vmatpush.msra.mxu0 0.0
        %3839 = vmatpush.msra.mxu0 0.0
        %3840 = vmatpush.msra.mxu0 0.0
        %3841 = vmatpush.msra.mxu0 0.0
        %3842 = vmatpush.msra.mxu0 0.0
        %3843 = vmatpush.msra.mxu0 0.0
        %3844 = vmatpush.msra.mxu0 0.0
        %3845 = vmatpush.msra.mxu0 0.0
        %3846 = vmatpush.msra.mxu0 0.0
        %3847 = vmatpush.msra.mxu0 0.0
        %3848 = vmatpush.msra.mxu0 0.0
        %3849 = vmatpush.msra.mxu0 0.0
        %3850 = vmatpush.msra.mxu0 0.0
        %3851 = vmatpush.msra.mxu0 0.0
        %3852 = vmatpush.msra.mxu0 %v3832
        %3853 = vmatmul.f32.gmra.mxu0 %v3386
        %v3854 = vpop.f32.mrf.mxu0
        %v3855 = vadd.f32 0.0, %v3854
        %3856 = vmatmul.f32.gmra.mxu0 %v3389
        %v3857 = vpop.f32.mrf.mxu0
        %v3858 = vadd.f32 0.0, %v3857
        %3859 = vdwg.mxu0
        %3860 = vmatpush.msra.mxu0 0.0
        %3861 = vmatpush.msra.mxu0 0.0
        %3862 = vmatpush.msra.mxu0 0.0
        %3863 = vmatpush.msra.mxu0 0.0
        %3864 = vmatpush.msra.mxu0 0.0
        %3865 = vmatpush.msra.mxu0 0.0
        %3866 = vmatpush.msra.mxu0 0.0
        %3867 = vmatpush.msra.mxu0 0.0
        %3868 = vmatpush.msra.mxu0 0.0
        %3869 = vmatpush.msra.mxu0 0.0
        %3870 = vmatpush.msra.mxu0 0.0
        %3871 = vmatpush.msra.mxu0 0.0
        %3872 = vmatpush.msra.mxu0 0.0
        %3873 = vmatpush.msra.mxu0 0.0
        %3874 = vmatpush.msra.mxu0 0.0
        %3875 = vmatpush.msra.mxu0 %v3835
        %3876 = vmatmul.f32.gmra.mxu0 %v3386
        %v3877 = vpop.f32.mrf.mxu0
        %v3878 = vadd.f32 0.0, %v3877
        %3879 = vmatmul.f32.gmra.mxu0 %v3389
        %v3880 = vpop.f32.mrf.mxu0
        %v3881 = vadd.f32 0.0, %v3880
        %3882 = vdwg.mxu0
        %v3883 = vadd.f32 %v3827, %v3855
        %v3884 = vadd.f32 %v3828, %v3878
        %v3885 = vadd.f32 %v3829, %v3858
        %v3886 = vadd.f32 %v3830, %v3881
        %v3887 = vsub.f32 0.0, %v3443
        %v3888 = vsub.f32 0.0, %v3444
        %v3889 = vsub.f32 0.0, %v3445
        %v3890 = vsub.f32 0.0, %v3446
        %3891 = vst [vmem:[%s759] sm:$0xff] %v3887
        %3892 = vst [vmem:[%s759 + $0x8] sm:$0xff] %v3888
        %3893 = vst [vmem:[%s759 + $0x10] sm:$0x3] %v3889
        %3894 = vst [vmem:[%s759 + $0x18] sm:$0x3] %v3890
        %v3895 = vsub.f32 0.0, %v3663
        %v3896 = vsub.f32 0.0, %v3664
        %v3897 = vsub.f32 0.0, %v3665
        %v3898 = vsub.f32 0.0, %v3666
        %s3899 = scalar_lea.vmem %s759, 32 [#allocation6]
        %3900 = vst [vmem:[%s3899] sm:$0xff] %v3895
        %3901 = vst [vmem:[%s3899 + $0x8] sm:$0xff] %v3896
        %3902 = vst [vmem:[%s3899 + $0x10] sm:$0x3] %v3897
        %3903 = vst [vmem:[%s3899 + $0x18] sm:$0x3] %v3898
        %v3904 = vsub.f32 0.0, %v3883
        %v3905 = vsub.f32 0.0, %v3884
        %v3906 = vsub.f32 0.0, %v3885
        %v3907 = vsub.f32 0.0, %v3886
        %s3908 = scalar_lea.vmem %s759, 64 [#allocation6]
        %3909 = vst [vmem:[%s3908] sm:$0xff] %v3904
        %3910 = vst [vmem:[%s3908 + $0x8] sm:$0xff] %v3905
        %3911 = vst [vmem:[%s3908 + $0x10] sm:$0x3] %v3906
        %3912 = vst [vmem:[%s3908 + $0x18] sm:$0x3] %v3907
        %s3913 = sand.u32 %s515, 1
        %s3914 = scalar_lea.sflag [#allocation5], %s3913
        %s3915 = sand.u32 %s515, 1
        %s3916 = smul.addr %s3915, 2
        %s3917 = scalar_lea.vmem [#allocation4], %s3916
        %s3918 = sand.u32 %s541, 1
        %s3919 = sand.u32 %s541, 1
        %s3920 = smul.addr %s3919, 96
        %s3921 = scalar_lea.vmem [#allocation6], %s3920
        // Predicated region
        $region132: #{model_forward.1} parent=126 // pred_check
          %p3922 = pneg %p525
        $region133: #{model_forward.1} parent=126 // pred_check_branch
          %3924 = sbr.rel (%p3922) target = $region135
        $region134: #{model_forward.1} parent=126 // pred_region
          %s3925 = smul.u32 2, %s40
          %3927 = vsyncadd %s3914, 0
          %s3928 = scalar_lea.hbm %s22, %s3925
          %s3930 = sshll.u32 %s3917, 4
          %s3931 = int_to_ptr.vmem [resolvable:$true] %s3930
          %s3932 = sshll.u32 %s3928, 4
          %s3933 = int_to_ptr.hbm [resolvable:$true] %s3932
          %3935 = dma.vmem_to_hbm [thread:$0]  %s3931, 32, %s3933, %s3914
        $region135: #{model_forward.1} parent=126 // pred_fallthru
          _
        // Predicated region
        $region136: #{model_forward.1} parent=126 // pred_check
          %p3936 = pneg %p551
        $region137: #{model_forward.1} parent=126 // pred_check_branch
          %3938 = sbr.rel (%p3936) target = $region139
        $region138: #{model_forward.1} parent=126 // pred_region
          %s3939 = smul.u32 2, %s40
          %s3940 = smul.addr %s3939, 8
          %s3941 = scalar_lea.vmem %s23, %s3940
          // Predicated region
          $region140: #{model_forward.1} parent=138 // pred_check
            _
          $region141: #{model_forward.1} parent=138 // pred_check_branch
            %3943 = sbr.rel (0) target = $region143
          $region142: #{model_forward.1} parent=138 // pred_region
            // Predicated region
            $region144: #{model_forward.1} parent=142 // pred_check
              _
            $region145: #{model_forward.1} parent=142 // pred_check_branch
              %3945 = sbr.rel (0) target = $region147
            $region146: #{model_forward.1} parent=142 // pred_region
              loop: start=0, step=1, limit=1
              $region148: #{model_forward.1} parent=146 // loop_pre_header
                _
              $region149: #{model_forward.1} parent=146 // loop_header
                %s3947 = sphi 0, %s3951
                %p3948 = scmp.ge.s32.totalorder %s3947, 1
                %s3952 = sphi %s3921, %s3921
                %s3953 = sphi %s3941, %s3941
              $region150: #{model_forward.1} parent=146 // loop_header_branch
                %3950 = sbr.rel (%p3948) target = $region154
              $region151: #{model_forward.1} parent=146 // loop_body
                %v3954 = vld [vmem:[%s3952] sm:$0xff]
                %3955 = vst [vmem:[%s3953] sm:$0xff] %v3954
                %v3956 = vld [vmem:[%s3952 + $0x8] sm:$0xff]
                %3957 = vst [vmem:[%s3953 + $0x8] sm:$0xff] %v3956
                %v3958 = vld [vmem:[%s3952 + $0x10] sm:$0xff]
                %3959 = vst [vmem:[%s3953 + $0x20] sm:$0xff] %v3958
                %v3960 = vld [vmem:[%s3952 + $0x18] sm:$0xff]
                %3961 = vst [vmem:[%s3953 + $0x28] sm:$0xff] %v3960
                %v3962 = vld [vmem:[%s3952 + $0x20] sm:$0xff]
                %3963 = vst [vmem:[%s3953 + $0x40] sm:$0xff] %v3962
                %v3964 = vld [vmem:[%s3952 + $0x28] sm:$0xff]
                %3965 = vst [vmem:[%s3953 + $0x48] sm:$0xff] %v3964
                %v3966 = vld [vmem:[%s3952 + $0x30] sm:$0xff]
                %3967 = vst [vmem:[%s3953 + $0x60] sm:$0xff] %v3966
                %v3968 = vld [vmem:[%s3952 + $0x38] sm:$0xff]
                %3969 = vst [vmem:[%s3953 + $0x68] sm:$0xff] %v3968
                %v3970 = vld [vmem:[%s3952 + $0x40] sm:$0xff]
                %3971 = vst [vmem:[%s3953 + $0x80] sm:$0xff] %v3970
                %v3972 = vld [vmem:[%s3952 + $0x48] sm:$0xff]
                %3973 = vst [vmem:[%s3953 + $0x88] sm:$0xff] %v3972
                %v3974 = vld [vmem:[%s3952 + $0x50] sm:$0xff]
                %3975 = vst [vmem:[%s3953 + $0xa0] sm:$0xff] %v3974
                %v3976 = vld [vmem:[%s3952 + $0x58] sm:$0xff]
                %3977 = vst [vmem:[%s3953 + $0xa8] sm:$0xff] %v3976
              $region152: #{model_forward.1} parent=146 // loop_footer
                %s3951 = sadd.s32 1, %s3947
              $region153: #{model_forward.1} parent=146 // loop_footer_branch
                %3946 = sbr.rel target = $region149
              $region154: #{model_forward.1} parent=146 // loop_exit
                _
            $region147: #{model_forward.1} parent=142 // pred_fallthru
              _
            // Predicated region
            $region155: #{model_forward.1} parent=142 // pred_check
              _
            $region156: #{model_forward.1} parent=142 // pred_check_branch
              %3979 = sbr.rel target = $region158
            $region157: #{model_forward.1} parent=142 // pred_region
              _
            $region158: #{model_forward.1} parent=142 // pred_fallthru
              _
          $region143: #{model_forward.1} parent=138 // pred_fallthru
            _
          %3980 = vnop
        $region139: #{model_forward.1} parent=126 // pred_fallthru
          _
      $region127: #{model_forward.1} parent=5 // pred_fallthru
        _
      %p3981 = scmp.le.s32.totalorder 2, %s35
      // Predicated region
      $region159: #{model_forward.1} parent=5 // pred_check
        %p3982 = pneg %p3981
      $region160: #{model_forward.1} parent=5 // pred_check_branch
        %3984 = sbr.rel (%p3982) target = $region162
      $region161: #{model_forward.1} parent=5 // pred_region
        %s3985 = ssub.s32 %s35, 2
        // Predicated region
        $region163: #{model_forward.1} parent=161 // pred_check
          %p3986 = pneg %p531
        $region164: #{model_forward.1} parent=161 // pred_check_branch
          %3988 = sbr.rel (%p3986) target = $region166
        $region165: #{model_forward.1} parent=161 // pred_region
          %s3989 = sand.u32 %s516, 1
          %s3990 = scalar_lea.sflag [#allocation5], %s3989
          %s3991 = sand.u32 %s516, 1
          %s3992 = smul.addr %s3991, 2
          %s3993 = scalar_lea.vmem [#allocation4], %s3992
          %3995 = dma.done %s3990, 32
        $region166: #{model_forward.1} parent=161 // pred_fallthru
          _
        // Predicated region
        $region167: #{model_forward.1} parent=161 // pred_check
          %p3996 = pneg %p557
        $region168: #{model_forward.1} parent=161 // pred_check_branch
          %3998 = sbr.rel (%p3996) target = $region170
        $region169: #{model_forward.1} parent=161 // pred_region
          %s3999 = sand.u32 %s542, 1
          %s4000 = sand.u32 %s542, 1
          %s4001 = smul.addr %s4000, 96
          %s4002 = scalar_lea.vmem [#allocation6], %s4001
        $region170: #{model_forward.1} parent=161 // pred_fallthru
          _
      $region162: #{model_forward.1} parent=5 // pred_fallthru
        _
    $region6: #{model_forward.1} parent=1 // loop_footer
      %s39 = sadd.s32 1, %s35
    $region7: #{model_forward.1} parent=1 // loop_footer_branch
      %34 = sbr.rel target = $region3
    $region8: #{model_forward.1} parent=1 // loop_exit
      _
    %4003 = vsyncpa [#allocation5], 1
    %s4004 = scalar_lea.sflag [#allocation5], 1
    %4005 = vsyncpa %s4004, 1

</llo_original>
